<compile_context>
chip_gen: v7x
topology: tpu7x:2x2x1
jax: 0.10.0
libtpu: 0.0.40
codegen_flags: <defaults>
</compile_context>

<pallas_src>
import math

import jax
import jax.numpy as jnp
from jax import lax
from jax.experimental import pallas as pl
from jax.experimental.pallas import tpu as pltpu

GP = 32                 # lane slot per gate (gates at lane offsets 0, 32, 64, 96)
LANES = 4 * GP          # fused gate width == one vreg lane width (128)
UNROLL = 4              # manual wavefront-loop unroll factor
HID1 = 14               # lstm1 hidden size
HID2 = 28               # lstm2 hidden size
IN_FEAT = 7             # decoder input feature size

_GATE_SCALE = (0.5, 0.5, 1.0, 0.5)   # i, f, g, o  (sigmoid-as-tanh pre-scale; g stays tanh)


# ---------------------------------------------------------------------------
# Fused Pallas kernel: 4 LSTM layers as a batched wavefront over time.
# ---------------------------------------------------------------------------
def _decoder_kernel(x_ref,
                    wih0_ref, whh0_ref, b0_ref,
                    wih1_ref, whh1_ref, b1_ref,
                    wih2_ref, whh2_ref, b2_ref,
                    wih3_ref, whh3_ref, b3_ref,
                    out_ref):
    # x_ref:    (T, B, 7)    time-major input sequence
    # wih*_ref: (I, 128)     input->gate weights, gate g in lanes [g*32, g*32+H), pre-scaled
    # whh*_ref: (H, 128)     hidden->gate weights, same packing
    # b*_ref:   (1, 128)     b_ih + b_hh, same packing
    # out_ref:  (T, B, 28)   time-major lstm2 top-layer hidden sequence
    T = x_ref.shape[0]
    B = x_ref.shape[1]
    W = T + 3                               # wavefront iterations (4-layer pipeline fill)

    def lstm_step(x_in, h, c, wih_ref, whh_ref, b_ref, H):
        # One LSTM cell step for the whole batch: (B, I) and (B, H) -> (B, H).
        z = (jnp.dot(x_in, wih_ref[...], preferred_element_type=jnp.float32)
             + jnp.dot(h, whh_ref[...], preferred_element_type=jnp.float32)
             + b_ref[...])                   # (B, 128) fused gate pre-activations
        tz = jnp.tanh(z)                     # one EUP pass over all 4 gates
        sg = 0.5 * tz + 0.5                  # sigmoid(x) = 0.5*tanh(x/2)+0.5 (pre-scaled)
        i_g = sg[:, 0 * GP:0 * GP + H]
        f_g = sg[:, 1 * GP:1 * GP + H]
        g_g = tz[:, 2 * GP:2 * GP + H]       # candidate gate keeps plain tanh
        o_g = sg[:, 3 * GP:3 * GP + H]
        c_new = f_g * c + i_g * g_g
        h_new = o_g * jnp.tanh(c_new)        # second (and last) EUP push of the step
        return h_new, c_new

    def wave_step(w, carry):
        # At wave index w: layer L processes timestep w - L.  Each layer's input is
        # the previous layer's hidden state from the PREVIOUS iteration (carry-in),
        # so the 4 layer-steps below are independent and overlap.
        h0, c0, h1, c1, h2, c2, h3, c3 = carry
        x0 = x_ref[jnp.minimum(w, T - 1)]                                    # (B, 7)
        nh0, nc0 = lstm_step(x0, h0, c0, wih0_ref, whh0_ref, b0_ref, HID1)   # t = w
        nh1, nc1 = lstm_step(h0, h1, c1, wih1_ref, whh1_ref, b1_ref, HID1)   # t = w-1
        nh2, nc2 = lstm_step(h1, h2, c2, wih2_ref, whh2_ref, b2_ref, HID2)   # t = w-2
        nh3, nc3 = lstm_step(h2, h3, c3, wih3_ref, whh3_ref, b3_ref, HID2)   # t = w-3
        # Prologue masks: layer L keeps its zero initial state until wave index L.
        nh1 = jnp.where(w >= 1, nh1, jnp.zeros_like(nh1))
        nc1 = jnp.where(w >= 1, nc1, jnp.zeros_like(nc1))
        nh2 = jnp.where(w >= 2, nh2, jnp.zeros_like(nh2))
        nc2 = jnp.where(w >= 2, nc2, jnp.zeros_like(nc2))
        nh3 = jnp.where(w >= 3, nh3, jnp.zeros_like(nh3))
        nc3 = jnp.where(w >= 3, nc3, jnp.zeros_like(nc3))
        # Last layer writes straight to the output (w < 3 writes masked zeros to
        # row 0, overwritten by the real value at w == 3).
        out_ref[jnp.maximum(w - 3, 0)] = nh3
        return (nh0, nc0, nh1, nc1, nh2, nc2, nh3, nc3)

    z14 = jnp.zeros((B, HID1), jnp.float32)
    z28 = jnp.zeros((B, HID2), jnp.float32)
    carry = (z14, z14, z14, z14, z28, z28, z28, z28)

    def unrolled_body(i, carry):
        base = i * UNROLL
        for j in range(UNROLL):             # manual unroll: scheduler visibility
            carry = wave_step(base + j, carry)
        return carry

    n_main = W // UNROLL
    if n_main > 0:
        carry = lax.fori_loop(0, n_main, unrolled_body, carry)
    for w in range(n_main * UNROLL, W):     # static remainder
        carry = wave_step(w, carry)


def decoder_forward_pallas(x, packed_layers):
    """x: (B, T, 7) float32 -> (B, T, 28) float32 (PyTorch Decoder.forward)."""
    B, T, _ = x.shape
    x_tm = jnp.transpose(x.astype(jnp.float32), (1, 0, 2))     # (T, B, 7) time-major
    args = [x_tm]
    for wih_p, whh_p, b_p in packed_layers:
        args.extend([wih_p, whh_p, b_p])
    out_tm = pl.pallas_call(
        _decoder_kernel,
        out_shape=jax.ShapeDtypeStruct((T, B, HID2), jnp.float32),
        in_specs=[pl.BlockSpec(memory_space=pltpu.MemorySpace.VMEM)] * len(args),
        out_specs=pl.BlockSpec(memory_space=pltpu.MemorySpace.VMEM),
    )(*args)
    return jnp.transpose(out_tm, (1, 0, 2))                    # back to (B, T, 28)


# ---------------------------------------------------------------------------
# Parameter construction (PyTorch nn.LSTM init semantics) + kernel packing.
# ---------------------------------------------------------------------------
def init_lstm(key, input_size, hidden_size, num_layers):
    bound = 1.0 / math.sqrt(hidden_size)
    layers = []
    for l in range(num_layers):
        isz = input_size if l == 0 else hidden_size
        key, k1, k2, k3, k4 = jax.random.split(key, 5)
        w_ih = jax.random.uniform(k1, (4 * hidden_size, isz), jnp.float32, -bound, bound)
        w_hh = jax.random.uniform(k2, (4 * hidden_size, hidden_size), jnp.float32, -bound, bound)
        b_ih = jax.random.uniform(k3, (4 * hidden_size,), jnp.float32, -bound, bound)
        b_hh = jax.random.uniform(k4, (4 * hidden_size,), jnp.float32, -bound, bound)
        layers.append((w_ih, w_hh, b_ih, b_hh))
    return key, layers


def pack_layer(w_ih, w_hh, b_ih, b_hh):
    """PyTorch-layout (4H, I)/(4H, H)/(4H,) params -> lane-packed kernel layout."""
    H = w_hh.shape[1]
    I = w_ih.shape[1]
    b = b_ih + b_hh
    wih_p = jnp.zeros((I, LANES), jnp.float32)
    whh_p = jnp.zeros((H, LANES), jnp.float32)
    b_p = jnp.zeros((1, LANES), jnp.float32)
    for g in range(4):                 # PyTorch gate order: i, f, g, o
        s = _GATE_SCALE[g]
        wih_p = wih_p.at[:, g * GP:g * GP + H].set(s * w_ih[g * H:(g + 1) * H, :].T)
        whh_p = whh_p.at[:, g * GP:g * GP + H].set(s * w_hh[g * H:(g + 1) * H, :].T)
        b_p = b_p.at[0, g * GP:g * GP + H].set(s * b[g * H:(g + 1) * H])
    return wih_p, whh_p, b_p


def build_params(seed=0):
    key = jax.random.PRNGKey(seed)
    key, lstm1 = init_lstm(key, IN_FEAT, HID1, 2)
    key, lstm2 = init_lstm(key, HID1, HID2, 2)
    raw = lstm1 + lstm2                          # 4 layers in forward order
    packed = [pack_layer(*lp) for lp in raw]
    return raw, packed


# ---------------------------------------------------------------------------
# Pure-JAX reference (correctness check only).
# ---------------------------------------------------------------------------
def _lstm_layer_ref(x, w_ih, w_hh, b_ih, b_hh):
    H = w_hh.shape[1]

    def step(carry, x_t):
        h, c = carry
        g = x_t @ w_ih.T + b_ih + h @ w_hh.T + b_hh
        i = jax.nn.sigmoid(g[:H])
        f = jax.nn.sigmoid(g[H:2 * H])
        gg = jnp.tanh(g[2 * H:3 * H])
        o = jax.nn.sigmoid(g[3 * H:])
        c = f * c + i * gg
        h = o * jnp.tanh(c)
        return (h, c), h

    init = (jnp.zeros(H, jnp.float32), jnp.zeros(H, jnp.float32))
    _, hs = lax.scan(step, init, x)
    return hs


def decoder_forward_ref(x, raw_layers):
    def one(xb):
        h = xb
        for lp in raw_layers:
            h = _lstm_layer_ref(h, *lp)
        return h
    return jax.vmap(one)(x.astype(jnp.float32))


if __name__ == "__main__":
    raw_params, packed_params = build_params(seed=0)

    B, T = 2, 64
    x = jax.random.normal(jax.random.PRNGKey(0), (B, T, IN_FEAT), jnp.float32)

    fwd = jax.jit(lambda xx: decoder_forward_pallas(xx, packed_params))
    out = fwd(x)
    jax.block_until_ready(out)
    assert out.shape == (B, T, HID2)

    ref = jax.jit(lambda xx: decoder_forward_ref(xx, raw_params))(x)
    jax.block_until_ready(ref)
    err = float(jnp.max(jnp.abs(out - ref)))
    assert jnp.allclose(out, ref, atol=2e-3, rtol=2e-3), f"max abs err {err}"

    print("KERNEL_OK")
</pallas_src>

<mosaic_0001>
module attributes {stable_mosaic.version = 11 : i64} {
  func.func @_decoder_kernel(%arg0: memref<64x2x7xf32, #tpu.memory_space<vmem>>, %arg1: memref<7x128xf32, #tpu.memory_space<vmem>>, %arg2: memref<14x128xf32, #tpu.memory_space<vmem>>, %arg3: memref<1x128xf32, #tpu.memory_space<vmem>>, %arg4: memref<14x128xf32, #tpu.memory_space<vmem>>, %arg5: memref<14x128xf32, #tpu.memory_space<vmem>>, %arg6: memref<1x128xf32, #tpu.memory_space<vmem>>, %arg7: memref<14x128xf32, #tpu.memory_space<vmem>>, %arg8: memref<28x128xf32, #tpu.memory_space<vmem>>, %arg9: memref<1x128xf32, #tpu.memory_space<vmem>>, %arg10: memref<28x128xf32, #tpu.memory_space<vmem>>, %arg11: memref<28x128xf32, #tpu.memory_space<vmem>>, %arg12: memref<1x128xf32, #tpu.memory_space<vmem>>, %arg13: memref<64x2x28xf32, #tpu.memory_space<vmem>>) attributes {dimension_semantics = [], scalar_prefetch = 0 : i64, scratch_operands = 0 : i64, tpu.core_type = #tpu.core_type<tc>} {
    %cst = arith.constant 0.000000e+00 : f32
    %0 = vector.broadcast %cst : f32 to vector<2x14xf32>
    %cst_0 = arith.constant 0.000000e+00 : f32
    %1 = vector.broadcast %cst_0 : f32 to vector<2x28xf32>
    %c0_i32 = arith.constant 0 : i32
    %c16_i32 = arith.constant 16 : i32
    %2 = arith.addi %c0_i32, %c16_i32 : i32
    %c1_i32 = arith.constant 1 : i32
    %3:8 = scf.for %arg14 = %c0_i32 to %2 step %c1_i32 iter_args(%arg15 = %0, %arg16 = %0, %arg17 = %0, %arg18 = %0, %arg19 = %1, %arg20 = %1, %arg21 = %1, %arg22 = %1) -> (vector<2x14xf32>, vector<2x14xf32>, vector<2x14xf32>, vector<2x14xf32>, vector<2x28xf32>, vector<2x28xf32>, vector<2x28xf32>, vector<2x28xf32>)  : i32 {
      %c4_i32 = arith.constant 4 : i32
      %169 = arith.muli %arg14, %c4_i32 : i32
      %c0_i32_87 = arith.constant 0 : i32
      %170 = arith.addi %169, %c0_i32_87 : i32
      %c63_i32_88 = arith.constant 63 : i32
      %171 = arith.minsi %170, %c63_i32_88 : i32
      %172 = arith.index_cast %171 : i32 to index
      %c0_89 = arith.constant 0 : index
      %c0_90 = arith.constant 0 : index
      %173 = vector.load %arg0[%172, %c0_89, %c0_90] : memref<64x2x7xf32, #tpu.memory_space<vmem>>, vector<1x2x7xf32>
      %174 = vector.shape_cast %173 : vector<1x2x7xf32> to vector<2x7xf32>
      %c0_91 = arith.constant 0 : index
      %c0_92 = arith.constant 0 : index
      %175 = vector.load %arg1[%c0_91, %c0_92] : memref<7x128xf32, #tpu.memory_space<vmem>>, vector<7x128xf32>
      %cst_93 = arith.constant dense<0.000000e+00> : vector<2x128xf32>
      %176 = tpu.matmul %174, %175, %cst_93 {dimension_numbers = #tpu.dot_dimension_numbers<[1], [0], [0], [1], [0, 0, 1, 1], [], []>} : vector<2x7xf32>, vector<7x128xf32>, vector<2x128xf32> -> vector<2x128xf32>
      %c0_94 = arith.constant 0 : index
      %c0_95 = arith.constant 0 : index
      %177 = vector.load %arg2[%c0_94, %c0_95] : memref<14x128xf32, #tpu.memory_space<vmem>>, vector<14x128xf32>
      %cst_96 = arith.constant dense<0.000000e+00> : vector<2x128xf32>
      %178 = tpu.matmul %arg15, %177, %cst_96 {dimension_numbers = #tpu.dot_dimension_numbers<[1], [0], [0], [1], [0, 0, 1, 1], [], []>} : vector<2x14xf32>, vector<14x128xf32>, vector<2x128xf32> -> vector<2x128xf32>
      %179 = arith.addf %176, %178 : vector<2x128xf32>
      %c0_97 = arith.constant 0 : index
      %c0_98 = arith.constant 0 : index
      %180 = vector.load %arg3[%c0_97, %c0_98] : memref<1x128xf32, #tpu.memory_space<vmem>>, vector<1x128xf32>
      %181 = vector.broadcast %180 : vector<1x128xf32> to vector<2x128xf32>
      %182 = arith.addf %179, %181 : vector<2x128xf32>
      %183 = math.tanh %182 : vector<2x128xf32>
      %cst_99 = arith.constant 5.000000e-01 : f32
      %184 = vector.broadcast %cst_99 : f32 to vector<2x128xf32>
      %185 = arith.mulf %184, %183 : vector<2x128xf32>
      %cst_100 = arith.constant 5.000000e-01 : f32
      %186 = vector.broadcast %cst_100 : f32 to vector<2x128xf32>
      %187 = arith.addf %185, %186 : vector<2x128xf32>
      %188 = vector.extract_strided_slice %187 {offsets = [0, 0], sizes = [2, 14], strides = [1, 1]} : vector<2x128xf32> to vector<2x14xf32>
      %189 = vector.extract_strided_slice %187 {offsets = [0, 32], sizes = [2, 14], strides = [1, 1]} : vector<2x128xf32> to vector<2x14xf32>
      %190 = vector.extract_strided_slice %183 {offsets = [0, 64], sizes = [2, 14], strides = [1, 1]} : vector<2x128xf32> to vector<2x14xf32>
      %191 = vector.extract_strided_slice %187 {offsets = [0, 96], sizes = [2, 14], strides = [1, 1]} : vector<2x128xf32> to vector<2x14xf32>
      %192 = arith.mulf %189, %arg16 : vector<2x14xf32>
      %193 = arith.mulf %188, %190 : vector<2x14xf32>
      %194 = arith.addf %192, %193 : vector<2x14xf32>
      %195 = math.tanh %194 : vector<2x14xf32>
      %196 = arith.mulf %191, %195 : vector<2x14xf32>
      %c0_101 = arith.constant 0 : index
      %c0_102 = arith.constant 0 : index
      %197 = vector.load %arg4[%c0_101, %c0_102] : memref<14x128xf32, #tpu.memory_space<vmem>>, vector<14x128xf32>
      %cst_103 = arith.constant dense<0.000000e+00> : vector<2x128xf32>
      %198 = tpu.matmul %arg15, %197, %cst_103 {dimension_numbers = #tpu.dot_dimension_numbers<[1], [0], [0], [1], [0, 0, 1, 1], [], []>} : vector<2x14xf32>, vector<14x128xf32>, vector<2x128xf32> -> vector<2x128xf32>
      %c0_104 = arith.constant 0 : index
      %c0_105 = arith.constant 0 : index
      %199 = vector.load %arg5[%c0_104, %c0_105] : memref<14x128xf32, #tpu.memory_space<vmem>>, vector<14x128xf32>
      %cst_106 = arith.constant dense<0.000000e+00> : vector<2x128xf32>
      %200 = tpu.matmul %arg17, %199, %cst_106 {dimension_numbers = #tpu.dot_dimension_numbers<[1], [0], [0], [1], [0, 0, 1, 1], [], []>} : vector<2x14xf32>, vector<14x128xf32>, vector<2x128xf32> -> vector<2x128xf32>
      %201 = arith.addf %198, %200 : vector<2x128xf32>
      %c0_107 = arith.constant 0 : index
      %c0_108 = arith.constant 0 : index
      %202 = vector.load %arg6[%c0_107, %c0_108] : memref<1x128xf32, #tpu.memory_space<vmem>>, vector<1x128xf32>
      %203 = vector.broadcast %202 : vector<1x128xf32> to vector<2x128xf32>
      %204 = arith.addf %201, %203 : vector<2x128xf32>
      %205 = math.tanh %204 : vector<2x128xf32>
      %cst_109 = arith.constant 5.000000e-01 : f32
      %206 = vector.broadcast %cst_109 : f32 to vector<2x128xf32>
      %207 = arith.mulf %206, %205 : vector<2x128xf32>
      %cst_110 = arith.constant 5.000000e-01 : f32
      %208 = vector.broadcast %cst_110 : f32 to vector<2x128xf32>
      %209 = arith.addf %207, %208 : vector<2x128xf32>
      %210 = vector.extract_strided_slice %209 {offsets = [0, 0], sizes = [2, 14], strides = [1, 1]} : vector<2x128xf32> to vector<2x14xf32>
      %211 = vector.extract_strided_slice %209 {offsets = [0, 32], sizes = [2, 14], strides = [1, 1]} : vector<2x128xf32> to vector<2x14xf32>
      %212 = vector.extract_strided_slice %205 {offsets = [0, 64], sizes = [2, 14], strides = [1, 1]} : vector<2x128xf32> to vector<2x14xf32>
      %213 = vector.extract_strided_slice %209 {offsets = [0, 96], sizes = [2, 14], strides = [1, 1]} : vector<2x128xf32> to vector<2x14xf32>
      %214 = arith.mulf %211, %arg18 : vector<2x14xf32>
      %215 = arith.mulf %210, %212 : vector<2x14xf32>
      %216 = arith.addf %214, %215 : vector<2x14xf32>
      %217 = math.tanh %216 : vector<2x14xf32>
      %218 = arith.mulf %213, %217 : vector<2x14xf32>
      %c0_111 = arith.constant 0 : index
      %c0_112 = arith.constant 0 : index
      %219 = vector.load %arg7[%c0_111, %c0_112] : memref<14x128xf32, #tpu.memory_space<vmem>>, vector<14x128xf32>
      %cst_113 = arith.constant dense<0.000000e+00> : vector<2x128xf32>
      %220 = tpu.matmul %arg17, %219, %cst_113 {dimension_numbers = #tpu.dot_dimension_numbers<[1], [0], [0], [1], [0, 0, 1, 1], [], []>} : vector<2x14xf32>, vector<14x128xf32>, vector<2x128xf32> -> vector<2x128xf32>
      %c0_114 = arith.constant 0 : index
      %c0_115 = arith.constant 0 : index
      %221 = vector.load %arg8[%c0_114, %c0_115] : memref<28x128xf32, #tpu.memory_space<vmem>>, vector<28x128xf32>
      %cst_116 = arith.constant dense<0.000000e+00> : vector<2x128xf32>
      %222 = tpu.matmul %arg19, %221, %cst_116 {dimension_numbers = #tpu.dot_dimension_numbers<[1], [0], [0], [1], [0, 0, 1, 1], [], []>} : vector<2x28xf32>, vector<28x128xf32>, vector<2x128xf32> -> vector<2x128xf32>
      %223 = arith.addf %220, %222 : vector<2x128xf32>
      %c0_117 = arith.constant 0 : index
      %c0_118 = arith.constant 0 : index
      %224 = vector.load %arg9[%c0_117, %c0_118] : memref<1x128xf32, #tpu.memory_space<vmem>>, vector<1x128xf32>
      %225 = vector.broadcast %224 : vector<1x128xf32> to vector<2x128xf32>
      %226 = arith.addf %223, %225 : vector<2x128xf32>
      %227 = math.tanh %226 : vector<2x128xf32>
      %cst_119 = arith.constant 5.000000e-01 : f32
      %228 = vector.broadcast %cst_119 : f32 to vector<2x128xf32>
      %229 = arith.mulf %228, %227 : vector<2x128xf32>
      %cst_120 = arith.constant 5.000000e-01 : f32
      %230 = vector.broadcast %cst_120 : f32 to vector<2x128xf32>
      %231 = arith.addf %229, %230 : vector<2x128xf32>
      %232 = vector.extract_strided_slice %231 {offsets = [0, 0], sizes = [2, 28], strides = [1, 1]} : vector<2x128xf32> to vector<2x28xf32>
      %233 = vector.extract_strided_slice %231 {offsets = [0, 32], sizes = [2, 28], strides = [1, 1]} : vector<2x128xf32> to vector<2x28xf32>
      %234 = vector.extract_strided_slice %227 {offsets = [0, 64], sizes = [2, 28], strides = [1, 1]} : vector<2x128xf32> to vector<2x28xf32>
      %235 = vector.extract_strided_slice %231 {offsets = [0, 96], sizes = [2, 28], strides = [1, 1]} : vector<2x128xf32> to vector<2x28xf32>
      %236 = arith.mulf %233, %arg20 : vector<2x28xf32>
      %237 = arith.mulf %232, %234 : vector<2x28xf32>
      %238 = arith.addf %236, %237 : vector<2x28xf32>
      %239 = math.tanh %238 : vector<2x28xf32>
      %240 = arith.mulf %235, %239 : vector<2x28xf32>
      %c0_121 = arith.constant 0 : index
      %c0_122 = arith.constant 0 : index
      %241 = vector.load %arg10[%c0_121, %c0_122] : memref<28x128xf32, #tpu.memory_space<vmem>>, vector<28x128xf32>
      %cst_123 = arith.constant dense<0.000000e+00> : vector<2x128xf32>
      %242 = tpu.matmul %arg19, %241, %cst_123 {dimension_numbers = #tpu.dot_dimension_numbers<[1], [0], [0], [1], [0, 0, 1, 1], [], []>} : vector<2x28xf32>, vector<28x128xf32>, vector<2x128xf32> -> vector<2x128xf32>
      %c0_124 = arith.constant 0 : index
      %c0_125 = arith.constant 0 : index
      %243 = vector.load %arg11[%c0_124, %c0_125] : memref<28x128xf32, #tpu.memory_space<vmem>>, vector<28x128xf32>
      %cst_126 = arith.constant dense<0.000000e+00> : vector<2x128xf32>
      %244 = tpu.matmul %arg21, %243, %cst_126 {dimension_numbers = #tpu.dot_dimension_numbers<[1], [0], [0], [1], [0, 0, 1, 1], [], []>} : vector<2x28xf32>, vector<28x128xf32>, vector<2x128xf32> -> vector<2x128xf32>
      %245 = arith.addf %242, %244 : vector<2x128xf32>
      %c0_127 = arith.constant 0 : index
      %c0_128 = arith.constant 0 : index
      %246 = vector.load %arg12[%c0_127, %c0_128] : memref<1x128xf32, #tpu.memory_space<vmem>>, vector<1x128xf32>
      %247 = vector.broadcast %246 : vector<1x128xf32> to vector<2x128xf32>
      %248 = arith.addf %245, %247 : vector<2x128xf32>
      %249 = math.tanh %248 : vector<2x128xf32>
      %cst_129 = arith.constant 5.000000e-01 : f32
      %250 = vector.broadcast %cst_129 : f32 to vector<2x128xf32>
      %251 = arith.mulf %250, %249 : vector<2x128xf32>
      %cst_130 = arith.constant 5.000000e-01 : f32
      %252 = vector.broadcast %cst_130 : f32 to vector<2x128xf32>
      %253 = arith.addf %251, %252 : vector<2x128xf32>
      %254 = vector.extract_strided_slice %253 {offsets = [0, 0], sizes = [2, 28], strides = [1, 1]} : vector<2x128xf32> to vector<2x28xf32>
      %255 = vector.extract_strided_slice %253 {offsets = [0, 32], sizes = [2, 28], strides = [1, 1]} : vector<2x128xf32> to vector<2x28xf32>
      %256 = vector.extract_strided_slice %249 {offsets = [0, 64], sizes = [2, 28], strides = [1, 1]} : vector<2x128xf32> to vector<2x28xf32>
      %257 = vector.extract_strided_slice %253 {offsets = [0, 96], sizes = [2, 28], strides = [1, 1]} : vector<2x128xf32> to vector<2x28xf32>
      %258 = arith.mulf %255, %arg22 : vector<2x28xf32>
      %259 = arith.mulf %254, %256 : vector<2x28xf32>
      %260 = arith.addf %258, %259 : vector<2x28xf32>
      %261 = math.tanh %260 : vector<2x28xf32>
      %262 = arith.mulf %257, %261 : vector<2x28xf32>
      %c1_i32_131 = arith.constant 1 : i32
      %263 = arith.cmpi sge, %170, %c1_i32_131 : i32
      %cst_132 = arith.constant 0.000000e+00 : f32
      %264 = vector.broadcast %cst_132 : f32 to vector<2x14xf32>
      %265 = arith.select %263, %218, %264 : vector<2x14xf32>
      %c1_i32_133 = arith.constant 1 : i32
      %266 = arith.cmpi sge, %170, %c1_i32_133 : i32
      %cst_134 = arith.constant 0.000000e+00 : f32
      %267 = vector.broadcast %cst_134 : f32 to vector<2x14xf32>
      %268 = arith.select %266, %216, %267 : vector<2x14xf32>
      %c2_i32 = arith.constant 2 : i32
      %269 = arith.cmpi sge, %170, %c2_i32 : i32
      %cst_135 = arith.constant 0.000000e+00 : f32
      %270 = vector.broadcast %cst_135 : f32 to vector<2x28xf32>
      %271 = arith.select %269, %240, %270 : vector<2x28xf32>
      %c2_i32_136 = arith.constant 2 : i32
      %272 = arith.cmpi sge, %170, %c2_i32_136 : i32
      %cst_137 = arith.constant 0.000000e+00 : f32
      %273 = vector.broadcast %cst_137 : f32 to vector<2x28xf32>
      %274 = arith.select %272, %238, %273 : vector<2x28xf32>
      %c3_i32 = arith.constant 3 : i32
      %275 = arith.cmpi sge, %170, %c3_i32 : i32
      %cst_138 = arith.constant 0.000000e+00 : f32
      %276 = vector.broadcast %cst_138 : f32 to vector<2x28xf32>
      %277 = arith.select %275, %262, %276 : vector<2x28xf32>
      %c3_i32_139 = arith.constant 3 : i32
      %278 = arith.cmpi sge, %170, %c3_i32_139 : i32
      %cst_140 = arith.constant 0.000000e+00 : f32
      %279 = vector.broadcast %cst_140 : f32 to vector<2x28xf32>
      %280 = arith.select %278, %260, %279 : vector<2x28xf32>
      %c3_i32_141 = arith.constant 3 : i32
      %281 = arith.subi %170, %c3_i32_141 : i32
      %c0_i32_142 = arith.constant 0 : i32
      %282 = arith.maxsi %281, %c0_i32_142 : i32
      %283 = arith.index_cast %282 : i32 to index
      %c0_143 = arith.constant 0 : index
      %c0_144 = arith.constant 0 : index
      %284 = vector.load %arg13[%283, %c0_143, %c0_144] : memref<64x2x28xf32, #tpu.memory_space<vmem>>, vector<1x2x28xf32>
      %285 = vector.shape_cast %284 : vector<1x2x28xf32> to vector<2x28xf32>
      %286 = vector.shape_cast %277 : vector<2x28xf32> to vector<1x2x28xf32>
      tpu.vector_store %arg13[%283, %c0_143, %c0_144], %286 {strides = array<i32>} : memref<64x2x28xf32, #tpu.memory_space<vmem>>, vector<1x2x28xf32>,
      %c1_i32_145 = arith.constant 1 : i32
      %287 = arith.addi %169, %c1_i32_145 : i32
      %c63_i32_146 = arith.constant 63 : i32
      %288 = arith.minsi %287, %c63_i32_146 : i32
      %289 = arith.index_cast %288 : i32 to index
      %c0_147 = arith.constant 0 : index
      %c0_148 = arith.constant 0 : index
      %290 = vector.load %arg0[%289, %c0_147, %c0_148] : memref<64x2x7xf32, #tpu.memory_space<vmem>>, vector<1x2x7xf32>
      %291 = vector.shape_cast %290 : vector<1x2x7xf32> to vector<2x7xf32>
      %c0_149 = arith.constant 0 : index
      %c0_150 = arith.constant 0 : index
      %292 = vector.load %arg1[%c0_149, %c0_150] : memref<7x128xf32, #tpu.memory_space<vmem>>, vector<7x128xf32>
      %cst_151 = arith.constant dense<0.000000e+00> : vector<2x128xf32>
      %293 = tpu.matmul %291, %292, %cst_151 {dimension_numbers = #tpu.dot_dimension_numbers<[1], [0], [0], [1], [0, 0, 1, 1], [], []>} : vector<2x7xf32>, vector<7x128xf32>, vector<2x128xf32> -> vector<2x128xf32>
      %c0_152 = arith.constant 0 : index
      %c0_153 = arith.constant 0 : index
      %294 = vector.load %arg2[%c0_152, %c0_153] : memref<14x128xf32, #tpu.memory_space<vmem>>, vector<14x128xf32>
      %cst_154 = arith.constant dense<0.000000e+00> : vector<2x128xf32>
      %295 = tpu.matmul %196, %294, %cst_154 {dimension_numbers = #tpu.dot_dimension_numbers<[1], [0], [0], [1], [0, 0, 1, 1], [], []>} : vector<2x14xf32>, vector<14x128xf32>, vector<2x128xf32> -> vector<2x128xf32>
      %296 = arith.addf %293, %295 : vector<2x128xf32>
      %c0_155 = arith.constant 0 : index
      %c0_156 = arith.constant 0 : index
      %297 = vector.load %arg3[%c0_155, %c0_156] : memref<1x128xf32, #tpu.memory_space<vmem>>, vector<1x128xf32>
      %298 = vector.broadcast %297 : vector<1x128xf32> to vector<2x128xf32>
      %299 = arith.addf %296, %298 : vector<2x128xf32>
      %300 = math.tanh %299 : vector<2x128xf32>
      %cst_157 = arith.constant 5.000000e-01 : f32
      %301 = vector.broadcast %cst_157 : f32 to vector<2x128xf32>
      %302 = arith.mulf %301, %300 : vector<2x128xf32>
      %cst_158 = arith.constant 5.000000e-01 : f32
      %303 = vector.broadcast %cst_158 : f32 to vector<2x128xf32>
      %304 = arith.addf %302, %303 : vector<2x128xf32>
      %305 = vector.extract_strided_slice %304 {offsets = [0, 0], sizes = [2, 14], strides = [1, 1]} : vector<2x128xf32> to vector<2x14xf32>
      %306 = vector.extract_strided_slice %304 {offsets = [0, 32], sizes = [2, 14], strides = [1, 1]} : vector<2x128xf32> to vector<2x14xf32>
      %307 = vector.extract_strided_slice %300 {offsets = [0, 64], sizes = [2, 14], strides = [1, 1]} : vector<2x128xf32> to vector<2x14xf32>
      %308 = vector.extract_strided_slice %304 {offsets = [0, 96], sizes = [2, 14], strides = [1, 1]} : vector<2x128xf32> to vector<2x14xf32>
      %309 = arith.mulf %306, %194 : vector<2x14xf32>
      %310 = arith.mulf %305, %307 : vector<2x14xf32>
      %311 = arith.addf %309, %310 : vector<2x14xf32>
      %312 = math.tanh %311 : vector<2x14xf32>
      %313 = arith.mulf %308, %312 : vector<2x14xf32>
      %c0_159 = arith.constant 0 : index
      %c0_160 = arith.constant 0 : index
      %314 = vector.load %arg4[%c0_159, %c0_160] : memref<14x128xf32, #tpu.memory_space<vmem>>, vector<14x128xf32>
      %cst_161 = arith.constant dense<0.000000e+00> : vector<2x128xf32>
      %315 = tpu.matmul %196, %314, %cst_161 {dimension_numbers = #tpu.dot_dimension_numbers<[1], [0], [0], [1], [0, 0, 1, 1], [], []>} : vector<2x14xf32>, vector<14x128xf32>, vector<2x128xf32> -> vector<2x128xf32>
      %c0_162 = arith.constant 0 : index
      %c0_163 = arith.constant 0 : index
      %316 = vector.load %arg5[%c0_162, %c0_163] : memref<14x128xf32, #tpu.memory_space<vmem>>, vector<14x128xf32>
      %cst_164 = arith.constant dense<0.000000e+00> : vector<2x128xf32>
      %317 = tpu.matmul %265, %316, %cst_164 {dimension_numbers = #tpu.dot_dimension_numbers<[1], [0], [0], [1], [0, 0, 1, 1], [], []>} : vector<2x14xf32>, vector<14x128xf32>, vector<2x128xf32> -> vector<2x128xf32>
      %318 = arith.addf %315, %317 : vector<2x128xf32>
      %c0_165 = arith.constant 0 : index
      %c0_166 = arith.constant 0 : index
      %319 = vector.load %arg6[%c0_165, %c0_166] : memref<1x128xf32, #tpu.memory_space<vmem>>, vector<1x128xf32>
      %320 = vector.broadcast %319 : vector<1x128xf32> to vector<2x128xf32>
      %321 = arith.addf %318, %320 : vector<2x128xf32>
      %322 = math.tanh %321 : vector<2x128xf32>
      %cst_167 = arith.constant 5.000000e-01 : f32
      %323 = vector.broadcast %cst_167 : f32 to vector<2x128xf32>
      %324 = arith.mulf %323, %322 : vector<2x128xf32>
      %cst_168 = arith.constant 5.000000e-01 : f32
      %325 = vector.broadcast %cst_168 : f32 to vector<2x128xf32>
      %326 = arith.addf %324, %325 : vector<2x128xf32>
      %327 = vector.extract_strided_slice %326 {offsets = [0, 0], sizes = [2, 14], strides = [1, 1]} : vector<2x128xf32> to vector<2x14xf32>
      %328 = vector.extract_strided_slice %326 {offsets = [0, 32], sizes = [2, 14], strides = [1, 1]} : vector<2x128xf32> to vector<2x14xf32>
      %329 = vector.extract_strided_slice %322 {offsets = [0, 64], sizes = [2, 14], strides = [1, 1]} : vector<2x128xf32> to vector<2x14xf32>
      %330 = vector.extract_strided_slice %326 {offsets = [0, 96], sizes = [2, 14], strides = [1, 1]} : vector<2x128xf32> to vector<2x14xf32>
      %331 = arith.mulf %328, %268 : vector<2x14xf32>
      %332 = arith.mulf %327, %329 : vector<2x14xf32>
      %333 = arith.addf %331, %332 : vector<2x14xf32>
      %334 = math.tanh %333 : vector<2x14xf32>
      %335 = arith.mulf %330, %334 : vector<2x14xf32>
      %c0_169 = arith.constant 0 : index
      %c0_170 = arith.constant 0 : index
      %336 = vector.load %arg7[%c0_169, %c0_170] : memref<14x128xf32, #tpu.memory_space<vmem>>, vector<14x128xf32>
      %cst_171 = arith.constant dense<0.000000e+00> : vector<2x128xf32>
      %337 = tpu.matmul %265, %336, %cst_171 {dimension_numbers = #tpu.dot_dimension_numbers<[1], [0], [0], [1], [0, 0, 1, 1], [], []>} : vector<2x14xf32>, vector<14x128xf32>, vector<2x128xf32> -> vector<2x128xf32>
      %c0_172 = arith.constant 0 : index
      %c0_173 = arith.constant 0 : index
      %338 = vector.load %arg8[%c0_172, %c0_173] : memref<28x128xf32, #tpu.memory_space<vmem>>, vector<28x128xf32>
      %cst_174 = arith.constant dense<0.000000e+00> : vector<2x128xf32>
      %339 = tpu.matmul %271, %338, %cst_174 {dimension_numbers = #tpu.dot_dimension_numbers<[1], [0], [0], [1], [0, 0, 1, 1], [], []>} : vector<2x28xf32>, vector<28x128xf32>, vector<2x128xf32> -> vector<2x128xf32>
      %340 = arith.addf %337, %339 : vector<2x128xf32>
      %c0_175 = arith.constant 0 : index
      %c0_176 = arith.constant 0 : index
      %341 = vector.load %arg9[%c0_175, %c0_176] : memref<1x128xf32, #tpu.memory_space<vmem>>, vector<1x128xf32>
      %342 = vector.broadcast %341 : vector<1x128xf32> to vector<2x128xf32>
      %343 = arith.addf %340, %342 : vector<2x128xf32>
      %344 = math.tanh %343 : vector<2x128xf32>
      %cst_177 = arith.constant 5.000000e-01 : f32
      %345 = vector.broadcast %cst_177 : f32 to vector<2x128xf32>
      %346 = arith.mulf %345, %344 : vector<2x128xf32>
      %cst_178 = arith.constant 5.000000e-01 : f32
      %347 = vector.broadcast %cst_178 : f32 to vector<2x128xf32>
      %348 = arith.addf %346, %347 : vector<2x128xf32>
      %349 = vector.extract_strided_slice %348 {offsets = [0, 0], sizes = [2, 28], strides = [1, 1]} : vector<2x128xf32> to vector<2x28xf32>
      %350 = vector.extract_strided_slice %348 {offsets = [0, 32], sizes = [2, 28], strides = [1, 1]} : vector<2x128xf32> to vector<2x28xf32>
      %351 = vector.extract_strided_slice %344 {offsets = [0, 64], sizes = [2, 28], strides = [1, 1]} : vector<2x128xf32> to vector<2x28xf32>
      %352 = vector.extract_strided_slice %348 {offsets = [0, 96], sizes = [2, 28], strides = [1, 1]} : vector<2x128xf32> to vector<2x28xf32>
      %353 = arith.mulf %350, %274 : vector<2x28xf32>
      %354 = arith.mulf %349, %351 : vector<2x28xf32>
      %355 = arith.addf %353, %354 : vector<2x28xf32>
      %356 = math.tanh %355 : vector<2x28xf32>
      %357 = arith.mulf %352, %356 : vector<2x28xf32>
      %c0_179 = arith.constant 0 : index
      %c0_180 = arith.constant 0 : index
      %358 = vector.load %arg10[%c0_179, %c0_180] : memref<28x128xf32, #tpu.memory_space<vmem>>, vector<28x128xf32>
      %cst_181 = arith.constant dense<0.000000e+00> : vector<2x128xf32>
      %359 = tpu.matmul %271, %358, %cst_181 {dimension_numbers = #tpu.dot_dimension_numbers<[1], [0], [0], [1], [0, 0, 1, 1], [], []>} : vector<2x28xf32>, vector<28x128xf32>, vector<2x128xf32> -> vector<2x128xf32>
      %c0_182 = arith.constant 0 : index
      %c0_183 = arith.constant 0 : index
      %360 = vector.load %arg11[%c0_182, %c0_183] : memref<28x128xf32, #tpu.memory_space<vmem>>, vector<28x128xf32>
      %cst_184 = arith.constant dense<0.000000e+00> : vector<2x128xf32>
      %361 = tpu.matmul %277, %360, %cst_184 {dimension_numbers = #tpu.dot_dimension_numbers<[1], [0], [0], [1], [0, 0, 1, 1], [], []>} : vector<2x28xf32>, vector<28x128xf32>, vector<2x128xf32> -> vector<2x128xf32>
      %362 = arith.addf %359, %361 : vector<2x128xf32>
      %c0_185 = arith.constant 0 : index
      %c0_186 = arith.constant 0 : index
      %363 = vector.load %arg12[%c0_185, %c0_186] : memref<1x128xf32, #tpu.memory_space<vmem>>, vector<1x128xf32>
      %364 = vector.broadcast %363 : vector<1x128xf32> to vector<2x128xf32>
      %365 = arith.addf %362, %364 : vector<2x128xf32>
      %366 = math.tanh %365 : vector<2x128xf32>
      %cst_187 = arith.constant 5.000000e-01 : f32
      %367 = vector.broadcast %cst_187 : f32 to vector<2x128xf32>
      %368 = arith.mulf %367, %366 : vector<2x128xf32>
      %cst_188 = arith.constant 5.000000e-01 : f32
      %369 = vector.broadcast %cst_188 : f32 to vector<2x128xf32>
      %370 = arith.addf %368, %369 : vector<2x128xf32>
      %371 = vector.extract_strided_slice %370 {offsets = [0, 0], sizes = [2, 28], strides = [1, 1]} : vector<2x128xf32> to vector<2x28xf32>
      %372 = vector.extract_strided_slice %370 {offsets = [0, 32], sizes = [2, 28], strides = [1, 1]} : vector<2x128xf32> to vector<2x28xf32>
      %373 = vector.extract_strided_slice %366 {offsets = [0, 64], sizes = [2, 28], strides = [1, 1]} : vector<2x128xf32> to vector<2x28xf32>
      %374 = vector.extract_strided_slice %370 {offsets = [0, 96], sizes = [2, 28], strides = [1, 1]} : vector<2x128xf32> to vector<2x28xf32>
      %375 = arith.mulf %372, %280 : vector<2x28xf32>
      %376 = arith.mulf %371, %373 : vector<2x28xf32>
      %377 = arith.addf %375, %376 : vector<2x28xf32>
      %378 = math.tanh %377 : vector<2x28xf32>
      %379 = arith.mulf %374, %378 : vector<2x28xf32>
      %c1_i32_189 = arith.constant 1 : i32
      %380 = arith.cmpi sge, %287, %c1_i32_189 : i32
      %cst_190 = arith.constant 0.000000e+00 : f32
      %381 = vector.broadcast %cst_190 : f32 to vector<2x14xf32>
      %382 = arith.select %380, %335, %381 : vector<2x14xf32>
      %c1_i32_191 = arith.constant 1 : i32
      %383 = arith.cmpi sge, %287, %c1_i32_191 : i32
      %cst_192 = arith.constant 0.000000e+00 : f32
      %384 = vector.broadcast %cst_192 : f32 to vector<2x14xf32>
      %385 = arith.select %383, %333, %384 : vector<2x14xf32>
      %c2_i32_193 = arith.constant 2 : i32
      %386 = arith.cmpi sge, %287, %c2_i32_193 : i32
      %cst_194 = arith.constant 0.000000e+00 : f32
      %387 = vector.broadcast %cst_194 : f32 to vector<2x28xf32>
      %388 = arith.select %386, %357, %387 : vector<2x28xf32>
      %c2_i32_195 = arith.constant 2 : i32
      %389 = arith.cmpi sge, %287, %c2_i32_195 : i32
      %cst_196 = arith.constant 0.000000e+00 : f32
      %390 = vector.broadcast %cst_196 : f32 to vector<2x28xf32>
      %391 = arith.select %389, %355, %390 : vector<2x28xf32>
      %c3_i32_197 = arith.constant 3 : i32
      %392 = arith.cmpi sge, %287, %c3_i32_197 : i32
      %cst_198 = arith.constant 0.000000e+00 : f32
      %393 = vector.broadcast %cst_198 : f32 to vector<2x28xf32>
      %394 = arith.select %392, %379, %393 : vector<2x28xf32>
      %c3_i32_199 = arith.constant 3 : i32
      %395 = arith.cmpi sge, %287, %c3_i32_199 : i32
      %cst_200 = arith.constant 0.000000e+00 : f32
      %396 = vector.broadcast %cst_200 : f32 to vector<2x28xf32>
      %397 = arith.select %395, %377, %396 : vector<2x28xf32>
      %c3_i32_201 = arith.constant 3 : i32
      %398 = arith.subi %287, %c3_i32_201 : i32
      %c0_i32_202 = arith.constant 0 : i32
      %399 = arith.maxsi %398, %c0_i32_202 : i32
      %400 = arith.index_cast %399 : i32 to index
      %c0_203 = arith.constant 0 : index
      %c0_204 = arith.constant 0 : index
      %401 = vector.load %arg13[%400, %c0_203, %c0_204] : memref<64x2x28xf32, #tpu.memory_space<vmem>>, vector<1x2x28xf32>
      %402 = vector.shape_cast %401 : vector<1x2x28xf32> to vector<2x28xf32>
      %403 = vector.shape_cast %394 : vector<2x28xf32> to vector<1x2x28xf32>
      tpu.vector_store %arg13[%400, %c0_203, %c0_204], %403 {strides = array<i32>} : memref<64x2x28xf32, #tpu.memory_space<vmem>>, vector<1x2x28xf32>,
      %c2_i32_205 = arith.constant 2 : i32
      %404 = arith.addi %169, %c2_i32_205 : i32
      %c63_i32_206 = arith.constant 63 : i32
      %405 = arith.minsi %404, %c63_i32_206 : i32
      %406 = arith.index_cast %405 : i32 to index
      %c0_207 = arith.constant 0 : index
      %c0_208 = arith.constant 0 : index
      %407 = vector.load %arg0[%406, %c0_207, %c0_208] : memref<64x2x7xf32, #tpu.memory_space<vmem>>, vector<1x2x7xf32>
      %408 = vector.shape_cast %407 : vector<1x2x7xf32> to vector<2x7xf32>
      %c0_209 = arith.constant 0 : index
      %c0_210 = arith.constant 0 : index
      %409 = vector.load %arg1[%c0_209, %c0_210] : memref<7x128xf32, #tpu.memory_space<vmem>>, vector<7x128xf32>
      %cst_211 = arith.constant dense<0.000000e+00> : vector<2x128xf32>
      %410 = tpu.matmul %408, %409, %cst_211 {dimension_numbers = #tpu.dot_dimension_numbers<[1], [0], [0], [1], [0, 0, 1, 1], [], []>} : vector<2x7xf32>, vector<7x128xf32>, vector<2x128xf32> -> vector<2x128xf32>
      %c0_212 = arith.constant 0 : index
      %c0_213 = arith.constant 0 : index
      %411 = vector.load %arg2[%c0_212, %c0_213] : memref<14x128xf32, #tpu.memory_space<vmem>>, vector<14x128xf32>
      %cst_214 = arith.constant dense<0.000000e+00> : vector<2x128xf32>
      %412 = tpu.matmul %313, %411, %cst_214 {dimension_numbers = #tpu.dot_dimension_numbers<[1], [0], [0], [1], [0, 0, 1, 1], [], []>} : vector<2x14xf32>, vector<14x128xf32>, vector<2x128xf32> -> vector<2x128xf32>
      %413 = arith.addf %410, %412 : vector<2x128xf32>
      %c0_215 = arith.constant 0 : index
      %c0_216 = arith.constant 0 : index
      %414 = vector.load %arg3[%c0_215, %c0_216] : memref<1x128xf32, #tpu.memory_space<vmem>>, vector<1x128xf32>
      %415 = vector.broadcast %414 : vector<1x128xf32> to vector<2x128xf32>
      %416 = arith.addf %413, %415 : vector<2x128xf32>
      %417 = math.tanh %416 : vector<2x128xf32>
      %cst_217 = arith.constant 5.000000e-01 : f32
      %418 = vector.broadcast %cst_217 : f32 to vector<2x128xf32>
      %419 = arith.mulf %418, %417 : vector<2x128xf32>
      %cst_218 = arith.constant 5.000000e-01 : f32
      %420 = vector.broadcast %cst_218 : f32 to vector<2x128xf32>
      %421 = arith.addf %419, %420 : vector<2x128xf32>
      %422 = vector.extract_strided_slice %421 {offsets = [0, 0], sizes = [2, 14], strides = [1, 1]} : vector<2x128xf32> to vector<2x14xf32>
      %423 = vector.extract_strided_slice %421 {offsets = [0, 32], sizes = [2, 14], strides = [1, 1]} : vector<2x128xf32> to vector<2x14xf32>
      %424 = vector.extract_strided_slice %417 {offsets = [0, 64], sizes = [2, 14], strides = [1, 1]} : vector<2x128xf32> to vector<2x14xf32>
      %425 = vector.extract_strided_slice %421 {offsets = [0, 96], sizes = [2, 14], strides = [1, 1]} : vector<2x128xf32> to vector<2x14xf32>
      %426 = arith.mulf %423, %311 : vector<2x14xf32>
      %427 = arith.mulf %422, %424 : vector<2x14xf32>
      %428 = arith.addf %426, %427 : vector<2x14xf32>
      %429 = math.tanh %428 : vector<2x14xf32>
      %430 = arith.mulf %425, %429 : vector<2x14xf32>
      %c0_219 = arith.constant 0 : index
      %c0_220 = arith.constant 0 : index
      %431 = vector.load %arg4[%c0_219, %c0_220] : memref<14x128xf32, #tpu.memory_space<vmem>>, vector<14x128xf32>
      %cst_221 = arith.constant dense<0.000000e+00> : vector<2x128xf32>
      %432 = tpu.matmul %313, %431, %cst_221 {dimension_numbers = #tpu.dot_dimension_numbers<[1], [0], [0], [1], [0, 0, 1, 1], [], []>} : vector<2x14xf32>, vector<14x128xf32>, vector<2x128xf32> -> vector<2x128xf32>
      %c0_222 = arith.constant 0 : index
      %c0_223 = arith.constant 0 : index
      %433 = vector.load %arg5[%c0_222, %c0_223] : memref<14x128xf32, #tpu.memory_space<vmem>>, vector<14x128xf32>
      %cst_224 = arith.constant dense<0.000000e+00> : vector<2x128xf32>
      %434 = tpu.matmul %382, %433, %cst_224 {dimension_numbers = #tpu.dot_dimension_numbers<[1], [0], [0], [1], [0, 0, 1, 1], [], []>} : vector<2x14xf32>, vector<14x128xf32>, vector<2x128xf32> -> vector<2x128xf32>
      %435 = arith.addf %432, %434 : vector<2x128xf32>
      %c0_225 = arith.constant 0 : index
      %c0_226 = arith.constant 0 : index
      %436 = vector.load %arg6[%c0_225, %c0_226] : memref<1x128xf32, #tpu.memory_space<vmem>>, vector<1x128xf32>
      %437 = vector.broadcast %436 : vector<1x128xf32> to vector<2x128xf32>
      %438 = arith.addf %435, %437 : vector<2x128xf32>
      %439 = math.tanh %438 : vector<2x128xf32>
      %cst_227 = arith.constant 5.000000e-01 : f32
      %440 = vector.broadcast %cst_227 : f32 to vector<2x128xf32>
      %441 = arith.mulf %440, %439 : vector<2x128xf32>
      %cst_228 = arith.constant 5.000000e-01 : f32
      %442 = vector.broadcast %cst_228 : f32 to vector<2x128xf32>
      %443 = arith.addf %441, %442 : vector<2x128xf32>
      %444 = vector.extract_strided_slice %443 {offsets = [0, 0], sizes = [2, 14], strides = [1, 1]} : vector<2x128xf32> to vector<2x14xf32>
      %445 = vector.extract_strided_slice %443 {offsets = [0, 32], sizes = [2, 14], strides = [1, 1]} : vector<2x128xf32> to vector<2x14xf32>
      %446 = vector.extract_strided_slice %439 {offsets = [0, 64], sizes = [2, 14], strides = [1, 1]} : vector<2x128xf32> to vector<2x14xf32>
      %447 = vector.extract_strided_slice %443 {offsets = [0, 96], sizes = [2, 14], strides = [1, 1]} : vector<2x128xf32> to vector<2x14xf32>
      %448 = arith.mulf %445, %385 : vector<2x14xf32>
      %449 = arith.mulf %444, %446 : vector<2x14xf32>
      %450 = arith.addf %448, %449 : vector<2x14xf32>
      %451 = math.tanh %450 : vector<2x14xf32>
      %452 = arith.mulf %447, %451 : vector<2x14xf32>
      %c0_229 = arith.constant 0 : index
      %c0_230 = arith.constant 0 : index
      %453 = vector.load %arg7[%c0_229, %c0_230] : memref<14x128xf32, #tpu.memory_space<vmem>>, vector<14x128xf32>
      %cst_231 = arith.constant dense<0.000000e+00> : vector<2x128xf32>
      %454 = tpu.matmul %382, %453, %cst_231 {dimension_numbers = #tpu.dot_dimension_numbers<[1], [0], [0], [1], [0, 0, 1, 1], [], []>} : vector<2x14xf32>, vector<14x128xf32>, vector<2x128xf32> -> vector<2x128xf32>
      %c0_232 = arith.constant 0 : index
      %c0_233 = arith.constant 0 : index
      %455 = vector.load %arg8[%c0_232, %c0_233] : memref<28x128xf32, #tpu.memory_space<vmem>>, vector<28x128xf32>
      %cst_234 = arith.constant dense<0.000000e+00> : vector<2x128xf32>
      %456 = tpu.matmul %388, %455, %cst_234 {dimension_numbers = #tpu.dot_dimension_numbers<[1], [0], [0], [1], [0, 0, 1, 1], [], []>} : vector<2x28xf32>, vector<28x128xf32>, vector<2x128xf32> -> vector<2x128xf32>
      %457 = arith.addf %454, %456 : vector<2x128xf32>
      %c0_235 = arith.constant 0 : index
      %c0_236 = arith.constant 0 : index
      %458 = vector.load %arg9[%c0_235, %c0_236] : memref<1x128xf32, #tpu.memory_space<vmem>>, vector<1x128xf32>
      %459 = vector.broadcast %458 : vector<1x128xf32> to vector<2x128xf32>
      %460 = arith.addf %457, %459 : vector<2x128xf32>
      %461 = math.tanh %460 : vector<2x128xf32>
      %cst_237 = arith.constant 5.000000e-01 : f32
      %462 = vector.broadcast %cst_237 : f32 to vector<2x128xf32>
      %463 = arith.mulf %462, %461 : vector<2x128xf32>
      %cst_238 = arith.constant 5.000000e-01 : f32
      %464 = vector.broadcast %cst_238 : f32 to vector<2x128xf32>
      %465 = arith.addf %463, %464 : vector<2x128xf32>
      %466 = vector.extract_strided_slice %465 {offsets = [0, 0], sizes = [2, 28], strides = [1, 1]} : vector<2x128xf32> to vector<2x28xf32>
      %467 = vector.extract_strided_slice %465 {offsets = [0, 32], sizes = [2, 28], strides = [1, 1]} : vector<2x128xf32> to vector<2x28xf32>
      %468 = vector.extract_strided_slice %461 {offsets = [0, 64], sizes = [2, 28], strides = [1, 1]} : vector<2x128xf32> to vector<2x28xf32>
      %469 = vector.extract_strided_slice %465 {offsets = [0, 96], sizes = [2, 28], strides = [1, 1]} : vector<2x128xf32> to vector<2x28xf32>
      %470 = arith.mulf %467, %391 : vector<2x28xf32>
      %471 = arith.mulf %466, %468 : vector<2x28xf32>
      %472 = arith.addf %470, %471 : vector<2x28xf32>
      %473 = math.tanh %472 : vector<2x28xf32>
      %474 = arith.mulf %469, %473 : vector<2x28xf32>
      %c0_239 = arith.constant 0 : index
      %c0_240 = arith.constant 0 : index
      %475 = vector.load %arg10[%c0_239, %c0_240] : memref<28x128xf32, #tpu.memory_space<vmem>>, vector<28x128xf32>
      %cst_241 = arith.constant dense<0.000000e+00> : vector<2x128xf32>
      %476 = tpu.matmul %388, %475, %cst_241 {dimension_numbers = #tpu.dot_dimension_numbers<[1], [0], [0], [1], [0, 0, 1, 1], [], []>} : vector<2x28xf32>, vector<28x128xf32>, vector<2x128xf32> -> vector<2x128xf32>
      %c0_242 = arith.constant 0 : index
      %c0_243 = arith.constant 0 : index
      %477 = vector.load %arg11[%c0_242, %c0_243] : memref<28x128xf32, #tpu.memory_space<vmem>>, vector<28x128xf32>
      %cst_244 = arith.constant dense<0.000000e+00> : vector<2x128xf32>
      %478 = tpu.matmul %394, %477, %cst_244 {dimension_numbers = #tpu.dot_dimension_numbers<[1], [0], [0], [1], [0, 0, 1, 1], [], []>} : vector<2x28xf32>, vector<28x128xf32>, vector<2x128xf32> -> vector<2x128xf32>
      %479 = arith.addf %476, %478 : vector<2x128xf32>
      %c0_245 = arith.constant 0 : index
      %c0_246 = arith.constant 0 : index
      %480 = vector.load %arg12[%c0_245, %c0_246] : memref<1x128xf32, #tpu.memory_space<vmem>>, vector<1x128xf32>
      %481 = vector.broadcast %480 : vector<1x128xf32> to vector<2x128xf32>
      %482 = arith.addf %479, %481 : vector<2x128xf32>
      %483 = math.tanh %482 : vector<2x128xf32>
      %cst_247 = arith.constant 5.000000e-01 : f32
      %484 = vector.broadcast %cst_247 : f32 to vector<2x128xf32>
      %485 = arith.mulf %484, %483 : vector<2x128xf32>
      %cst_248 = arith.constant 5.000000e-01 : f32
      %486 = vector.broadcast %cst_248 : f32 to vector<2x128xf32>
      %487 = arith.addf %485, %486 : vector<2x128xf32>
      %488 = vector.extract_strided_slice %487 {offsets = [0, 0], sizes = [2, 28], strides = [1, 1]} : vector<2x128xf32> to vector<2x28xf32>
      %489 = vector.extract_strided_slice %487 {offsets = [0, 32], sizes = [2, 28], strides = [1, 1]} : vector<2x128xf32> to vector<2x28xf32>
      %490 = vector.extract_strided_slice %483 {offsets = [0, 64], sizes = [2, 28], strides = [1, 1]} : vector<2x128xf32> to vector<2x28xf32>
      %491 = vector.extract_strided_slice %487 {offsets = [0, 96], sizes = [2, 28], strides = [1, 1]} : vector<2x128xf32> to vector<2x28xf32>
      %492 = arith.mulf %489, %397 : vector<2x28xf32>
      %493 = arith.mulf %488, %490 : vector<2x28xf32>
      %494 = arith.addf %492, %493 : vector<2x28xf32>
      %495 = math.tanh %494 : vector<2x28xf32>
      %496 = arith.mulf %491, %495 : vector<2x28xf32>
      %c1_i32_249 = arith.constant 1 : i32
      %497 = arith.cmpi sge, %404, %c1_i32_249 : i32
      %cst_250 = arith.constant 0.000000e+00 : f32
      %498 = vector.broadcast %cst_250 : f32 to vector<2x14xf32>
      %499 = arith.select %497, %452, %498 : vector<2x14xf32>
      %c1_i32_251 = arith.constant 1 : i32
      %500 = arith.cmpi sge, %404, %c1_i32_251 : i32
      %cst_252 = arith.constant 0.000000e+00 : f32
      %501 = vector.broadcast %cst_252 : f32 to vector<2x14xf32>
      %502 = arith.select %500, %450, %501 : vector<2x14xf32>
      %c2_i32_253 = arith.constant 2 : i32
      %503 = arith.cmpi sge, %404, %c2_i32_253 : i32
      %cst_254 = arith.constant 0.000000e+00 : f32
      %504 = vector.broadcast %cst_254 : f32 to vector<2x28xf32>
      %505 = arith.select %503, %474, %504 : vector<2x28xf32>
      %c2_i32_255 = arith.constant 2 : i32
      %506 = arith.cmpi sge, %404, %c2_i32_255 : i32
      %cst_256 = arith.constant 0.000000e+00 : f32
      %507 = vector.broadcast %cst_256 : f32 to vector<2x28xf32>
      %508 = arith.select %506, %472, %507 : vector<2x28xf32>
      %c3_i32_257 = arith.constant 3 : i32
      %509 = arith.cmpi sge, %404, %c3_i32_257 : i32
      %cst_258 = arith.constant 0.000000e+00 : f32
      %510 = vector.broadcast %cst_258 : f32 to vector<2x28xf32>
      %511 = arith.select %509, %496, %510 : vector<2x28xf32>
      %c3_i32_259 = arith.constant 3 : i32
      %512 = arith.cmpi sge, %404, %c3_i32_259 : i32
      %cst_260 = arith.constant 0.000000e+00 : f32
      %513 = vector.broadcast %cst_260 : f32 to vector<2x28xf32>
      %514 = arith.select %512, %494, %513 : vector<2x28xf32>
      %c3_i32_261 = arith.constant 3 : i32
      %515 = arith.subi %404, %c3_i32_261 : i32
      %c0_i32_262 = arith.constant 0 : i32
      %516 = arith.maxsi %515, %c0_i32_262 : i32
      %517 = arith.index_cast %516 : i32 to index
      %c0_263 = arith.constant 0 : index
      %c0_264 = arith.constant 0 : index
      %518 = vector.load %arg13[%517, %c0_263, %c0_264] : memref<64x2x28xf32, #tpu.memory_space<vmem>>, vector<1x2x28xf32>
      %519 = vector.shape_cast %518 : vector<1x2x28xf32> to vector<2x28xf32>
      %520 = vector.shape_cast %511 : vector<2x28xf32> to vector<1x2x28xf32>
      tpu.vector_store %arg13[%517, %c0_263, %c0_264], %520 {strides = array<i32>} : memref<64x2x28xf32, #tpu.memory_space<vmem>>, vector<1x2x28xf32>,
      %c3_i32_265 = arith.constant 3 : i32
      %521 = arith.addi %169, %c3_i32_265 : i32
      %c63_i32_266 = arith.constant 63 : i32
      %522 = arith.minsi %521, %c63_i32_266 : i32
      %523 = arith.index_cast %522 : i32 to index
      %c0_267 = arith.constant 0 : index
      %c0_268 = arith.constant 0 : index
      %524 = vector.load %arg0[%523, %c0_267, %c0_268] : memref<64x2x7xf32, #tpu.memory_space<vmem>>, vector<1x2x7xf32>
      %525 = vector.shape_cast %524 : vector<1x2x7xf32> to vector<2x7xf32>
      %c0_269 = arith.constant 0 : index
      %c0_270 = arith.constant 0 : index
      %526 = vector.load %arg1[%c0_269, %c0_270] : memref<7x128xf32, #tpu.memory_space<vmem>>, vector<7x128xf32>
      %cst_271 = arith.constant dense<0.000000e+00> : vector<2x128xf32>
      %527 = tpu.matmul %525, %526, %cst_271 {dimension_numbers = #tpu.dot_dimension_numbers<[1], [0], [0], [1], [0, 0, 1, 1], [], []>} : vector<2x7xf32>, vector<7x128xf32>, vector<2x128xf32> -> vector<2x128xf32>
      %c0_272 = arith.constant 0 : index
      %c0_273 = arith.constant 0 : index
      %528 = vector.load %arg2[%c0_272, %c0_273] : memref<14x128xf32, #tpu.memory_space<vmem>>, vector<14x128xf32>
      %cst_274 = arith.constant dense<0.000000e+00> : vector<2x128xf32>
      %529 = tpu.matmul %430, %528, %cst_274 {dimension_numbers = #tpu.dot_dimension_numbers<[1], [0], [0], [1], [0, 0, 1, 1], [], []>} : vector<2x14xf32>, vector<14x128xf32>, vector<2x128xf32> -> vector<2x128xf32>
      %530 = arith.addf %527, %529 : vector<2x128xf32>
      %c0_275 = arith.constant 0 : index
      %c0_276 = arith.constant 0 : index
      %531 = vector.load %arg3[%c0_275, %c0_276] : memref<1x128xf32, #tpu.memory_space<vmem>>, vector<1x128xf32>
      %532 = vector.broadcast %531 : vector<1x128xf32> to vector<2x128xf32>
      %533 = arith.addf %530, %532 : vector<2x128xf32>
      %534 = math.tanh %533 : vector<2x128xf32>
      %cst_277 = arith.constant 5.000000e-01 : f32
      %535 = vector.broadcast %cst_277 : f32 to vector<2x128xf32>
      %536 = arith.mulf %535, %534 : vector<2x128xf32>
      %cst_278 = arith.constant 5.000000e-01 : f32
      %537 = vector.broadcast %cst_278 : f32 to vector<2x128xf32>
      %538 = arith.addf %536, %537 : vector<2x128xf32>
      %539 = vector.extract_strided_slice %538 {offsets = [0, 0], sizes = [2, 14], strides = [1, 1]} : vector<2x128xf32> to vector<2x14xf32>
      %540 = vector.extract_strided_slice %538 {offsets = [0, 32], sizes = [2, 14], strides = [1, 1]} : vector<2x128xf32> to vector<2x14xf32>
      %541 = vector.extract_strided_slice %534 {offsets = [0, 64], sizes = [2, 14], strides = [1, 1]} : vector<2x128xf32> to vector<2x14xf32>
      %542 = vector.extract_strided_slice %538 {offsets = [0, 96], sizes = [2, 14], strides = [1, 1]} : vector<2x128xf32> to vector<2x14xf32>
      %543 = arith.mulf %540, %428 : vector<2x14xf32>
      %544 = arith.mulf %539, %541 : vector<2x14xf32>
      %545 = arith.addf %543, %544 : vector<2x14xf32>
      %546 = math.tanh %545 : vector<2x14xf32>
      %547 = arith.mulf %542, %546 : vector<2x14xf32>
      %c0_279 = arith.constant 0 : index
      %c0_280 = arith.constant 0 : index
      %548 = vector.load %arg4[%c0_279, %c0_280] : memref<14x128xf32, #tpu.memory_space<vmem>>, vector<14x128xf32>
      %cst_281 = arith.constant dense<0.000000e+00> : vector<2x128xf32>
      %549 = tpu.matmul %430, %548, %cst_281 {dimension_numbers = #tpu.dot_dimension_numbers<[1], [0], [0], [1], [0, 0, 1, 1], [], []>} : vector<2x14xf32>, vector<14x128xf32>, vector<2x128xf32> -> vector<2x128xf32>
      %c0_282 = arith.constant 0 : index
      %c0_283 = arith.constant 0 : index
      %550 = vector.load %arg5[%c0_282, %c0_283] : memref<14x128xf32, #tpu.memory_space<vmem>>, vector<14x128xf32>
      %cst_284 = arith.constant dense<0.000000e+00> : vector<2x128xf32>
      %551 = tpu.matmul %499, %550, %cst_284 {dimension_numbers = #tpu.dot_dimension_numbers<[1], [0], [0], [1], [0, 0, 1, 1], [], []>} : vector<2x14xf32>, vector<14x128xf32>, vector<2x128xf32> -> vector<2x128xf32>
      %552 = arith.addf %549, %551 : vector<2x128xf32>
      %c0_285 = arith.constant 0 : index
      %c0_286 = arith.constant 0 : index
      %553 = vector.load %arg6[%c0_285, %c0_286] : memref<1x128xf32, #tpu.memory_space<vmem>>, vector<1x128xf32>
      %554 = vector.broadcast %553 : vector<1x128xf32> to vector<2x128xf32>
      %555 = arith.addf %552, %554 : vector<2x128xf32>
      %556 = math.tanh %555 : vector<2x128xf32>
      %cst_287 = arith.constant 5.000000e-01 : f32
      %557 = vector.broadcast %cst_287 : f32 to vector<2x128xf32>
      %558 = arith.mulf %557, %556 : vector<2x128xf32>
      %cst_288 = arith.constant 5.000000e-01 : f32
      %559 = vector.broadcast %cst_288 : f32 to vector<2x128xf32>
      %560 = arith.addf %558, %559 : vector<2x128xf32>
      %561 = vector.extract_strided_slice %560 {offsets = [0, 0], sizes = [2, 14], strides = [1, 1]} : vector<2x128xf32> to vector<2x14xf32>
      %562 = vector.extract_strided_slice %560 {offsets = [0, 32], sizes = [2, 14], strides = [1, 1]} : vector<2x128xf32> to vector<2x14xf32>
      %563 = vector.extract_strided_slice %556 {offsets = [0, 64], sizes = [2, 14], strides = [1, 1]} : vector<2x128xf32> to vector<2x14xf32>
      %564 = vector.extract_strided_slice %560 {offsets = [0, 96], sizes = [2, 14], strides = [1, 1]} : vector<2x128xf32> to vector<2x14xf32>
      %565 = arith.mulf %562, %502 : vector<2x14xf32>
      %566 = arith.mulf %561, %563 : vector<2x14xf32>
      %567 = arith.addf %565, %566 : vector<2x14xf32>
      %568 = math.tanh %567 : vector<2x14xf32>
      %569 = arith.mulf %564, %568 : vector<2x14xf32>
      %c0_289 = arith.constant 0 : index
      %c0_290 = arith.constant 0 : index
      %570 = vector.load %arg7[%c0_289, %c0_290] : memref<14x128xf32, #tpu.memory_space<vmem>>, vector<14x128xf32>
      %cst_291 = arith.constant dense<0.000000e+00> : vector<2x128xf32>
      %571 = tpu.matmul %499, %570, %cst_291 {dimension_numbers = #tpu.dot_dimension_numbers<[1], [0], [0], [1], [0, 0, 1, 1], [], []>} : vector<2x14xf32>, vector<14x128xf32>, vector<2x128xf32> -> vector<2x128xf32>
      %c0_292 = arith.constant 0 : index
      %c0_293 = arith.constant 0 : index
      %572 = vector.load %arg8[%c0_292, %c0_293] : memref<28x128xf32, #tpu.memory_space<vmem>>, vector<28x128xf32>
      %cst_294 = arith.constant dense<0.000000e+00> : vector<2x128xf32>
      %573 = tpu.matmul %505, %572, %cst_294 {dimension_numbers = #tpu.dot_dimension_numbers<[1], [0], [0], [1], [0, 0, 1, 1], [], []>} : vector<2x28xf32>, vector<28x128xf32>, vector<2x128xf32> -> vector<2x128xf32>
      %574 = arith.addf %571, %573 : vector<2x128xf32>
      %c0_295 = arith.constant 0 : index
      %c0_296 = arith.constant 0 : index
      %575 = vector.load %arg9[%c0_295, %c0_296] : memref<1x128xf32, #tpu.memory_space<vmem>>, vector<1x128xf32>
      %576 = vector.broadcast %575 : vector<1x128xf32> to vector<2x128xf32>
      %577 = arith.addf %574, %576 : vector<2x128xf32>
      %578 = math.tanh %577 : vector<2x128xf32>
      %cst_297 = arith.constant 5.000000e-01 : f32
      %579 = vector.broadcast %cst_297 : f32 to vector<2x128xf32>
      %580 = arith.mulf %579, %578 : vector<2x128xf32>
      %cst_298 = arith.constant 5.000000e-01 : f32
      %581 = vector.broadcast %cst_298 : f32 to vector<2x128xf32>
      %582 = arith.addf %580, %581 : vector<2x128xf32>
      %583 = vector.extract_strided_slice %582 {offsets = [0, 0], sizes = [2, 28], strides = [1, 1]} : vector<2x128xf32> to vector<2x28xf32>
      %584 = vector.extract_strided_slice %582 {offsets = [0, 32], sizes = [2, 28], strides = [1, 1]} : vector<2x128xf32> to vector<2x28xf32>
      %585 = vector.extract_strided_slice %578 {offsets = [0, 64], sizes = [2, 28], strides = [1, 1]} : vector<2x128xf32> to vector<2x28xf32>
      %586 = vector.extract_strided_slice %582 {offsets = [0, 96], sizes = [2, 28], strides = [1, 1]} : vector<2x128xf32> to vector<2x28xf32>
      %587 = arith.mulf %584, %508 : vector<2x28xf32>
      %588 = arith.mulf %583, %585 : vector<2x28xf32>
      %589 = arith.addf %587, %588 : vector<2x28xf32>
      %590 = math.tanh %589 : vector<2x28xf32>
      %591 = arith.mulf %586, %590 : vector<2x28xf32>
      %c0_299 = arith.constant 0 : index
      %c0_300 = arith.constant 0 : index
      %592 = vector.load %arg10[%c0_299, %c0_300] : memref<28x128xf32, #tpu.memory_space<vmem>>, vector<28x128xf32>
      %cst_301 = arith.constant dense<0.000000e+00> : vector<2x128xf32>
      %593 = tpu.matmul %505, %592, %cst_301 {dimension_numbers = #tpu.dot_dimension_numbers<[1], [0], [0], [1], [0, 0, 1, 1], [], []>} : vector<2x28xf32>, vector<28x128xf32>, vector<2x128xf32> -> vector<2x128xf32>
      %c0_302 = arith.constant 0 : index
      %c0_303 = arith.constant 0 : index
      %594 = vector.load %arg11[%c0_302, %c0_303] : memref<28x128xf32, #tpu.memory_space<vmem>>, vector<28x128xf32>
      %cst_304 = arith.constant dense<0.000000e+00> : vector<2x128xf32>
      %595 = tpu.matmul %511, %594, %cst_304 {dimension_numbers = #tpu.dot_dimension_numbers<[1], [0], [0], [1], [0, 0, 1, 1], [], []>} : vector<2x28xf32>, vector<28x128xf32>, vector<2x128xf32> -> vector<2x128xf32>
      %596 = arith.addf %593, %595 : vector<2x128xf32>
      %c0_305 = arith.constant 0 : index
      %c0_306 = arith.constant 0 : index
      %597 = vector.load %arg12[%c0_305, %c0_306] : memref<1x128xf32, #tpu.memory_space<vmem>>, vector<1x128xf32>
      %598 = vector.broadcast %597 : vector<1x128xf32> to vector<2x128xf32>
      %599 = arith.addf %596, %598 : vector<2x128xf32>
      %600 = math.tanh %599 : vector<2x128xf32>
      %cst_307 = arith.constant 5.000000e-01 : f32
      %601 = vector.broadcast %cst_307 : f32 to vector<2x128xf32>
      %602 = arith.mulf %601, %600 : vector<2x128xf32>
      %cst_308 = arith.constant 5.000000e-01 : f32
      %603 = vector.broadcast %cst_308 : f32 to vector<2x128xf32>
      %604 = arith.addf %602, %603 : vector<2x128xf32>
      %605 = vector.extract_strided_slice %604 {offsets = [0, 0], sizes = [2, 28], strides = [1, 1]} : vector<2x128xf32> to vector<2x28xf32>
      %606 = vector.extract_strided_slice %604 {offsets = [0, 32], sizes = [2, 28], strides = [1, 1]} : vector<2x128xf32> to vector<2x28xf32>
      %607 = vector.extract_strided_slice %600 {offsets = [0, 64], sizes = [2, 28], strides = [1, 1]} : vector<2x128xf32> to vector<2x28xf32>
      %608 = vector.extract_strided_slice %604 {offsets = [0, 96], sizes = [2, 28], strides = [1, 1]} : vector<2x128xf32> to vector<2x28xf32>
      %609 = arith.mulf %606, %514 : vector<2x28xf32>
      %610 = arith.mulf %605, %607 : vector<2x28xf32>
      %611 = arith.addf %609, %610 : vector<2x28xf32>
      %612 = math.tanh %611 : vector<2x28xf32>
      %613 = arith.mulf %608, %612 : vector<2x28xf32>
      %c1_i32_309 = arith.constant 1 : i32
      %614 = arith.cmpi sge, %521, %c1_i32_309 : i32
      %cst_310 = arith.constant 0.000000e+00 : f32
      %615 = vector.broadcast %cst_310 : f32 to vector<2x14xf32>
      %616 = arith.select %614, %569, %615 : vector<2x14xf32>
      %c1_i32_311 = arith.constant 1 : i32
      %617 = arith.cmpi sge, %521, %c1_i32_311 : i32
      %cst_312 = arith.constant 0.000000e+00 : f32
      %618 = vector.broadcast %cst_312 : f32 to vector<2x14xf32>
      %619 = arith.select %617, %567, %618 : vector<2x14xf32>
      %c2_i32_313 = arith.constant 2 : i32
      %620 = arith.cmpi sge, %521, %c2_i32_313 : i32
      %cst_314 = arith.constant 0.000000e+00 : f32
      %621 = vector.broadcast %cst_314 : f32 to vector<2x28xf32>
      %622 = arith.select %620, %591, %621 : vector<2x28xf32>
      %c2_i32_315 = arith.constant 2 : i32
      %623 = arith.cmpi sge, %521, %c2_i32_315 : i32
      %cst_316 = arith.constant 0.000000e+00 : f32
      %624 = vector.broadcast %cst_316 : f32 to vector<2x28xf32>
      %625 = arith.select %623, %589, %624 : vector<2x28xf32>
      %c3_i32_317 = arith.constant 3 : i32
      %626 = arith.cmpi sge, %521, %c3_i32_317 : i32
      %cst_318 = arith.constant 0.000000e+00 : f32
      %627 = vector.broadcast %cst_318 : f32 to vector<2x28xf32>
      %628 = arith.select %626, %613, %627 : vector<2x28xf32>
      %c3_i32_319 = arith.constant 3 : i32
      %629 = arith.cmpi sge, %521, %c3_i32_319 : i32
      %cst_320 = arith.constant 0.000000e+00 : f32
      %630 = vector.broadcast %cst_320 : f32 to vector<2x28xf32>
      %631 = arith.select %629, %611, %630 : vector<2x28xf32>
      %c3_i32_321 = arith.constant 3 : i32
      %632 = arith.subi %521, %c3_i32_321 : i32
      %c0_i32_322 = arith.constant 0 : i32
      %633 = arith.maxsi %632, %c0_i32_322 : i32
      %634 = arith.index_cast %633 : i32 to index
      %c0_323 = arith.constant 0 : index
      %c0_324 = arith.constant 0 : index
      %635 = vector.load %arg13[%634, %c0_323, %c0_324] : memref<64x2x28xf32, #tpu.memory_space<vmem>>, vector<1x2x28xf32>
      %636 = vector.shape_cast %635 : vector<1x2x28xf32> to vector<2x28xf32>
      %637 = vector.shape_cast %628 : vector<2x28xf32> to vector<1x2x28xf32>
      tpu.vector_store %arg13[%634, %c0_323, %c0_324], %637 {strides = array<i32>} : memref<64x2x28xf32, #tpu.memory_space<vmem>>, vector<1x2x28xf32>,
      scf.yield %547, %545, %616, %619, %622, %625, %628, %631 : vector<2x14xf32>, vector<2x14xf32>, vector<2x14xf32>, vector<2x14xf32>, vector<2x28xf32>, vector<2x28xf32>, vector<2x28xf32>, vector<2x28xf32>
    }
    %c16_i32_1 = arith.constant 16 : i32
    %c0 = arith.constant 0 : index
    %c0_2 = arith.constant 0 : index
    %4 = vector.load %arg4[%c0, %c0_2] : memref<14x128xf32, #tpu.memory_space<vmem>>, vector<14x128xf32>
    %cst_3 = arith.constant dense<0.000000e+00> : vector<2x128xf32>
    %5 = tpu.matmul %3#0, %4, %cst_3 {dimension_numbers = #tpu.dot_dimension_numbers<[1], [0], [0], [1], [0, 0, 1, 1], [], []>} : vector<2x14xf32>, vector<14x128xf32>, vector<2x128xf32> -> vector<2x128xf32>
    %c0_4 = arith.constant 0 : index
    %c0_5 = arith.constant 0 : index
    %6 = vector.load %arg5[%c0_4, %c0_5] : memref<14x128xf32, #tpu.memory_space<vmem>>, vector<14x128xf32>
    %cst_6 = arith.constant dense<0.000000e+00> : vector<2x128xf32>
    %7 = tpu.matmul %3#2, %6, %cst_6 {dimension_numbers = #tpu.dot_dimension_numbers<[1], [0], [0], [1], [0, 0, 1, 1], [], []>} : vector<2x14xf32>, vector<14x128xf32>, vector<2x128xf32> -> vector<2x128xf32>
    %8 = arith.addf %5, %7 : vector<2x128xf32>
    %c0_7 = arith.constant 0 : index
    %c0_8 = arith.constant 0 : index
    %9 = vector.load %arg6[%c0_7, %c0_8] : memref<1x128xf32, #tpu.memory_space<vmem>>, vector<1x128xf32>
    %10 = vector.broadcast %9 : vector<1x128xf32> to vector<2x128xf32>
    %11 = arith.addf %8, %10 : vector<2x128xf32>
    %12 = math.tanh %11 : vector<2x128xf32>
    %cst_9 = arith.constant 5.000000e-01 : f32
    %13 = vector.broadcast %cst_9 : f32 to vector<2x128xf32>
    %14 = arith.mulf %13, %12 : vector<2x128xf32>
    %cst_10 = arith.constant 5.000000e-01 : f32
    %15 = vector.broadcast %cst_10 : f32 to vector<2x128xf32>
    %16 = arith.addf %14, %15 : vector<2x128xf32>
    %17 = vector.extract_strided_slice %16 {offsets = [0, 0], sizes = [2, 14], strides = [1, 1]} : vector<2x128xf32> to vector<2x14xf32>
    %18 = vector.extract_strided_slice %16 {offsets = [0, 32], sizes = [2, 14], strides = [1, 1]} : vector<2x128xf32> to vector<2x14xf32>
    %19 = vector.extract_strided_slice %12 {offsets = [0, 64], sizes = [2, 14], strides = [1, 1]} : vector<2x128xf32> to vector<2x14xf32>
    %20 = vector.extract_strided_slice %16 {offsets = [0, 96], sizes = [2, 14], strides = [1, 1]} : vector<2x128xf32> to vector<2x14xf32>
    %21 = arith.mulf %18, %3#3 : vector<2x14xf32>
    %22 = arith.mulf %17, %19 : vector<2x14xf32>
    %23 = arith.addf %21, %22 : vector<2x14xf32>
    %24 = math.tanh %23 : vector<2x14xf32>
    %25 = arith.mulf %20, %24 : vector<2x14xf32>
    %c0_11 = arith.constant 0 : index
    %c0_12 = arith.constant 0 : index
    %26 = vector.load %arg7[%c0_11, %c0_12] : memref<14x128xf32, #tpu.memory_space<vmem>>, vector<14x128xf32>
    %cst_13 = arith.constant dense<0.000000e+00> : vector<2x128xf32>
    %27 = tpu.matmul %3#2, %26, %cst_13 {dimension_numbers = #tpu.dot_dimension_numbers<[1], [0], [0], [1], [0, 0, 1, 1], [], []>} : vector<2x14xf32>, vector<14x128xf32>, vector<2x128xf32> -> vector<2x128xf32>
    %c0_14 = arith.constant 0 : index
    %c0_15 = arith.constant 0 : index
    %28 = vector.load %arg8[%c0_14, %c0_15] : memref<28x128xf32, #tpu.memory_space<vmem>>, vector<28x128xf32>
    %cst_16 = arith.constant dense<0.000000e+00> : vector<2x128xf32>
    %29 = tpu.matmul %3#4, %28, %cst_16 {dimension_numbers = #tpu.dot_dimension_numbers<[1], [0], [0], [1], [0, 0, 1, 1], [], []>} : vector<2x28xf32>, vector<28x128xf32>, vector<2x128xf32> -> vector<2x128xf32>
    %30 = arith.addf %27, %29 : vector<2x128xf32>
    %c0_17 = arith.constant 0 : index
    %c0_18 = arith.constant 0 : index
    %31 = vector.load %arg9[%c0_17, %c0_18] : memref<1x128xf32, #tpu.memory_space<vmem>>, vector<1x128xf32>
    %32 = vector.broadcast %31 : vector<1x128xf32> to vector<2x128xf32>
    %33 = arith.addf %30, %32 : vector<2x128xf32>
    %34 = math.tanh %33 : vector<2x128xf32>
    %cst_19 = arith.constant 5.000000e-01 : f32
    %35 = vector.broadcast %cst_19 : f32 to vector<2x128xf32>
    %36 = arith.mulf %35, %34 : vector<2x128xf32>
    %cst_20 = arith.constant 5.000000e-01 : f32
    %37 = vector.broadcast %cst_20 : f32 to vector<2x128xf32>
    %38 = arith.addf %36, %37 : vector<2x128xf32>
    %39 = vector.extract_strided_slice %38 {offsets = [0, 0], sizes = [2, 28], strides = [1, 1]} : vector<2x128xf32> to vector<2x28xf32>
    %40 = vector.extract_strided_slice %38 {offsets = [0, 32], sizes = [2, 28], strides = [1, 1]} : vector<2x128xf32> to vector<2x28xf32>
    %41 = vector.extract_strided_slice %34 {offsets = [0, 64], sizes = [2, 28], strides = [1, 1]} : vector<2x128xf32> to vector<2x28xf32>
    %42 = vector.extract_strided_slice %38 {offsets = [0, 96], sizes = [2, 28], strides = [1, 1]} : vector<2x128xf32> to vector<2x28xf32>
    %43 = arith.mulf %40, %3#5 : vector<2x28xf32>
    %44 = arith.mulf %39, %41 : vector<2x28xf32>
    %45 = arith.addf %43, %44 : vector<2x28xf32>
    %46 = math.tanh %45 : vector<2x28xf32>
    %47 = arith.mulf %42, %46 : vector<2x28xf32>
    %c0_21 = arith.constant 0 : index
    %c0_22 = arith.constant 0 : index
    %48 = vector.load %arg10[%c0_21, %c0_22] : memref<28x128xf32, #tpu.memory_space<vmem>>, vector<28x128xf32>
    %cst_23 = arith.constant dense<0.000000e+00> : vector<2x128xf32>
    %49 = tpu.matmul %3#4, %48, %cst_23 {dimension_numbers = #tpu.dot_dimension_numbers<[1], [0], [0], [1], [0, 0, 1, 1], [], []>} : vector<2x28xf32>, vector<28x128xf32>, vector<2x128xf32> -> vector<2x128xf32>
    %c0_24 = arith.constant 0 : index
    %c0_25 = arith.constant 0 : index
    %50 = vector.load %arg11[%c0_24, %c0_25] : memref<28x128xf32, #tpu.memory_space<vmem>>, vector<28x128xf32>
    %cst_26 = arith.constant dense<0.000000e+00> : vector<2x128xf32>
    %51 = tpu.matmul %3#6, %50, %cst_26 {dimension_numbers = #tpu.dot_dimension_numbers<[1], [0], [0], [1], [0, 0, 1, 1], [], []>} : vector<2x28xf32>, vector<28x128xf32>, vector<2x128xf32> -> vector<2x128xf32>
    %52 = arith.addf %49, %51 : vector<2x128xf32>
    %c0_27 = arith.constant 0 : index
    %c0_28 = arith.constant 0 : index
    %53 = vector.load %arg12[%c0_27, %c0_28] : memref<1x128xf32, #tpu.memory_space<vmem>>, vector<1x128xf32>
    %54 = vector.broadcast %53 : vector<1x128xf32> to vector<2x128xf32>
    %55 = arith.addf %52, %54 : vector<2x128xf32>
    %56 = math.tanh %55 : vector<2x128xf32>
    %cst_29 = arith.constant 5.000000e-01 : f32
    %57 = vector.broadcast %cst_29 : f32 to vector<2x128xf32>
    %58 = arith.mulf %57, %56 : vector<2x128xf32>
    %cst_30 = arith.constant 5.000000e-01 : f32
    %59 = vector.broadcast %cst_30 : f32 to vector<2x128xf32>
    %60 = arith.addf %58, %59 : vector<2x128xf32>
    %61 = vector.extract_strided_slice %60 {offsets = [0, 0], sizes = [2, 28], strides = [1, 1]} : vector<2x128xf32> to vector<2x28xf32>
    %62 = vector.extract_strided_slice %60 {offsets = [0, 32], sizes = [2, 28], strides = [1, 1]} : vector<2x128xf32> to vector<2x28xf32>
    %63 = vector.extract_strided_slice %56 {offsets = [0, 64], sizes = [2, 28], strides = [1, 1]} : vector<2x128xf32> to vector<2x28xf32>
    %64 = vector.extract_strided_slice %60 {offsets = [0, 96], sizes = [2, 28], strides = [1, 1]} : vector<2x128xf32> to vector<2x28xf32>
    %65 = arith.mulf %62, %3#7 : vector<2x28xf32>
    %66 = arith.mulf %61, %63 : vector<2x28xf32>
    %67 = arith.addf %65, %66 : vector<2x28xf32>
    %68 = math.tanh %67 : vector<2x28xf32>
    %69 = arith.mulf %64, %68 : vector<2x28xf32>
    %cst_31 = arith.constant 0.000000e+00 : f32
    %70 = vector.broadcast %cst_31 : f32 to vector<2x14xf32>
    %true = arith.constant true
    %71 = arith.select %true, %25, %70 : vector<2x14xf32>
    %cst_32 = arith.constant 0.000000e+00 : f32
    %72 = vector.broadcast %cst_32 : f32 to vector<2x28xf32>
    %true_33 = arith.constant true
    %73 = arith.select %true_33, %47, %72 : vector<2x28xf32>
    %cst_34 = arith.constant 0.000000e+00 : f32
    %74 = vector.broadcast %cst_34 : f32 to vector<2x28xf32>
    %true_35 = arith.constant true
    %75 = arith.select %true_35, %45, %74 : vector<2x28xf32>
    %cst_36 = arith.constant 0.000000e+00 : f32
    %76 = vector.broadcast %cst_36 : f32 to vector<2x28xf32>
    %true_37 = arith.constant true
    %77 = arith.select %true_37, %69, %76 : vector<2x28xf32>
    %cst_38 = arith.constant 0.000000e+00 : f32
    %78 = vector.broadcast %cst_38 : f32 to vector<2x28xf32>
    %true_39 = arith.constant true
    %79 = arith.select %true_39, %67, %78 : vector<2x28xf32>
    %c61_i32 = arith.constant 61 : i32
    %c0_i32_40 = arith.constant 0 : i32
    %80 = arith.maxsi %c61_i32, %c0_i32_40 : i32
    %81 = arith.index_cast %80 : i32 to index
    %c0_41 = arith.constant 0 : index
    %c0_42 = arith.constant 0 : index
    %82 = vector.load %arg13[%81, %c0_41, %c0_42] : memref<64x2x28xf32, #tpu.memory_space<vmem>>, vector<1x2x28xf32>
    %83 = vector.shape_cast %82 : vector<1x2x28xf32> to vector<2x28xf32>
    %84 = vector.shape_cast %77 : vector<2x28xf32> to vector<1x2x28xf32>
    tpu.vector_store %arg13[%81, %c0_41, %c0_42], %84 {strides = array<i32>} : memref<64x2x28xf32, #tpu.memory_space<vmem>>, vector<1x2x28xf32>,
    %c0_43 = arith.constant 0 : index
    %c0_44 = arith.constant 0 : index
    %85 = vector.load %arg7[%c0_43, %c0_44] : memref<14x128xf32, #tpu.memory_space<vmem>>, vector<14x128xf32>
    %cst_45 = arith.constant dense<0.000000e+00> : vector<2x128xf32>
    %86 = tpu.matmul %71, %85, %cst_45 {dimension_numbers = #tpu.dot_dimension_numbers<[1], [0], [0], [1], [0, 0, 1, 1], [], []>} : vector<2x14xf32>, vector<14x128xf32>, vector<2x128xf32> -> vector<2x128xf32>
    %c0_46 = arith.constant 0 : index
    %c0_47 = arith.constant 0 : index
    %87 = vector.load %arg8[%c0_46, %c0_47] : memref<28x128xf32, #tpu.memory_space<vmem>>, vector<28x128xf32>
    %cst_48 = arith.constant dense<0.000000e+00> : vector<2x128xf32>
    %88 = tpu.matmul %73, %87, %cst_48 {dimension_numbers = #tpu.dot_dimension_numbers<[1], [0], [0], [1], [0, 0, 1, 1], [], []>} : vector<2x28xf32>, vector<28x128xf32>, vector<2x128xf32> -> vector<2x128xf32>
    %89 = arith.addf %86, %88 : vector<2x128xf32>
    %c0_49 = arith.constant 0 : index
    %c0_50 = arith.constant 0 : index
    %90 = vector.load %arg9[%c0_49, %c0_50] : memref<1x128xf32, #tpu.memory_space<vmem>>, vector<1x128xf32>
    %91 = vector.broadcast %90 : vector<1x128xf32> to vector<2x128xf32>
    %92 = arith.addf %89, %91 : vector<2x128xf32>
    %93 = math.tanh %92 : vector<2x128xf32>
    %cst_51 = arith.constant 5.000000e-01 : f32
    %94 = vector.broadcast %cst_51 : f32 to vector<2x128xf32>
    %95 = arith.mulf %94, %93 : vector<2x128xf32>
    %cst_52 = arith.constant 5.000000e-01 : f32
    %96 = vector.broadcast %cst_52 : f32 to vector<2x128xf32>
    %97 = arith.addf %95, %96 : vector<2x128xf32>
    %98 = vector.extract_strided_slice %97 {offsets = [0, 0], sizes = [2, 28], strides = [1, 1]} : vector<2x128xf32> to vector<2x28xf32>
    %99 = vector.extract_strided_slice %97 {offsets = [0, 32], sizes = [2, 28], strides = [1, 1]} : vector<2x128xf32> to vector<2x28xf32>
    %100 = vector.extract_strided_slice %93 {offsets = [0, 64], sizes = [2, 28], strides = [1, 1]} : vector<2x128xf32> to vector<2x28xf32>
    %101 = vector.extract_strided_slice %97 {offsets = [0, 96], sizes = [2, 28], strides = [1, 1]} : vector<2x128xf32> to vector<2x28xf32>
    %102 = arith.mulf %99, %75 : vector<2x28xf32>
    %103 = arith.mulf %98, %100 : vector<2x28xf32>
    %104 = arith.addf %102, %103 : vector<2x28xf32>
    %105 = math.tanh %104 : vector<2x28xf32>
    %106 = arith.mulf %101, %105 : vector<2x28xf32>
    %c0_53 = arith.constant 0 : index
    %c0_54 = arith.constant 0 : index
    %107 = vector.load %arg10[%c0_53, %c0_54] : memref<28x128xf32, #tpu.memory_space<vmem>>, vector<28x128xf32>
    %cst_55 = arith.constant dense<0.000000e+00> : vector<2x128xf32>
    %108 = tpu.matmul %73, %107, %cst_55 {dimension_numbers = #tpu.dot_dimension_numbers<[1], [0], [0], [1], [0, 0, 1, 1], [], []>} : vector<2x28xf32>, vector<28x128xf32>, vector<2x128xf32> -> vector<2x128xf32>
    %c0_56 = arith.constant 0 : index
    %c0_57 = arith.constant 0 : index
    %109 = vector.load %arg11[%c0_56, %c0_57] : memref<28x128xf32, #tpu.memory_space<vmem>>, vector<28x128xf32>
    %cst_58 = arith.constant dense<0.000000e+00> : vector<2x128xf32>
    %110 = tpu.matmul %77, %109, %cst_58 {dimension_numbers = #tpu.dot_dimension_numbers<[1], [0], [0], [1], [0, 0, 1, 1], [], []>} : vector<2x28xf32>, vector<28x128xf32>, vector<2x128xf32> -> vector<2x128xf32>
    %111 = arith.addf %108, %110 : vector<2x128xf32>
    %c0_59 = arith.constant 0 : index
    %c0_60 = arith.constant 0 : index
    %112 = vector.load %arg12[%c0_59, %c0_60] : memref<1x128xf32, #tpu.memory_space<vmem>>, vector<1x128xf32>
    %113 = vector.broadcast %112 : vector<1x128xf32> to vector<2x128xf32>
    %114 = arith.addf %111, %113 : vector<2x128xf32>
    %115 = math.tanh %114 : vector<2x128xf32>
    %cst_61 = arith.constant 5.000000e-01 : f32
    %116 = vector.broadcast %cst_61 : f32 to vector<2x128xf32>
    %117 = arith.mulf %116, %115 : vector<2x128xf32>
    %cst_62 = arith.constant 5.000000e-01 : f32
    %118 = vector.broadcast %cst_62 : f32 to vector<2x128xf32>
    %119 = arith.addf %117, %118 : vector<2x128xf32>
    %120 = vector.extract_strided_slice %119 {offsets = [0, 0], sizes = [2, 28], strides = [1, 1]} : vector<2x128xf32> to vector<2x28xf32>
    %121 = vector.extract_strided_slice %119 {offsets = [0, 32], sizes = [2, 28], strides = [1, 1]} : vector<2x128xf32> to vector<2x28xf32>
    %122 = vector.extract_strided_slice %115 {offsets = [0, 64], sizes = [2, 28], strides = [1, 1]} : vector<2x128xf32> to vector<2x28xf32>
    %123 = vector.extract_strided_slice %119 {offsets = [0, 96], sizes = [2, 28], strides = [1, 1]} : vector<2x128xf32> to vector<2x28xf32>
    %124 = arith.mulf %121, %79 : vector<2x28xf32>
    %125 = arith.mulf %120, %122 : vector<2x28xf32>
    %126 = arith.addf %124, %125 : vector<2x28xf32>
    %127 = math.tanh %126 : vector<2x28xf32>
    %128 = arith.mulf %123, %127 : vector<2x28xf32>
    %cst_63 = arith.constant 0.000000e+00 : f32
    %129 = vector.broadcast %cst_63 : f32 to vector<2x28xf32>
    %true_64 = arith.constant true
    %130 = arith.select %true_64, %106, %129 : vector<2x28xf32>
    %cst_65 = arith.constant 0.000000e+00 : f32
    %131 = vector.broadcast %cst_65 : f32 to vector<2x28xf32>
    %true_66 = arith.constant true
    %132 = arith.select %true_66, %128, %131 : vector<2x28xf32>
    %cst_67 = arith.constant 0.000000e+00 : f32
    %133 = vector.broadcast %cst_67 : f32 to vector<2x28xf32>
    %true_68 = arith.constant true
    %134 = arith.select %true_68, %126, %133 : vector<2x28xf32>
    %c62_i32 = arith.constant 62 : i32
    %c0_i32_69 = arith.constant 0 : i32
    %135 = arith.maxsi %c62_i32, %c0_i32_69 : i32
    %136 = arith.index_cast %135 : i32 to index
    %c0_70 = arith.constant 0 : index
    %c0_71 = arith.constant 0 : index
    %137 = vector.load %arg13[%136, %c0_70, %c0_71] : memref<64x2x28xf32, #tpu.memory_space<vmem>>, vector<1x2x28xf32>
    %138 = vector.shape_cast %137 : vector<1x2x28xf32> to vector<2x28xf32>
    %139 = vector.shape_cast %132 : vector<2x28xf32> to vector<1x2x28xf32>
    tpu.vector_store %arg13[%136, %c0_70, %c0_71], %139 {strides = array<i32>} : memref<64x2x28xf32, #tpu.memory_space<vmem>>, vector<1x2x28xf32>,
    %c0_72 = arith.constant 0 : index
    %c0_73 = arith.constant 0 : index
    %140 = vector.load %arg10[%c0_72, %c0_73] : memref<28x128xf32, #tpu.memory_space<vmem>>, vector<28x128xf32>
    %cst_74 = arith.constant dense<0.000000e+00> : vector<2x128xf32>
    %141 = tpu.matmul %130, %140, %cst_74 {dimension_numbers = #tpu.dot_dimension_numbers<[1], [0], [0], [1], [0, 0, 1, 1], [], []>} : vector<2x28xf32>, vector<28x128xf32>, vector<2x128xf32> -> vector<2x128xf32>
    %c0_75 = arith.constant 0 : index
    %c0_76 = arith.constant 0 : index
    %142 = vector.load %arg11[%c0_75, %c0_76] : memref<28x128xf32, #tpu.memory_space<vmem>>, vector<28x128xf32>
    %cst_77 = arith.constant dense<0.000000e+00> : vector<2x128xf32>
    %143 = tpu.matmul %132, %142, %cst_77 {dimension_numbers = #tpu.dot_dimension_numbers<[1], [0], [0], [1], [0, 0, 1, 1], [], []>} : vector<2x28xf32>, vector<28x128xf32>, vector<2x128xf32> -> vector<2x128xf32>
    %144 = arith.addf %141, %143 : vector<2x128xf32>
    %c0_78 = arith.constant 0 : index
    %c0_79 = arith.constant 0 : index
    %145 = vector.load %arg12[%c0_78, %c0_79] : memref<1x128xf32, #tpu.memory_space<vmem>>, vector<1x128xf32>
    %146 = vector.broadcast %145 : vector<1x128xf32> to vector<2x128xf32>
    %147 = arith.addf %144, %146 : vector<2x128xf32>
    %148 = math.tanh %147 : vector<2x128xf32>
    %cst_80 = arith.constant 5.000000e-01 : f32
    %149 = vector.broadcast %cst_80 : f32 to vector<2x128xf32>
    %150 = arith.mulf %149, %148 : vector<2x128xf32>
    %cst_81 = arith.constant 5.000000e-01 : f32
    %151 = vector.broadcast %cst_81 : f32 to vector<2x128xf32>
    %152 = arith.addf %150, %151 : vector<2x128xf32>
    %153 = vector.extract_strided_slice %152 {offsets = [0, 0], sizes = [2, 28], strides = [1, 1]} : vector<2x128xf32> to vector<2x28xf32>
    %154 = vector.extract_strided_slice %152 {offsets = [0, 32], sizes = [2, 28], strides = [1, 1]} : vector<2x128xf32> to vector<2x28xf32>
    %155 = vector.extract_strided_slice %148 {offsets = [0, 64], sizes = [2, 28], strides = [1, 1]} : vector<2x128xf32> to vector<2x28xf32>
    %156 = vector.extract_strided_slice %152 {offsets = [0, 96], sizes = [2, 28], strides = [1, 1]} : vector<2x128xf32> to vector<2x28xf32>
    %157 = arith.mulf %154, %134 : vector<2x28xf32>
    %158 = arith.mulf %153, %155 : vector<2x28xf32>
    %159 = arith.addf %157, %158 : vector<2x28xf32>
    %160 = math.tanh %159 : vector<2x28xf32>
    %161 = arith.mulf %156, %160 : vector<2x28xf32>
    %cst_82 = arith.constant 0.000000e+00 : f32
    %162 = vector.broadcast %cst_82 : f32 to vector<2x28xf32>
    %true_83 = arith.constant true
    %163 = arith.select %true_83, %161, %162 : vector<2x28xf32>
    %c63_i32 = arith.constant 63 : i32
    %c0_i32_84 = arith.constant 0 : i32
    %164 = arith.maxsi %c63_i32, %c0_i32_84 : i32
    %165 = arith.index_cast %164 : i32 to index
    %c0_85 = arith.constant 0 : index
    %c0_86 = arith.constant 0 : index
    %166 = vector.load %arg13[%165, %c0_85, %c0_86] : memref<64x2x28xf32, #tpu.memory_space<vmem>>, vector<1x2x28xf32>
    %167 = vector.shape_cast %166 : vector<1x2x28xf32> to vector<2x28xf32>
    %168 = vector.shape_cast %163 : vector<2x28xf32> to vector<1x2x28xf32>
    tpu.vector_store %arg13[%165, %c0_85, %c0_86], %168 {strides = array<i32>} : memref<64x2x28xf32, #tpu.memory_space<vmem>>, vector<1x2x28xf32>,
    return
  }
}

</mosaic_0001>

<llo_original>
// kernel: _lambda_.1
$region0: #{_lambda_.1}
  #allocation0 [shape = 'u32[]', space=smem, size = 0x4, offset = 0x4, fixed_abs, tag = 'smem constant byte address 0x4 - core index']
  #allocation1 [shape = 'u32[144,128]{1,0:T(1,128)}', space=vmem, size = 0x12000, scoped, tag = 'internal scratch']
  %s0 = inlined_call_operand.vmem [shape: f32[64,2,7], index: 0, kind: input, shape index: {}]
  %s1 = inlined_call_operand.hbm [shape: f32[7,128], index: 1, kind: input, shape index: {}]
  %s2 = inlined_call_operand.hbm [shape: f32[14,128], index: 2, kind: input, shape index: {}]
  %s3 = inlined_call_operand.vmem [shape: f32[1,128], index: 3, kind: input, shape index: {}]
  %s4 = inlined_call_operand.vmem [shape: f32[14,128], index: 4, kind: input, shape index: {}]
  %s5 = inlined_call_operand.vmem [shape: f32[14,128], index: 5, kind: input, shape index: {}]
  %s6 = inlined_call_operand.vmem [shape: f32[1,128], index: 6, kind: input, shape index: {}]
  %s7 = inlined_call_operand.vmem [shape: f32[14,128], index: 7, kind: input, shape index: {}]
  %s8 = inlined_call_operand.vmem [shape: f32[28,128], index: 8, kind: input, shape index: {}]
  %s9 = inlined_call_operand.vmem [shape: f32[1,128], index: 9, kind: input, shape index: {}]
  %s10 = inlined_call_operand.vmem [shape: f32[28,128], index: 10, kind: input, shape index: {}]
  %s11 = inlined_call_operand.vmem [shape: f32[28,128], index: 11, kind: input, shape index: {}]
  %s12 = inlined_call_operand.vmem [shape: f32[1,128], index: 12, kind: input, shape index: {}]
  %s13 = inlined_call_operand.vmem [shape: f32[64,2,28], index: 13, kind: output, shape index: {}]
  %s14 = sld [smem:[#allocation0]]
  $region77: #{_lambda_.1} parent=0
    _
  %s16 = ssub.s32 1, %s14
  %s17 = scalar_select 0, %s16, %s14
  $region1: #{_lambda_.1} parent=0
    #allocation2 [shape = 'u8[4096]{0}', space=vmem, size = 0x1000, scoped, tag = 'input window, operand 1, single buffered']
    #allocation3 [shape = 's32[1]{0}', space=sflag, size = 0x4, scoped, tag = 'scoped memory for _lambda_.1']
    #allocation4 [shape = 'u8[8192]{0}', space=vmem, size = 0x2000, scoped, tag = 'input window, operand 2, single buffered']
    #allocation5 [shape = 's32[1]{0}', space=sflag, size = 0x4, scoped, tag = 'scoped memory for _lambda_.1']
    %18 = vsyncpa [#allocation3], 0
    %19 = vsyncpa [#allocation5], 0
    // Predicated region
    $region2: #{_lambda_.1} parent=1 // pred_check
      _
    $region3: #{_lambda_.1} parent=1 // pred_check_branch
      %21 = sbr.rel (0) target = $region5
    $region4: #{_lambda_.1} parent=1 // pred_region
      _
    $region5: #{_lambda_.1} parent=1 // pred_fallthru
      _
    // Predicated region
    $region6: #{_lambda_.1} parent=1 // pred_check
      _
    $region7: #{_lambda_.1} parent=1 // pred_check_branch
      %23 = sbr.rel (0) target = $region9
    $region8: #{_lambda_.1} parent=1 // pred_region
      %s25 = ssub.s32 128, 128
      %26 = vsyncadd [#allocation3], %s25
      %s28 = sshll.u32 [#allocation2], 4
      %s29 = int_to_ptr.vmem [resolvable:$true] %s28
      %31 = dma.hbm_to_vmem [thread:$0]  %s1, 128, %s29, [#allocation3]
    $region9: #{_lambda_.1} parent=1 // pred_fallthru
      _
    // Predicated region
    $region10: #{_lambda_.1} parent=1 // pred_check
      _
    $region11: #{_lambda_.1} parent=1 // pred_check_branch
      %33 = sbr.rel (0) target = $region13
    $region12: #{_lambda_.1} parent=1 // pred_region
      %s35 = ssub.s32 256, 256
      %36 = vsyncadd [#allocation5], %s35
      %s37 = sshll.u32 [#allocation4], 4
      %s38 = int_to_ptr.vmem [resolvable:$true] %s37
      %43 = dma.hbm_to_vmem [thread:$0]  %s2, 256, %s38, [#allocation5], 128, 128, 8
    $region13: #{_lambda_.1} parent=1 // pred_fallthru
      _
    // Predicated region
    $region14: #{_lambda_.1} parent=1 // pred_check
      _
    $region15: #{_lambda_.1} parent=1 // pred_check_branch
      %45 = sbr.rel (0) target = $region17
    $region16: #{_lambda_.1} parent=1 // pred_region
      _
    $region17: #{_lambda_.1} parent=1 // pred_fallthru
      _
    // Predicated region
    $region18: #{_lambda_.1} parent=1 // pred_check
      _
    $region19: #{_lambda_.1} parent=1 // pred_check_branch
      %47 = sbr.rel (0) target = $region21
    $region20: #{_lambda_.1} parent=1 // pred_region
      _
    $region21: #{_lambda_.1} parent=1 // pred_fallthru
      _
    // Predicated region
    $region22: #{_lambda_.1} parent=1 // pred_check
      _
    $region23: #{_lambda_.1} parent=1 // pred_check_branch
      %49 = sbr.rel (0) target = $region25
    $region24: #{_lambda_.1} parent=1 // pred_region
      _
    $region25: #{_lambda_.1} parent=1 // pred_fallthru
      _
    // Predicated region
    $region26: #{_lambda_.1} parent=1 // pred_check
      _
    $region27: #{_lambda_.1} parent=1 // pred_check_branch
      %51 = sbr.rel (0) target = $region29
    $region28: #{_lambda_.1} parent=1 // pred_region
      _
    $region29: #{_lambda_.1} parent=1 // pred_fallthru
      _
    // Predicated region
    $region30: #{_lambda_.1} parent=1 // pred_check
      _
    $region31: #{_lambda_.1} parent=1 // pred_check_branch
      %53 = sbr.rel (0) target = $region33
    $region32: #{_lambda_.1} parent=1 // pred_region
      _
    $region33: #{_lambda_.1} parent=1 // pred_fallthru
      _
    // Predicated region
    $region34: #{_lambda_.1} parent=1 // pred_check
      _
    $region35: #{_lambda_.1} parent=1 // pred_check_branch
      %55 = sbr.rel (0) target = $region37
    $region36: #{_lambda_.1} parent=1 // pred_region
      _
    $region37: #{_lambda_.1} parent=1 // pred_fallthru
      _
    // Predicated region
    $region38: #{_lambda_.1} parent=1 // pred_check
      _
    $region39: #{_lambda_.1} parent=1 // pred_check_branch
      %57 = sbr.rel (0) target = $region41
    $region40: #{_lambda_.1} parent=1 // pred_region
      _
    $region41: #{_lambda_.1} parent=1 // pred_fallthru
      _
    // Predicated region
    $region42: #{_lambda_.1} parent=1 // pred_check
      _
    $region43: #{_lambda_.1} parent=1 // pred_check_branch
      %59 = sbr.rel (0) target = $region45
    $region44: #{_lambda_.1} parent=1 // pred_region
      _
    $region45: #{_lambda_.1} parent=1 // pred_fallthru
      _
    // Predicated region
    $region46: #{_lambda_.1} parent=1 // pred_check
      _
    $region47: #{_lambda_.1} parent=1 // pred_check_branch
      %61 = sbr.rel (0) target = $region49
    $region48: #{_lambda_.1} parent=1 // pred_region
      _
    $region49: #{_lambda_.1} parent=1 // pred_fallthru
      _
    // Predicated region
    $region50: #{_lambda_.1} parent=1 // pred_check
      _
    $region51: #{_lambda_.1} parent=1 // pred_check_branch
      %63 = sbr.rel (0) target = $region53
    $region52: #{_lambda_.1} parent=1 // pred_region
      _
    $region53: #{_lambda_.1} parent=1 // pred_fallthru
      _
    // Predicated region
    $region54: #{_lambda_.1} parent=1 // pred_check
      _
    $region55: #{_lambda_.1} parent=1 // pred_check_branch
      %65 = sbr.rel (0) target = $region57
    $region56: #{_lambda_.1} parent=1 // pred_region
      %66 = dma.done [#allocation3], 128
    $region57: #{_lambda_.1} parent=1 // pred_fallthru
      _
    // Predicated region
    $region58: #{_lambda_.1} parent=1 // pred_check
      _
    $region59: #{_lambda_.1} parent=1 // pred_check_branch
      %68 = sbr.rel (0) target = $region61
    $region60: #{_lambda_.1} parent=1 // pred_region
      %69 = dma.done [#allocation5], 256
    $region61: #{_lambda_.1} parent=1 // pred_fallthru
      _
    loop: start=0, step=1, limit=16
    $region62: #{_lambda_.1} parent=1 // loop_pre_header
      _
    $region63: #{_lambda_.1} parent=1 // loop_header
      %s71 = sphi 0, %s75
      %p72 = scmp.ge.s32.totalorder %s71, 16
      %v76 = vphi 0.0, %v2597
      %v77 = vphi 0.0, %v2591
      %v78 = vphi 0.0, %v3154
      %v79 = vphi 0.0, %v3155
      %v80 = vphi 0.0, %v3160
      %v81 = vphi 0.0, %v3161
      %v82 = vphi 0.0, %v3166
      %v83 = vphi 0.0, %v3167
    $region64: #{_lambda_.1} parent=1 // loop_header_branch
      %74 = sbr.rel (%p72) target = $region68
    $region65: #{_lambda_.1} parent=1 // loop_body
      %s84 = smul.u32 %s71, 4
      %p85 = scmp.lt.s32.totalorder %s84, 63
      %s86 = scalar_select %p85, %s84, 63
      %s87 = smul.u32 %s86, 2
      %s88 = scalar_lea.vmem %s0, %s87
      %v89 = vld [vmem:[%s88] sm:$0x3]
      %v90 = vld [vmem:[#allocation2] sm:$0x7f]
      %v91 = vld [vmem:[#allocation4] sm:$0xff]
      %v92 = vld [vmem:[#allocation4 + $0x8] sm:$0x3f]
      %94 = vrot.lane.b32.xlu0 %v76, 32
      %v95 = vpop.permute.xlu0 %94
      %vm96 = vcmask 113664
      %v97 = vsel %vm96, %v95, 0
      %vm99 = vcmask 1045504
      %v101 = vsel %vm99, %v92, 0
      %103 = vmatprep.subr.mxu0 0.0
      %104 = vmatpush1.msra.mxu0 %v91
      %105 = vmatprep.subr.mxu0 0.0
      %106 = vmatpush1.msra.mxu0 %v101
      %107 = vmatprep.subr.mxu0 0.0
      %108 = vmatpush1.msra.mxu0 0.0
      %109 = vmatprep.subr.mxu0 0.0
      %110 = vmatpush1.msra.mxu0 0.0
      %111 = vmatprep.subr.mxu0 0.0
      %112 = vmatpush1.msra.mxu0 0.0
      %113 = vmatprep.subr.mxu0 0.0
      %114 = vmatpush1.msra.mxu0 0.0
      %115 = vmatprep.subr.mxu0 0.0
      %116 = vmatpush1.msra.mxu0 0.0
      %117 = vmatprep.subr.mxu0 0.0
      %118 = vmatpush1.msra.mxu0 0.0
      %119 = vmatprep.subr.mxu0 0.0
      %120 = vmatpush1.msra.mxu0 0.0
      %121 = vmatprep.subr.mxu0 0.0
      %122 = vmatpush1.msra.mxu0 0.0
      %123 = vmatprep.subr.mxu0 0.0
      %124 = vmatpush1.msra.mxu0 0.0
      %125 = vmatprep.subr.mxu0 0.0
      %126 = vmatpush1.msra.mxu0 0.0
      %127 = vmatprep.subr.mxu0 0.0
      %128 = vmatpush1.msra.mxu0 0.0
      %129 = vmatprep.subr.mxu0 0.0
      %130 = vmatpush1.msra.mxu0 0.0
      %131 = vmatprep.subr.mxu0 0.0
      %132 = vmatpush1.msra.mxu0 0.0
      %133 = vmatprep.subr.mxu0 0.0
      %134 = vmatpush1.msra.mxu0 0.0
      %135 = vmatprep.subr.mxu0 0.0
      %136 = vmatpush1.msra.mxu0 0.0
      %137 = vmatprep.subr.mxu0 0.0
      %138 = vmatpush1.msra.mxu0 0.0
      %139 = vmatprep.subr.mxu0 0.0
      %140 = vmatpush1.msra.mxu0 0.0
      %141 = vmatprep.subr.mxu0 0.0
      %142 = vmatpush1.msra.mxu0 0.0
      %143 = vmatprep.subr.mxu0 0.0
      %144 = vmatpush1.msra.mxu0 0.0
      %145 = vmatprep.subr.mxu0 0.0
      %146 = vmatpush1.msra.mxu0 0.0
      %147 = vmatprep.subr.mxu0 0.0
      %148 = vmatpush1.msra.mxu0 0.0
      %149 = vmatprep.subr.mxu0 0.0
      %150 = vmatpush1.msra.mxu0 0.0
      %151 = vmatprep.subr.mxu0 0.0
      %152 = vmatpush1.msra.mxu0 0.0
      %153 = vmatprep.subr.mxu0 0.0
      %154 = vmatpush1.msra.mxu0 0.0
      %155 = vmatprep.subr.mxu0 0.0
      %156 = vmatpush1.msra.mxu0 0.0
      %157 = vmatprep.subr.mxu0 0.0
      %158 = vmatpush1.msra.mxu0 0.0
      %159 = vmatprep.subr.mxu0 0.0
      %160 = vmatpush1.msra.mxu0 0.0
      %161 = vmatprep.subr.mxu0 0.0
      %162 = vmatpush1.msra.mxu0 0.0
      %163 = vmatprep.subr.mxu0 0.0
      %164 = vmatpush1.msra.mxu0 0.0
      %165 = vmatprep.subr.mxu0 0.0
      %166 = vmatpush1.msra.mxu0 0.0
      %167 = vmatprep.mubr.f32.mxu0 0.0
      %168 = vmatmul.mubr.f32.gmra.mrb[0].mxu0 %v97
      %v169 = vpop.f32.mrb[0].mxu0
      %v170 = vadd.f32 0.0, %v169
      %v171 = vpop.f32.mrb[0].mxu0
      %172 = vdwg.mxu0
      %vm173 = vcmask 56320
      %v175 = vsel %vm173, %v89, 0
      %vm177 = vcmask 1046528
      %v179 = vsel %vm177, %v90, 0
      %181 = vmatprep.subr.mxu0 0.0
      %182 = vmatpush1.msra.mxu0 %v179
      %183 = vmatprep.subr.mxu0 0.0
      %184 = vmatpush1.msra.mxu0 0.0
      %185 = vmatprep.subr.mxu0 0.0
      %186 = vmatpush1.msra.mxu0 0.0
      %187 = vmatprep.subr.mxu0 0.0
      %188 = vmatpush1.msra.mxu0 0.0
      %189 = vmatprep.subr.mxu0 0.0
      %190 = vmatpush1.msra.mxu0 0.0
      %191 = vmatprep.subr.mxu0 0.0
      %192 = vmatpush1.msra.mxu0 0.0
      %193 = vmatprep.subr.mxu0 0.0
      %194 = vmatpush1.msra.mxu0 0.0
      %195 = vmatprep.subr.mxu0 0.0
      %196 = vmatpush1.msra.mxu0 0.0
      %197 = vmatprep.subr.mxu0 0.0
      %198 = vmatpush1.msra.mxu0 0.0
      %199 = vmatprep.subr.mxu0 0.0
      %200 = vmatpush1.msra.mxu0 0.0
      %201 = vmatprep.subr.mxu0 0.0
      %202 = vmatpush1.msra.mxu0 0.0
      %203 = vmatprep.subr.mxu0 0.0
      %204 = vmatpush1.msra.mxu0 0.0
      %205 = vmatprep.subr.mxu0 0.0
      %206 = vmatpush1.msra.mxu0 0.0
      %207 = vmatprep.subr.mxu0 0.0
      %208 = vmatpush1.msra.mxu0 0.0
      %209 = vmatprep.subr.mxu0 0.0
      %210 = vmatpush1.msra.mxu0 0.0
      %211 = vmatprep.subr.mxu0 0.0
      %212 = vmatpush1.msra.mxu0 0.0
      %213 = vmatprep.subr.mxu0 0.0
      %214 = vmatpush1.msra.mxu0 0.0
      %215 = vmatprep.subr.mxu0 0.0
      %216 = vmatpush1.msra.mxu0 0.0
      %217 = vmatprep.subr.mxu0 0.0
      %218 = vmatpush1.msra.mxu0 0.0
      %219 = vmatprep.subr.mxu0 0.0
      %220 = vmatpush1.msra.mxu0 0.0
      %221 = vmatprep.subr.mxu0 0.0
      %222 = vmatpush1.msra.mxu0 0.0
      %223 = vmatprep.subr.mxu0 0.0
      %224 = vmatpush1.msra.mxu0 0.0
      %225 = vmatprep.subr.mxu0 0.0
      %226 = vmatpush1.msra.mxu0 0.0
      %227 = vmatprep.subr.mxu0 0.0
      %228 = vmatpush1.msra.mxu0 0.0
      %229 = vmatprep.subr.mxu0 0.0
      %230 = vmatpush1.msra.mxu0 0.0
      %231 = vmatprep.subr.mxu0 0.0
      %232 = vmatpush1.msra.mxu0 0.0
      %233 = vmatprep.subr.mxu0 0.0
      %234 = vmatpush1.msra.mxu0 0.0
      %235 = vmatprep.subr.mxu0 0.0
      %236 = vmatpush1.msra.mxu0 0.0
      %237 = vmatprep.subr.mxu0 0.0
      %238 = vmatpush1.msra.mxu0 0.0
      %239 = vmatprep.subr.mxu0 0.0
      %240 = vmatpush1.msra.mxu0 0.0
      %241 = vmatprep.subr.mxu0 0.0
      %242 = vmatpush1.msra.mxu0 0.0
      %243 = vmatprep.subr.mxu0 0.0
      %244 = vmatpush1.msra.mxu0 0.0
      %245 = vmatprep.mubr.f32.mxu0 0.0
      %246 = vmatmul.mubr.f32.gmra.mrb[0].mxu0 %v175
      %v247 = vpop.f32.mrb[0].mxu0
      %v248 = vadd.f32 %v170, %v247
      %v249 = vpop.f32.mrb[0].mxu0
      %250 = vdwg.mxu0
      %v251 = vld [vmem:[%s3] sm:$0x1]
      %v253 = vlaneseq
      %v254 = vshrl.u32 %v253, 7
      %v255 = vsub.s32 0, %v254
      %v256 = vrot.slane %v251, %v255
      %v258 = vadd.f32 %v248, %v256
      %v259 = vtanh.pop %v258
      %v260 = vmul.f32 %v259, 0.5
      %v261 = vadd.f32 %v260, 0.5
      %v262 = vmul.f32 %v261, %v77
      %264 = vrot.lane.b32.xlu0 %v259, 64
      %v265 = vpop.permute.xlu0 %264
      %v267 = vmul.f32 %v261, %v265
      %269 = vrot.lane.b32.xlu0 %v267, 32
      %v270 = vpop.permute.xlu0 %269
      %v272 = vadd.f32 %v262, %v270
      %v273 = vtanh.pop %v272
      %275 = vrot.lane.b32.xlu0 %v273, 64
      %v276 = vpop.permute.xlu0 %275
      %v278 = vmul.f32 %v261, %v276
      %v279 = vld [vmem:[%s4] sm:$0xff]
      %v280 = vld [vmem:[%s4 + $0x8] sm:$0x3f]
      %v281 = vld [vmem:[%s5] sm:$0xff]
      %v282 = vld [vmem:[%s5 + $0x8] sm:$0x3f]
      %284 = vrot.lane.b32.xlu0 %v78, 32
      %v285 = vpop.permute.xlu0 %284
      %v286 = vsel %vm96, %v285, 0
      %v289 = vsel %vm99, %v282, 0
      %291 = vmatprep.subr.mxu0 0.0
      %292 = vmatpush1.msra.mxu0 %v281
      %293 = vmatprep.subr.mxu0 0.0
      %294 = vmatpush1.msra.mxu0 %v289
      %295 = vmatprep.subr.mxu0 0.0
      %296 = vmatpush1.msra.mxu0 0.0
      %297 = vmatprep.subr.mxu0 0.0
      %298 = vmatpush1.msra.mxu0 0.0
      %299 = vmatprep.subr.mxu0 0.0
      %300 = vmatpush1.msra.mxu0 0.0
      %301 = vmatprep.subr.mxu0 0.0
      %302 = vmatpush1.msra.mxu0 0.0
      %303 = vmatprep.subr.mxu0 0.0
      %304 = vmatpush1.msra.mxu0 0.0
      %305 = vmatprep.subr.mxu0 0.0
      %306 = vmatpush1.msra.mxu0 0.0
      %307 = vmatprep.subr.mxu0 0.0
      %308 = vmatpush1.msra.mxu0 0.0
      %309 = vmatprep.subr.mxu0 0.0
      %310 = vmatpush1.msra.mxu0 0.0
      %311 = vmatprep.subr.mxu0 0.0
      %312 = vmatpush1.msra.mxu0 0.0
      %313 = vmatprep.subr.mxu0 0.0
      %314 = vmatpush1.msra.mxu0 0.0
      %315 = vmatprep.subr.mxu0 0.0
      %316 = vmatpush1.msra.mxu0 0.0
      %317 = vmatprep.subr.mxu0 0.0
      %318 = vmatpush1.msra.mxu0 0.0
      %319 = vmatprep.subr.mxu0 0.0
      %320 = vmatpush1.msra.mxu0 0.0
      %321 = vmatprep.subr.mxu0 0.0
      %322 = vmatpush1.msra.mxu0 0.0
      %323 = vmatprep.subr.mxu0 0.0
      %324 = vmatpush1.msra.mxu0 0.0
      %325 = vmatprep.subr.mxu0 0.0
      %326 = vmatpush1.msra.mxu0 0.0
      %327 = vmatprep.subr.mxu0 0.0
      %328 = vmatpush1.msra.mxu0 0.0
      %329 = vmatprep.subr.mxu0 0.0
      %330 = vmatpush1.msra.mxu0 0.0
      %331 = vmatprep.subr.mxu0 0.0
      %332 = vmatpush1.msra.mxu0 0.0
      %333 = vmatprep.subr.mxu0 0.0
      %334 = vmatpush1.msra.mxu0 0.0
      %335 = vmatprep.subr.mxu0 0.0
      %336 = vmatpush1.msra.mxu0 0.0
      %337 = vmatprep.subr.mxu0 0.0
      %338 = vmatpush1.msra.mxu0 0.0
      %339 = vmatprep.subr.mxu0 0.0
      %340 = vmatpush1.msra.mxu0 0.0
      %341 = vmatprep.subr.mxu0 0.0
      %342 = vmatpush1.msra.mxu0 0.0
      %343 = vmatprep.subr.mxu0 0.0
      %344 = vmatpush1.msra.mxu0 0.0
      %345 = vmatprep.subr.mxu0 0.0
      %346 = vmatpush1.msra.mxu0 0.0
      %347 = vmatprep.subr.mxu0 0.0
      %348 = vmatpush1.msra.mxu0 0.0
      %349 = vmatprep.subr.mxu0 0.0
      %350 = vmatpush1.msra.mxu0 0.0
      %351 = vmatprep.subr.mxu0 0.0
      %352 = vmatpush1.msra.mxu0 0.0
      %353 = vmatprep.subr.mxu0 0.0
      %354 = vmatpush1.msra.mxu0 0.0
      %355 = vmatprep.mubr.f32.mxu0 0.0
      %356 = vmatmul.mubr.f32.gmra.mrb[0].mxu0 %v286
      %v357 = vpop.f32.mrb[0].mxu0
      %v358 = vadd.f32 0.0, %v357
      %v359 = vpop.f32.mrb[0].mxu0
      %360 = vdwg.mxu0
      %v362 = vsel %vm99, %v280, 0
      %364 = vmatprep.subr.mxu0 0.0
      %365 = vmatpush1.msra.mxu0 %v279
      %366 = vmatprep.subr.mxu0 0.0
      %367 = vmatpush1.msra.mxu0 %v362
      %368 = vmatprep.subr.mxu0 0.0
      %369 = vmatpush1.msra.mxu0 0.0
      %370 = vmatprep.subr.mxu0 0.0
      %371 = vmatpush1.msra.mxu0 0.0
      %372 = vmatprep.subr.mxu0 0.0
      %373 = vmatpush1.msra.mxu0 0.0
      %374 = vmatprep.subr.mxu0 0.0
      %375 = vmatpush1.msra.mxu0 0.0
      %376 = vmatprep.subr.mxu0 0.0
      %377 = vmatpush1.msra.mxu0 0.0
      %378 = vmatprep.subr.mxu0 0.0
      %379 = vmatpush1.msra.mxu0 0.0
      %380 = vmatprep.subr.mxu0 0.0
      %381 = vmatpush1.msra.mxu0 0.0
      %382 = vmatprep.subr.mxu0 0.0
      %383 = vmatpush1.msra.mxu0 0.0
      %384 = vmatprep.subr.mxu0 0.0
      %385 = vmatpush1.msra.mxu0 0.0
      %386 = vmatprep.subr.mxu0 0.0
      %387 = vmatpush1.msra.mxu0 0.0
      %388 = vmatprep.subr.mxu0 0.0
      %389 = vmatpush1.msra.mxu0 0.0
      %390 = vmatprep.subr.mxu0 0.0
      %391 = vmatpush1.msra.mxu0 0.0
      %392 = vmatprep.subr.mxu0 0.0
      %393 = vmatpush1.msra.mxu0 0.0
      %394 = vmatprep.subr.mxu0 0.0
      %395 = vmatpush1.msra.mxu0 0.0
      %396 = vmatprep.subr.mxu0 0.0
      %397 = vmatpush1.msra.mxu0 0.0
      %398 = vmatprep.subr.mxu0 0.0
      %399 = vmatpush1.msra.mxu0 0.0
      %400 = vmatprep.subr.mxu0 0.0
      %401 = vmatpush1.msra.mxu0 0.0
      %402 = vmatprep.subr.mxu0 0.0
      %403 = vmatpush1.msra.mxu0 0.0
      %404 = vmatprep.subr.mxu0 0.0
      %405 = vmatpush1.msra.mxu0 0.0
      %406 = vmatprep.subr.mxu0 0.0
      %407 = vmatpush1.msra.mxu0 0.0
      %408 = vmatprep.subr.mxu0 0.0
      %409 = vmatpush1.msra.mxu0 0.0
      %410 = vmatprep.subr.mxu0 0.0
      %411 = vmatpush1.msra.mxu0 0.0
      %412 = vmatprep.subr.mxu0 0.0
      %413 = vmatpush1.msra.mxu0 0.0
      %414 = vmatprep.subr.mxu0 0.0
      %415 = vmatpush1.msra.mxu0 0.0
      %416 = vmatprep.subr.mxu0 0.0
      %417 = vmatpush1.msra.mxu0 0.0
      %418 = vmatprep.subr.mxu0 0.0
      %419 = vmatpush1.msra.mxu0 0.0
      %420 = vmatprep.subr.mxu0 0.0
      %421 = vmatpush1.msra.mxu0 0.0
      %422 = vmatprep.subr.mxu0 0.0
      %423 = vmatpush1.msra.mxu0 0.0
      %424 = vmatprep.subr.mxu0 0.0
      %425 = vmatpush1.msra.mxu0 0.0
      %426 = vmatprep.subr.mxu0 0.0
      %427 = vmatpush1.msra.mxu0 0.0
      %428 = vmatprep.mubr.f32.mxu0 0.0
      %429 = vmatmul.mubr.f32.gmra.mrb[0].mxu0 %v97
      %v430 = vpop.f32.mrb[0].mxu0
      %v431 = vadd.f32 %v358, %v430
      %v432 = vpop.f32.mrb[0].mxu0
      %433 = vdwg.mxu0
      %v434 = vld [vmem:[%s6] sm:$0x1]
      %v436 = vlaneseq
      %v437 = vshrl.u32 %v436, 7
      %v438 = vsub.s32 0, %v437
      %v439 = vrot.slane %v434, %v438
      %v441 = vadd.f32 %v431, %v439
      %v442 = vtanh.pop %v441
      %v443 = vmul.f32 %v442, 0.5
      %v444 = vadd.f32 %v443, 0.5
      %v445 = vmul.f32 %v444, %v79
      %447 = vrot.lane.b32.xlu0 %v442, 64
      %v448 = vpop.permute.xlu0 %447
      %v450 = vmul.f32 %v444, %v448
      %452 = vrot.lane.b32.xlu0 %v450, 32
      %v453 = vpop.permute.xlu0 %452
      %v455 = vadd.f32 %v445, %v453
      %v456 = vtanh.pop %v455
      %458 = vrot.lane.b32.xlu0 %v456, 64
      %v459 = vpop.permute.xlu0 %458
      %v461 = vmul.f32 %v444, %v459
      %v462 = vld [vmem:[%s7] sm:$0xff]
      %v463 = vld [vmem:[%s7 + $0x8] sm:$0x3f]
      %v464 = vld [vmem:[%s8] sm:$0xff]
      %v465 = vld [vmem:[%s8 + $0x8] sm:$0xff]
      %v466 = vld [vmem:[%s8 + $0x10] sm:$0xff]
      %v467 = vld [vmem:[%s8 + $0x18] sm:$0xf]
      %469 = vrot.lane.b32.xlu0 %v80, 32
      %v470 = vpop.permute.xlu0 %469
      %vm471 = vcmask 228352
      %v472 = vsel %vm471, %v470, 0
      %vm474 = vcmask 1043456
      %v476 = vsel %vm474, %v467, 0
      %478 = vmatprep.subr.mxu0 0.0
      %479 = vmatpush1.msra.mxu0 %v464
      %480 = vmatprep.subr.mxu0 0.0
      %481 = vmatpush1.msra.mxu0 %v465
      %482 = vmatprep.subr.mxu0 0.0
      %483 = vmatpush1.msra.mxu0 %v466
      %484 = vmatprep.subr.mxu0 0.0
      %485 = vmatpush1.msra.mxu0 %v476
      %486 = vmatprep.subr.mxu0 0.0
      %487 = vmatpush1.msra.mxu0 0.0
      %488 = vmatprep.subr.mxu0 0.0
      %489 = vmatpush1.msra.mxu0 0.0
      %490 = vmatprep.subr.mxu0 0.0
      %491 = vmatpush1.msra.mxu0 0.0
      %492 = vmatprep.subr.mxu0 0.0
      %493 = vmatpush1.msra.mxu0 0.0
      %494 = vmatprep.subr.mxu0 0.0
      %495 = vmatpush1.msra.mxu0 0.0
      %496 = vmatprep.subr.mxu0 0.0
      %497 = vmatpush1.msra.mxu0 0.0
      %498 = vmatprep.subr.mxu0 0.0
      %499 = vmatpush1.msra.mxu0 0.0
      %500 = vmatprep.subr.mxu0 0.0
      %501 = vmatpush1.msra.mxu0 0.0
      %502 = vmatprep.subr.mxu0 0.0
      %503 = vmatpush1.msra.mxu0 0.0
      %504 = vmatprep.subr.mxu0 0.0
      %505 = vmatpush1.msra.mxu0 0.0
      %506 = vmatprep.subr.mxu0 0.0
      %507 = vmatpush1.msra.mxu0 0.0
      %508 = vmatprep.subr.mxu0 0.0
      %509 = vmatpush1.msra.mxu0 0.0
      %510 = vmatprep.subr.mxu0 0.0
      %511 = vmatpush1.msra.mxu0 0.0
      %512 = vmatprep.subr.mxu0 0.0
      %513 = vmatpush1.msra.mxu0 0.0
      %514 = vmatprep.subr.mxu0 0.0
      %515 = vmatpush1.msra.mxu0 0.0
      %516 = vmatprep.subr.mxu0 0.0
      %517 = vmatpush1.msra.mxu0 0.0
      %518 = vmatprep.subr.mxu0 0.0
      %519 = vmatpush1.msra.mxu0 0.0
      %520 = vmatprep.subr.mxu0 0.0
      %521 = vmatpush1.msra.mxu0 0.0
      %522 = vmatprep.subr.mxu0 0.0
      %523 = vmatpush1.msra.mxu0 0.0
      %524 = vmatprep.subr.mxu0 0.0
      %525 = vmatpush1.msra.mxu0 0.0
      %526 = vmatprep.subr.mxu0 0.0
      %527 = vmatpush1.msra.mxu0 0.0
      %528 = vmatprep.subr.mxu0 0.0
      %529 = vmatpush1.msra.mxu0 0.0
      %530 = vmatprep.subr.mxu0 0.0
      %531 = vmatpush1.msra.mxu0 0.0
      %532 = vmatprep.subr.mxu0 0.0
      %533 = vmatpush1.msra.mxu0 0.0
      %534 = vmatprep.subr.mxu0 0.0
      %535 = vmatpush1.msra.mxu0 0.0
      %536 = vmatprep.subr.mxu0 0.0
      %537 = vmatpush1.msra.mxu0 0.0
      %538 = vmatprep.subr.mxu0 0.0
      %539 = vmatpush1.msra.mxu0 0.0
      %540 = vmatprep.subr.mxu0 0.0
      %541 = vmatpush1.msra.mxu0 0.0
      %542 = vmatprep.mubr.f32.mxu0 0.0
      %543 = vmatmul.mubr.f32.gmra.mrb[0].mxu0 %v472
      %v544 = vpop.f32.mrb[0].mxu0
      %v545 = vadd.f32 0.0, %v544
      %v546 = vpop.f32.mrb[0].mxu0
      %547 = vdwg.mxu0
      %v549 = vsel %vm99, %v463, 0
      %551 = vmatprep.subr.mxu0 0.0
      %552 = vmatpush1.msra.mxu0 %v462
      %553 = vmatprep.subr.mxu0 0.0
      %554 = vmatpush1.msra.mxu0 %v549
      %555 = vmatprep.subr.mxu0 0.0
      %556 = vmatpush1.msra.mxu0 0.0
      %557 = vmatprep.subr.mxu0 0.0
      %558 = vmatpush1.msra.mxu0 0.0
      %559 = vmatprep.subr.mxu0 0.0
      %560 = vmatpush1.msra.mxu0 0.0
      %561 = vmatprep.subr.mxu0 0.0
      %562 = vmatpush1.msra.mxu0 0.0
      %563 = vmatprep.subr.mxu0 0.0
      %564 = vmatpush1.msra.mxu0 0.0
      %565 = vmatprep.subr.mxu0 0.0
      %566 = vmatpush1.msra.mxu0 0.0
      %567 = vmatprep.subr.mxu0 0.0
      %568 = vmatpush1.msra.mxu0 0.0
      %569 = vmatprep.subr.mxu0 0.0
      %570 = vmatpush1.msra.mxu0 0.0
      %571 = vmatprep.subr.mxu0 0.0
      %572 = vmatpush1.msra.mxu0 0.0
      %573 = vmatprep.subr.mxu0 0.0
      %574 = vmatpush1.msra.mxu0 0.0
      %575 = vmatprep.subr.mxu0 0.0
      %576 = vmatpush1.msra.mxu0 0.0
      %577 = vmatprep.subr.mxu0 0.0
      %578 = vmatpush1.msra.mxu0 0.0
      %579 = vmatprep.subr.mxu0 0.0
      %580 = vmatpush1.msra.mxu0 0.0
      %581 = vmatprep.subr.mxu0 0.0
      %582 = vmatpush1.msra.mxu0 0.0
      %583 = vmatprep.subr.mxu0 0.0
      %584 = vmatpush1.msra.mxu0 0.0
      %585 = vmatprep.subr.mxu0 0.0
      %586 = vmatpush1.msra.mxu0 0.0
      %587 = vmatprep.subr.mxu0 0.0
      %588 = vmatpush1.msra.mxu0 0.0
      %589 = vmatprep.subr.mxu0 0.0
      %590 = vmatpush1.msra.mxu0 0.0
      %591 = vmatprep.subr.mxu0 0.0
      %592 = vmatpush1.msra.mxu0 0.0
      %593 = vmatprep.subr.mxu0 0.0
      %594 = vmatpush1.msra.mxu0 0.0
      %595 = vmatprep.subr.mxu0 0.0
      %596 = vmatpush1.msra.mxu0 0.0
      %597 = vmatprep.subr.mxu0 0.0
      %598 = vmatpush1.msra.mxu0 0.0
      %599 = vmatprep.subr.mxu0 0.0
      %600 = vmatpush1.msra.mxu0 0.0
      %601 = vmatprep.subr.mxu0 0.0
      %602 = vmatpush1.msra.mxu0 0.0
      %603 = vmatprep.subr.mxu0 0.0
      %604 = vmatpush1.msra.mxu0 0.0
      %605 = vmatprep.subr.mxu0 0.0
      %606 = vmatpush1.msra.mxu0 0.0
      %607 = vmatprep.subr.mxu0 0.0
      %608 = vmatpush1.msra.mxu0 0.0
      %609 = vmatprep.subr.mxu0 0.0
      %610 = vmatpush1.msra.mxu0 0.0
      %611 = vmatprep.subr.mxu0 0.0
      %612 = vmatpush1.msra.mxu0 0.0
      %613 = vmatprep.subr.mxu0 0.0
      %614 = vmatpush1.msra.mxu0 0.0
      %615 = vmatprep.mubr.f32.mxu0 0.0
      %616 = vmatmul.mubr.f32.gmra.mrb[0].mxu0 %v286
      %v617 = vpop.f32.mrb[0].mxu0
      %v618 = vadd.f32 %v545, %v617
      %v619 = vpop.f32.mrb[0].mxu0
      %620 = vdwg.mxu0
      %v621 = vld [vmem:[%s9] sm:$0x1]
      %v623 = vlaneseq
      %v624 = vshrl.u32 %v623, 7
      %v625 = vsub.s32 0, %v624
      %v626 = vrot.slane %v621, %v625
      %v628 = vadd.f32 %v618, %v626
      %v629 = vtanh.pop %v628
      %v630 = vmul.f32 %v629, 0.5
      %v631 = vadd.f32 %v630, 0.5
      %v632 = vmul.f32 %v631, %v81
      %634 = vrot.lane.b32.xlu0 %v629, 64
      %v635 = vpop.permute.xlu0 %634
      %v637 = vmul.f32 %v631, %v635
      %639 = vrot.lane.b32.xlu0 %v637, 32
      %v640 = vpop.permute.xlu0 %639
      %v642 = vadd.f32 %v632, %v640
      %v643 = vtanh.pop %v642
      %645 = vrot.lane.b32.xlu0 %v643, 64
      %v646 = vpop.permute.xlu0 %645
      %v648 = vmul.f32 %v631, %v646
      %v649 = vld [vmem:[%s10] sm:$0xff]
      %v650 = vld [vmem:[%s10 + $0x8] sm:$0xff]
      %v651 = vld [vmem:[%s10 + $0x10] sm:$0xff]
      %v652 = vld [vmem:[%s10 + $0x18] sm:$0xf]
      %v653 = vld [vmem:[%s11] sm:$0xff]
      %v654 = vld [vmem:[%s11 + $0x8] sm:$0xff]
      %v655 = vld [vmem:[%s11 + $0x10] sm:$0xff]
      %v656 = vld [vmem:[%s11 + $0x18] sm:$0xf]
      %658 = vrot.lane.b32.xlu0 %v82, 32
      %v659 = vpop.permute.xlu0 %658
      %v660 = vsel %vm471, %v659, 0
      %v663 = vsel %vm474, %v656, 0
      %665 = vmatprep.subr.mxu0 0.0
      %666 = vmatpush1.msra.mxu0 %v653
      %667 = vmatprep.subr.mxu0 0.0
      %668 = vmatpush1.msra.mxu0 %v654
      %669 = vmatprep.subr.mxu0 0.0
      %670 = vmatpush1.msra.mxu0 %v655
      %671 = vmatprep.subr.mxu0 0.0
      %672 = vmatpush1.msra.mxu0 %v663
      %673 = vmatprep.subr.mxu0 0.0
      %674 = vmatpush1.msra.mxu0 0.0
      %675 = vmatprep.subr.mxu0 0.0
      %676 = vmatpush1.msra.mxu0 0.0
      %677 = vmatprep.subr.mxu0 0.0
      %678 = vmatpush1.msra.mxu0 0.0
      %679 = vmatprep.subr.mxu0 0.0
      %680 = vmatpush1.msra.mxu0 0.0
      %681 = vmatprep.subr.mxu0 0.0
      %682 = vmatpush1.msra.mxu0 0.0
      %683 = vmatprep.subr.mxu0 0.0
      %684 = vmatpush1.msra.mxu0 0.0
      %685 = vmatprep.subr.mxu0 0.0
      %686 = vmatpush1.msra.mxu0 0.0
      %687 = vmatprep.subr.mxu0 0.0
      %688 = vmatpush1.msra.mxu0 0.0
      %689 = vmatprep.subr.mxu0 0.0
      %690 = vmatpush1.msra.mxu0 0.0
      %691 = vmatprep.subr.mxu0 0.0
      %692 = vmatpush1.msra.mxu0 0.0
      %693 = vmatprep.subr.mxu0 0.0
      %694 = vmatpush1.msra.mxu0 0.0
      %695 = vmatprep.subr.mxu0 0.0
      %696 = vmatpush1.msra.mxu0 0.0
      %697 = vmatprep.subr.mxu0 0.0
      %698 = vmatpush1.msra.mxu0 0.0
      %699 = vmatprep.subr.mxu0 0.0
      %700 = vmatpush1.msra.mxu0 0.0
      %701 = vmatprep.subr.mxu0 0.0
      %702 = vmatpush1.msra.mxu0 0.0
      %703 = vmatprep.subr.mxu0 0.0
      %704 = vmatpush1.msra.mxu0 0.0
      %705 = vmatprep.subr.mxu0 0.0
      %706 = vmatpush1.msra.mxu0 0.0
      %707 = vmatprep.subr.mxu0 0.0
      %708 = vmatpush1.msra.mxu0 0.0
      %709 = vmatprep.subr.mxu0 0.0
      %710 = vmatpush1.msra.mxu0 0.0
      %711 = vmatprep.subr.mxu0 0.0
      %712 = vmatpush1.msra.mxu0 0.0
      %713 = vmatprep.subr.mxu0 0.0
      %714 = vmatpush1.msra.mxu0 0.0
      %715 = vmatprep.subr.mxu0 0.0
      %716 = vmatpush1.msra.mxu0 0.0
      %717 = vmatprep.subr.mxu0 0.0
      %718 = vmatpush1.msra.mxu0 0.0
      %719 = vmatprep.subr.mxu0 0.0
      %720 = vmatpush1.msra.mxu0 0.0
      %721 = vmatprep.subr.mxu0 0.0
      %722 = vmatpush1.msra.mxu0 0.0
      %723 = vmatprep.subr.mxu0 0.0
      %724 = vmatpush1.msra.mxu0 0.0
      %725 = vmatprep.subr.mxu0 0.0
      %726 = vmatpush1.msra.mxu0 0.0
      %727 = vmatprep.subr.mxu0 0.0
      %728 = vmatpush1.msra.mxu0 0.0
      %729 = vmatprep.mubr.f32.mxu0 0.0
      %730 = vmatmul.mubr.f32.gmra.mrb[0].mxu0 %v660
      %v731 = vpop.f32.mrb[0].mxu0
      %v732 = vadd.f32 0.0, %v731
      %v733 = vpop.f32.mrb[0].mxu0
      %734 = vdwg.mxu0
      %v736 = vsel %vm474, %v652, 0
      %738 = vmatprep.subr.mxu0 0.0
      %739 = vmatpush1.msra.mxu0 %v649
      %740 = vmatprep.subr.mxu0 0.0
      %741 = vmatpush1.msra.mxu0 %v650
      %742 = vmatprep.subr.mxu0 0.0
      %743 = vmatpush1.msra.mxu0 %v651
      %744 = vmatprep.subr.mxu0 0.0
      %745 = vmatpush1.msra.mxu0 %v736
      %746 = vmatprep.subr.mxu0 0.0
      %747 = vmatpush1.msra.mxu0 0.0
      %748 = vmatprep.subr.mxu0 0.0
      %749 = vmatpush1.msra.mxu0 0.0
      %750 = vmatprep.subr.mxu0 0.0
      %751 = vmatpush1.msra.mxu0 0.0
      %752 = vmatprep.subr.mxu0 0.0
      %753 = vmatpush1.msra.mxu0 0.0
      %754 = vmatprep.subr.mxu0 0.0
      %755 = vmatpush1.msra.mxu0 0.0
      %756 = vmatprep.subr.mxu0 0.0
      %757 = vmatpush1.msra.mxu0 0.0
      %758 = vmatprep.subr.mxu0 0.0
      %759 = vmatpush1.msra.mxu0 0.0
      %760 = vmatprep.subr.mxu0 0.0
      %761 = vmatpush1.msra.mxu0 0.0
      %762 = vmatprep.subr.mxu0 0.0
      %763 = vmatpush1.msra.mxu0 0.0
      %764 = vmatprep.subr.mxu0 0.0
      %765 = vmatpush1.msra.mxu0 0.0
      %766 = vmatprep.subr.mxu0 0.0
      %767 = vmatpush1.msra.mxu0 0.0
      %768 = vmatprep.subr.mxu0 0.0
      %769 = vmatpush1.msra.mxu0 0.0
      %770 = vmatprep.subr.mxu0 0.0
      %771 = vmatpush1.msra.mxu0 0.0
      %772 = vmatprep.subr.mxu0 0.0
      %773 = vmatpush1.msra.mxu0 0.0
      %774 = vmatprep.subr.mxu0 0.0
      %775 = vmatpush1.msra.mxu0 0.0
      %776 = vmatprep.subr.mxu0 0.0
      %777 = vmatpush1.msra.mxu0 0.0
      %778 = vmatprep.subr.mxu0 0.0
      %779 = vmatpush1.msra.mxu0 0.0
      %780 = vmatprep.subr.mxu0 0.0
      %781 = vmatpush1.msra.mxu0 0.0
      %782 = vmatprep.subr.mxu0 0.0
      %783 = vmatpush1.msra.mxu0 0.0
      %784 = vmatprep.subr.mxu0 0.0
      %785 = vmatpush1.msra.mxu0 0.0
      %786 = vmatprep.subr.mxu0 0.0
      %787 = vmatpush1.msra.mxu0 0.0
      %788 = vmatprep.subr.mxu0 0.0
      %789 = vmatpush1.msra.mxu0 0.0
      %790 = vmatprep.subr.mxu0 0.0
      %791 = vmatpush1.msra.mxu0 0.0
      %792 = vmatprep.subr.mxu0 0.0
      %793 = vmatpush1.msra.mxu0 0.0
      %794 = vmatprep.subr.mxu0 0.0
      %795 = vmatpush1.msra.mxu0 0.0
      %796 = vmatprep.subr.mxu0 0.0
      %797 = vmatpush1.msra.mxu0 0.0
      %798 = vmatprep.subr.mxu0 0.0
      %799 = vmatpush1.msra.mxu0 0.0
      %800 = vmatprep.subr.mxu0 0.0
      %801 = vmatpush1.msra.mxu0 0.0
      %802 = vmatprep.mubr.f32.mxu0 0.0
      %803 = vmatmul.mubr.f32.gmra.mrb[0].mxu0 %v472
      %v804 = vpop.f32.mrb[0].mxu0
      %v805 = vadd.f32 %v732, %v804
      %v806 = vpop.f32.mrb[0].mxu0
      %807 = vdwg.mxu0
      %v808 = vld [vmem:[%s12] sm:$0x1]
      %v810 = vlaneseq
      %v811 = vshrl.u32 %v810, 7
      %v812 = vsub.s32 0, %v811
      %v813 = vrot.slane %v808, %v812
      %v815 = vadd.f32 %v805, %v813
      %v816 = vtanh.pop %v815
      %v817 = vmul.f32 %v816, 0.5
      %v818 = vadd.f32 %v817, 0.5
      %v819 = vmul.f32 %v818, %v83
      %821 = vrot.lane.b32.xlu0 %v816, 64
      %v822 = vpop.permute.xlu0 %821
      %v824 = vmul.f32 %v818, %v822
      %826 = vrot.lane.b32.xlu0 %v824, 32
      %v827 = vpop.permute.xlu0 %826
      %v829 = vadd.f32 %v819, %v827
      %v830 = vtanh.pop %v829
      %832 = vrot.lane.b32.xlu0 %v830, 64
      %v833 = vpop.permute.xlu0 %832
      %v835 = vmul.f32 %v818, %v833
      %p836 = scmp.ge.s32.totalorder %s84, 1
      %s837 = scalar_select %p836, 1, 0
      %v838 = vstv %s837
      %vm839 = vcmp.eq.s32.totalorder %v838, 1
      %v840 = vsel %vm839, %v461, 0.0
      %v841 = vsel %vm839, %v455, 0.0
      %p842 = scmp.ge.s32.totalorder %s84, 2
      %s843 = scalar_select %p842, 1, 0
      %v844 = vstv %s843
      %vm845 = vcmp.eq.s32.totalorder %v844, 1
      %v846 = vsel %vm845, %v648, 0.0
      %v847 = vsel %vm845, %v642, 0.0
      %p848 = scmp.ge.s32.totalorder %s84, 3
      %s849 = scalar_select %p848, 1, 0
      %v850 = vstv %s849
      %vm851 = vcmp.eq.s32.totalorder %v850, 1
      %v852 = vsel %vm851, %v835, 0.0
      %v853 = vsel %vm851, %v829, 0.0
      %s854 = sadd.s32 %s84, 4294967293
      %p855 = scmp.gt.s32.totalorder %s854, 0
      %s856 = scalar_select %p855, %s854, 0
      %858 = vrot.lane.b32.xlu0 %v852, 32
      %v859 = vpop.permute.xlu0 %858
      %s861 = smul.u32 %s856, 2
      %s862 = scalar_lea.vmem %s13, %s861
      %vm863 = vcmask 222208
      %864 = vst.msk [vmem:[%s862] sm:$0x3] %vm863, %v859
      %s865 = sadd.s32 %s84, 1
      %p866 = scmp.lt.s32.totalorder %s865, 63
      %s867 = scalar_select %p866, %s865, 63
      %s868 = smul.u32 %s867, 2
      %s869 = scalar_lea.vmem %s0, %s868
      %v870 = vld [vmem:[%s869] sm:$0x3]
      %v871 = vld [vmem:[#allocation2] sm:$0x7f]
      %v872 = vld [vmem:[#allocation4] sm:$0xff]
      %v873 = vld [vmem:[#allocation4 + $0x8] sm:$0x3f]
      %875 = vrot.lane.b32.xlu0 %v278, 32
      %v876 = vpop.permute.xlu0 %875
      %v877 = vsel %vm96, %v876, 0
      %v880 = vsel %vm99, %v873, 0
      %882 = vmatprep.subr.mxu0 0.0
      %883 = vmatpush1.msra.mxu0 %v872
      %884 = vmatprep.subr.mxu0 0.0
      %885 = vmatpush1.msra.mxu0 %v880
      %886 = vmatprep.subr.mxu0 0.0
      %887 = vmatpush1.msra.mxu0 0.0
      %888 = vmatprep.subr.mxu0 0.0
      %889 = vmatpush1.msra.mxu0 0.0
      %890 = vmatprep.subr.mxu0 0.0
      %891 = vmatpush1.msra.mxu0 0.0
      %892 = vmatprep.subr.mxu0 0.0
      %893 = vmatpush1.msra.mxu0 0.0
      %894 = vmatprep.subr.mxu0 0.0
      %895 = vmatpush1.msra.mxu0 0.0
      %896 = vmatprep.subr.mxu0 0.0
      %897 = vmatpush1.msra.mxu0 0.0
      %898 = vmatprep.subr.mxu0 0.0
      %899 = vmatpush1.msra.mxu0 0.0
      %900 = vmatprep.subr.mxu0 0.0
      %901 = vmatpush1.msra.mxu0 0.0
      %902 = vmatprep.subr.mxu0 0.0
      %903 = vmatpush1.msra.mxu0 0.0
      %904 = vmatprep.subr.mxu0 0.0
      %905 = vmatpush1.msra.mxu0 0.0
      %906 = vmatprep.subr.mxu0 0.0
      %907 = vmatpush1.msra.mxu0 0.0
      %908 = vmatprep.subr.mxu0 0.0
      %909 = vmatpush1.msra.mxu0 0.0
      %910 = vmatprep.subr.mxu0 0.0
      %911 = vmatpush1.msra.mxu0 0.0
      %912 = vmatprep.subr.mxu0 0.0
      %913 = vmatpush1.msra.mxu0 0.0
      %914 = vmatprep.subr.mxu0 0.0
      %915 = vmatpush1.msra.mxu0 0.0
      %916 = vmatprep.subr.mxu0 0.0
      %917 = vmatpush1.msra.mxu0 0.0
      %918 = vmatprep.subr.mxu0 0.0
      %919 = vmatpush1.msra.mxu0 0.0
      %920 = vmatprep.subr.mxu0 0.0
      %921 = vmatpush1.msra.mxu0 0.0
      %922 = vmatprep.subr.mxu0 0.0
      %923 = vmatpush1.msra.mxu0 0.0
      %924 = vmatprep.subr.mxu0 0.0
      %925 = vmatpush1.msra.mxu0 0.0
      %926 = vmatprep.subr.mxu0 0.0
      %927 = vmatpush1.msra.mxu0 0.0
      %928 = vmatprep.subr.mxu0 0.0
      %929 = vmatpush1.msra.mxu0 0.0
      %930 = vmatprep.subr.mxu0 0.0
      %931 = vmatpush1.msra.mxu0 0.0
      %932 = vmatprep.subr.mxu0 0.0
      %933 = vmatpush1.msra.mxu0 0.0
      %934 = vmatprep.subr.mxu0 0.0
      %935 = vmatpush1.msra.mxu0 0.0
      %936 = vmatprep.subr.mxu0 0.0
      %937 = vmatpush1.msra.mxu0 0.0
      %938 = vmatprep.subr.mxu0 0.0
      %939 = vmatpush1.msra.mxu0 0.0
      %940 = vmatprep.subr.mxu0 0.0
      %941 = vmatpush1.msra.mxu0 0.0
      %942 = vmatprep.subr.mxu0 0.0
      %943 = vmatpush1.msra.mxu0 0.0
      %944 = vmatprep.subr.mxu0 0.0
      %945 = vmatpush1.msra.mxu0 0.0
      %946 = vmatprep.mubr.f32.mxu0 0.0
      %947 = vmatmul.mubr.f32.gmra.mrb[0].mxu0 %v877
      %v948 = vpop.f32.mrb[0].mxu0
      %v949 = vadd.f32 0.0, %v948
      %v950 = vpop.f32.mrb[0].mxu0
      %951 = vdwg.mxu0
      %v953 = vsel %vm173, %v870, 0
      %v956 = vsel %vm177, %v871, 0
      %958 = vmatprep.subr.mxu0 0.0
      %959 = vmatpush1.msra.mxu0 %v956
      %960 = vmatprep.subr.mxu0 0.0
      %961 = vmatpush1.msra.mxu0 0.0
      %962 = vmatprep.subr.mxu0 0.0
      %963 = vmatpush1.msra.mxu0 0.0
      %964 = vmatprep.subr.mxu0 0.0
      %965 = vmatpush1.msra.mxu0 0.0
      %966 = vmatprep.subr.mxu0 0.0
      %967 = vmatpush1.msra.mxu0 0.0
      %968 = vmatprep.subr.mxu0 0.0
      %969 = vmatpush1.msra.mxu0 0.0
      %970 = vmatprep.subr.mxu0 0.0
      %971 = vmatpush1.msra.mxu0 0.0
      %972 = vmatprep.subr.mxu0 0.0
      %973 = vmatpush1.msra.mxu0 0.0
      %974 = vmatprep.subr.mxu0 0.0
      %975 = vmatpush1.msra.mxu0 0.0
      %976 = vmatprep.subr.mxu0 0.0
      %977 = vmatpush1.msra.mxu0 0.0
      %978 = vmatprep.subr.mxu0 0.0
      %979 = vmatpush1.msra.mxu0 0.0
      %980 = vmatprep.subr.mxu0 0.0
      %981 = vmatpush1.msra.mxu0 0.0
      %982 = vmatprep.subr.mxu0 0.0
      %983 = vmatpush1.msra.mxu0 0.0
      %984 = vmatprep.subr.mxu0 0.0
      %985 = vmatpush1.msra.mxu0 0.0
      %986 = vmatprep.subr.mxu0 0.0
      %987 = vmatpush1.msra.mxu0 0.0
      %988 = vmatprep.subr.mxu0 0.0
      %989 = vmatpush1.msra.mxu0 0.0
      %990 = vmatprep.subr.mxu0 0.0
      %991 = vmatpush1.msra.mxu0 0.0
      %992 = vmatprep.subr.mxu0 0.0
      %993 = vmatpush1.msra.mxu0 0.0
      %994 = vmatprep.subr.mxu0 0.0
      %995 = vmatpush1.msra.mxu0 0.0
      %996 = vmatprep.subr.mxu0 0.0
      %997 = vmatpush1.msra.mxu0 0.0
      %998 = vmatprep.subr.mxu0 0.0
      %999 = vmatpush1.msra.mxu0 0.0
      %1000 = vmatprep.subr.mxu0 0.0
      %1001 = vmatpush1.msra.mxu0 0.0
      %1002 = vmatprep.subr.mxu0 0.0
      %1003 = vmatpush1.msra.mxu0 0.0
      %1004 = vmatprep.subr.mxu0 0.0
      %1005 = vmatpush1.msra.mxu0 0.0
      %1006 = vmatprep.subr.mxu0 0.0
      %1007 = vmatpush1.msra.mxu0 0.0
      %1008 = vmatprep.subr.mxu0 0.0
      %1009 = vmatpush1.msra.mxu0 0.0
      %1010 = vmatprep.subr.mxu0 0.0
      %1011 = vmatpush1.msra.mxu0 0.0
      %1012 = vmatprep.subr.mxu0 0.0
      %1013 = vmatpush1.msra.mxu0 0.0
      %1014 = vmatprep.subr.mxu0 0.0
      %1015 = vmatpush1.msra.mxu0 0.0
      %1016 = vmatprep.subr.mxu0 0.0
      %1017 = vmatpush1.msra.mxu0 0.0
      %1018 = vmatprep.subr.mxu0 0.0
      %1019 = vmatpush1.msra.mxu0 0.0
      %1020 = vmatprep.subr.mxu0 0.0
      %1021 = vmatpush1.msra.mxu0 0.0
      %1022 = vmatprep.mubr.f32.mxu0 0.0
      %1023 = vmatmul.mubr.f32.gmra.mrb[0].mxu0 %v953
      %v1024 = vpop.f32.mrb[0].mxu0
      %v1025 = vadd.f32 %v949, %v1024
      %v1026 = vpop.f32.mrb[0].mxu0
      %1027 = vdwg.mxu0
      %v1028 = vld [vmem:[%s3] sm:$0x1]
      %v1030 = vlaneseq
      %v1031 = vshrl.u32 %v1030, 7
      %v1032 = vsub.s32 0, %v1031
      %v1033 = vrot.slane %v1028, %v1032
      %v1035 = vadd.f32 %v1025, %v1033
      %v1036 = vtanh.pop %v1035
      %v1037 = vmul.f32 %v1036, 0.5
      %v1038 = vadd.f32 %v1037, 0.5
      %v1039 = vmul.f32 %v1038, %v272
      %1041 = vrot.lane.b32.xlu0 %v1036, 64
      %v1042 = vpop.permute.xlu0 %1041
      %v1044 = vmul.f32 %v1038, %v1042
      %1046 = vrot.lane.b32.xlu0 %v1044, 32
      %v1047 = vpop.permute.xlu0 %1046
      %v1049 = vadd.f32 %v1039, %v1047
      %v1050 = vtanh.pop %v1049
      %1052 = vrot.lane.b32.xlu0 %v1050, 64
      %v1053 = vpop.permute.xlu0 %1052
      %v1055 = vmul.f32 %v1038, %v1053
      %v1056 = vld [vmem:[%s4] sm:$0xff]
      %v1057 = vld [vmem:[%s4 + $0x8] sm:$0x3f]
      %v1058 = vld [vmem:[%s5] sm:$0xff]
      %v1059 = vld [vmem:[%s5 + $0x8] sm:$0x3f]
      %1061 = vrot.lane.b32.xlu0 %v840, 32
      %v1062 = vpop.permute.xlu0 %1061
      %v1063 = vsel %vm96, %v1062, 0
      %v1066 = vsel %vm99, %v1059, 0
      %1068 = vmatprep.subr.mxu0 0.0
      %1069 = vmatpush1.msra.mxu0 %v1058
      %1070 = vmatprep.subr.mxu0 0.0
      %1071 = vmatpush1.msra.mxu0 %v1066
      %1072 = vmatprep.subr.mxu0 0.0
      %1073 = vmatpush1.msra.mxu0 0.0
      %1074 = vmatprep.subr.mxu0 0.0
      %1075 = vmatpush1.msra.mxu0 0.0
      %1076 = vmatprep.subr.mxu0 0.0
      %1077 = vmatpush1.msra.mxu0 0.0
      %1078 = vmatprep.subr.mxu0 0.0
      %1079 = vmatpush1.msra.mxu0 0.0
      %1080 = vmatprep.subr.mxu0 0.0
      %1081 = vmatpush1.msra.mxu0 0.0
      %1082 = vmatprep.subr.mxu0 0.0
      %1083 = vmatpush1.msra.mxu0 0.0
      %1084 = vmatprep.subr.mxu0 0.0
      %1085 = vmatpush1.msra.mxu0 0.0
      %1086 = vmatprep.subr.mxu0 0.0
      %1087 = vmatpush1.msra.mxu0 0.0
      %1088 = vmatprep.subr.mxu0 0.0
      %1089 = vmatpush1.msra.mxu0 0.0
      %1090 = vmatprep.subr.mxu0 0.0
      %1091 = vmatpush1.msra.mxu0 0.0
      %1092 = vmatprep.subr.mxu0 0.0
      %1093 = vmatpush1.msra.mxu0 0.0
      %1094 = vmatprep.subr.mxu0 0.0
      %1095 = vmatpush1.msra.mxu0 0.0
      %1096 = vmatprep.subr.mxu0 0.0
      %1097 = vmatpush1.msra.mxu0 0.0
      %1098 = vmatprep.subr.mxu0 0.0
      %1099 = vmatpush1.msra.mxu0 0.0
      %1100 = vmatprep.subr.mxu0 0.0
      %1101 = vmatpush1.msra.mxu0 0.0
      %1102 = vmatprep.subr.mxu0 0.0
      %1103 = vmatpush1.msra.mxu0 0.0
      %1104 = vmatprep.subr.mxu0 0.0
      %1105 = vmatpush1.msra.mxu0 0.0
      %1106 = vmatprep.subr.mxu0 0.0
      %1107 = vmatpush1.msra.mxu0 0.0
      %1108 = vmatprep.subr.mxu0 0.0
      %1109 = vmatpush1.msra.mxu0 0.0
      %1110 = vmatprep.subr.mxu0 0.0
      %1111 = vmatpush1.msra.mxu0 0.0
      %1112 = vmatprep.subr.mxu0 0.0
      %1113 = vmatpush1.msra.mxu0 0.0
      %1114 = vmatprep.subr.mxu0 0.0
      %1115 = vmatpush1.msra.mxu0 0.0
      %1116 = vmatprep.subr.mxu0 0.0
      %1117 = vmatpush1.msra.mxu0 0.0
      %1118 = vmatprep.subr.mxu0 0.0
      %1119 = vmatpush1.msra.mxu0 0.0
      %1120 = vmatprep.subr.mxu0 0.0
      %1121 = vmatpush1.msra.mxu0 0.0
      %1122 = vmatprep.subr.mxu0 0.0
      %1123 = vmatpush1.msra.mxu0 0.0
      %1124 = vmatprep.subr.mxu0 0.0
      %1125 = vmatpush1.msra.mxu0 0.0
      %1126 = vmatprep.subr.mxu0 0.0
      %1127 = vmatpush1.msra.mxu0 0.0
      %1128 = vmatprep.subr.mxu0 0.0
      %1129 = vmatpush1.msra.mxu0 0.0
      %1130 = vmatprep.subr.mxu0 0.0
      %1131 = vmatpush1.msra.mxu0 0.0
      %1132 = vmatprep.mubr.f32.mxu0 0.0
      %1133 = vmatmul.mubr.f32.gmra.mrb[0].mxu0 %v1063
      %v1134 = vpop.f32.mrb[0].mxu0
      %v1135 = vadd.f32 0.0, %v1134
      %v1136 = vpop.f32.mrb[0].mxu0
      %1137 = vdwg.mxu0
      %v1139 = vsel %vm99, %v1057, 0
      %1141 = vmatprep.subr.mxu0 0.0
      %1142 = vmatpush1.msra.mxu0 %v1056
      %1143 = vmatprep.subr.mxu0 0.0
      %1144 = vmatpush1.msra.mxu0 %v1139
      %1145 = vmatprep.subr.mxu0 0.0
      %1146 = vmatpush1.msra.mxu0 0.0
      %1147 = vmatprep.subr.mxu0 0.0
      %1148 = vmatpush1.msra.mxu0 0.0
      %1149 = vmatprep.subr.mxu0 0.0
      %1150 = vmatpush1.msra.mxu0 0.0
      %1151 = vmatprep.subr.mxu0 0.0
      %1152 = vmatpush1.msra.mxu0 0.0
      %1153 = vmatprep.subr.mxu0 0.0
      %1154 = vmatpush1.msra.mxu0 0.0
      %1155 = vmatprep.subr.mxu0 0.0
      %1156 = vmatpush1.msra.mxu0 0.0
      %1157 = vmatprep.subr.mxu0 0.0
      %1158 = vmatpush1.msra.mxu0 0.0
      %1159 = vmatprep.subr.mxu0 0.0
      %1160 = vmatpush1.msra.mxu0 0.0
      %1161 = vmatprep.subr.mxu0 0.0
      %1162 = vmatpush1.msra.mxu0 0.0
      %1163 = vmatprep.subr.mxu0 0.0
      %1164 = vmatpush1.msra.mxu0 0.0
      %1165 = vmatprep.subr.mxu0 0.0
      %1166 = vmatpush1.msra.mxu0 0.0
      %1167 = vmatprep.subr.mxu0 0.0
      %1168 = vmatpush1.msra.mxu0 0.0
      %1169 = vmatprep.subr.mxu0 0.0
      %1170 = vmatpush1.msra.mxu0 0.0
      %1171 = vmatprep.subr.mxu0 0.0
      %1172 = vmatpush1.msra.mxu0 0.0
      %1173 = vmatprep.subr.mxu0 0.0
      %1174 = vmatpush1.msra.mxu0 0.0
      %1175 = vmatprep.subr.mxu0 0.0
      %1176 = vmatpush1.msra.mxu0 0.0
      %1177 = vmatprep.subr.mxu0 0.0
      %1178 = vmatpush1.msra.mxu0 0.0
      %1179 = vmatprep.subr.mxu0 0.0
      %1180 = vmatpush1.msra.mxu0 0.0
      %1181 = vmatprep.subr.mxu0 0.0
      %1182 = vmatpush1.msra.mxu0 0.0
      %1183 = vmatprep.subr.mxu0 0.0
      %1184 = vmatpush1.msra.mxu0 0.0
      %1185 = vmatprep.subr.mxu0 0.0
      %1186 = vmatpush1.msra.mxu0 0.0
      %1187 = vmatprep.subr.mxu0 0.0
      %1188 = vmatpush1.msra.mxu0 0.0
      %1189 = vmatprep.subr.mxu0 0.0
      %1190 = vmatpush1.msra.mxu0 0.0
      %1191 = vmatprep.subr.mxu0 0.0
      %1192 = vmatpush1.msra.mxu0 0.0
      %1193 = vmatprep.subr.mxu0 0.0
      %1194 = vmatpush1.msra.mxu0 0.0
      %1195 = vmatprep.subr.mxu0 0.0
      %1196 = vmatpush1.msra.mxu0 0.0
      %1197 = vmatprep.subr.mxu0 0.0
      %1198 = vmatpush1.msra.mxu0 0.0
      %1199 = vmatprep.subr.mxu0 0.0
      %1200 = vmatpush1.msra.mxu0 0.0
      %1201 = vmatprep.subr.mxu0 0.0
      %1202 = vmatpush1.msra.mxu0 0.0
      %1203 = vmatprep.subr.mxu0 0.0
      %1204 = vmatpush1.msra.mxu0 0.0
      %1205 = vmatprep.mubr.f32.mxu0 0.0
      %1206 = vmatmul.mubr.f32.gmra.mrb[0].mxu0 %v877
      %v1207 = vpop.f32.mrb[0].mxu0
      %v1208 = vadd.f32 %v1135, %v1207
      %v1209 = vpop.f32.mrb[0].mxu0
      %1210 = vdwg.mxu0
      %v1211 = vld [vmem:[%s6] sm:$0x1]
      %v1213 = vlaneseq
      %v1214 = vshrl.u32 %v1213, 7
      %v1215 = vsub.s32 0, %v1214
      %v1216 = vrot.slane %v1211, %v1215
      %v1218 = vadd.f32 %v1208, %v1216
      %v1219 = vtanh.pop %v1218
      %v1220 = vmul.f32 %v1219, 0.5
      %v1221 = vadd.f32 %v1220, 0.5
      %v1222 = vmul.f32 %v1221, %v841
      %1224 = vrot.lane.b32.xlu0 %v1219, 64
      %v1225 = vpop.permute.xlu0 %1224
      %v1227 = vmul.f32 %v1221, %v1225
      %1229 = vrot.lane.b32.xlu0 %v1227, 32
      %v1230 = vpop.permute.xlu0 %1229
      %v1232 = vadd.f32 %v1222, %v1230
      %v1233 = vtanh.pop %v1232
      %1235 = vrot.lane.b32.xlu0 %v1233, 64
      %v1236 = vpop.permute.xlu0 %1235
      %v1238 = vmul.f32 %v1221, %v1236
      %v1239 = vld [vmem:[%s7] sm:$0xff]
      %v1240 = vld [vmem:[%s7 + $0x8] sm:$0x3f]
      %v1241 = vld [vmem:[%s8] sm:$0xff]
      %v1242 = vld [vmem:[%s8 + $0x8] sm:$0xff]
      %v1243 = vld [vmem:[%s8 + $0x10] sm:$0xff]
      %v1244 = vld [vmem:[%s8 + $0x18] sm:$0xf]
      %1246 = vrot.lane.b32.xlu0 %v846, 32
      %v1247 = vpop.permute.xlu0 %1246
      %v1248 = vsel %vm471, %v1247, 0
      %v1251 = vsel %vm474, %v1244, 0
      %1253 = vmatprep.subr.mxu0 0.0
      %1254 = vmatpush1.msra.mxu0 %v1241
      %1255 = vmatprep.subr.mxu0 0.0
      %1256 = vmatpush1.msra.mxu0 %v1242
      %1257 = vmatprep.subr.mxu0 0.0
      %1258 = vmatpush1.msra.mxu0 %v1243
      %1259 = vmatprep.subr.mxu0 0.0
      %1260 = vmatpush1.msra.mxu0 %v1251
      %1261 = vmatprep.subr.mxu0 0.0
      %1262 = vmatpush1.msra.mxu0 0.0
      %1263 = vmatprep.subr.mxu0 0.0
      %1264 = vmatpush1.msra.mxu0 0.0
      %1265 = vmatprep.subr.mxu0 0.0
      %1266 = vmatpush1.msra.mxu0 0.0
      %1267 = vmatprep.subr.mxu0 0.0
      %1268 = vmatpush1.msra.mxu0 0.0
      %1269 = vmatprep.subr.mxu0 0.0
      %1270 = vmatpush1.msra.mxu0 0.0
      %1271 = vmatprep.subr.mxu0 0.0
      %1272 = vmatpush1.msra.mxu0 0.0
      %1273 = vmatprep.subr.mxu0 0.0
      %1274 = vmatpush1.msra.mxu0 0.0
      %1275 = vmatprep.subr.mxu0 0.0
      %1276 = vmatpush1.msra.mxu0 0.0
      %1277 = vmatprep.subr.mxu0 0.0
      %1278 = vmatpush1.msra.mxu0 0.0
      %1279 = vmatprep.subr.mxu0 0.0
      %1280 = vmatpush1.msra.mxu0 0.0
      %1281 = vmatprep.subr.mxu0 0.0
      %1282 = vmatpush1.msra.mxu0 0.0
      %1283 = vmatprep.subr.mxu0 0.0
      %1284 = vmatpush1.msra.mxu0 0.0
      %1285 = vmatprep.subr.mxu0 0.0
      %1286 = vmatpush1.msra.mxu0 0.0
      %1287 = vmatprep.subr.mxu0 0.0
      %1288 = vmatpush1.msra.mxu0 0.0
      %1289 = vmatprep.subr.mxu0 0.0
      %1290 = vmatpush1.msra.mxu0 0.0
      %1291 = vmatprep.subr.mxu0 0.0
      %1292 = vmatpush1.msra.mxu0 0.0
      %1293 = vmatprep.subr.mxu0 0.0
      %1294 = vmatpush1.msra.mxu0 0.0
      %1295 = vmatprep.subr.mxu0 0.0
      %1296 = vmatpush1.msra.mxu0 0.0
      %1297 = vmatprep.subr.mxu0 0.0
      %1298 = vmatpush1.msra.mxu0 0.0
      %1299 = vmatprep.subr.mxu0 0.0
      %1300 = vmatpush1.msra.mxu0 0.0
      %1301 = vmatprep.subr.mxu0 0.0
      %1302 = vmatpush1.msra.mxu0 0.0
      %1303 = vmatprep.subr.mxu0 0.0
      %1304 = vmatpush1.msra.mxu0 0.0
      %1305 = vmatprep.subr.mxu0 0.0
      %1306 = vmatpush1.msra.mxu0 0.0
      %1307 = vmatprep.subr.mxu0 0.0
      %1308 = vmatpush1.msra.mxu0 0.0
      %1309 = vmatprep.subr.mxu0 0.0
      %1310 = vmatpush1.msra.mxu0 0.0
      %1311 = vmatprep.subr.mxu0 0.0
      %1312 = vmatpush1.msra.mxu0 0.0
      %1313 = vmatprep.subr.mxu0 0.0
      %1314 = vmatpush1.msra.mxu0 0.0
      %1315 = vmatprep.subr.mxu0 0.0
      %1316 = vmatpush1.msra.mxu0 0.0
      %1317 = vmatprep.mubr.f32.mxu0 0.0
      %1318 = vmatmul.mubr.f32.gmra.mrb[0].mxu0 %v1248
      %v1319 = vpop.f32.mrb[0].mxu0
      %v1320 = vadd.f32 0.0, %v1319
      %v1321 = vpop.f32.mrb[0].mxu0
      %1322 = vdwg.mxu0
      %v1324 = vsel %vm99, %v1240, 0
      %1326 = vmatprep.subr.mxu0 0.0
      %1327 = vmatpush1.msra.mxu0 %v1239
      %1328 = vmatprep.subr.mxu0 0.0
      %1329 = vmatpush1.msra.mxu0 %v1324
      %1330 = vmatprep.subr.mxu0 0.0
      %1331 = vmatpush1.msra.mxu0 0.0
      %1332 = vmatprep.subr.mxu0 0.0
      %1333 = vmatpush1.msra.mxu0 0.0
      %1334 = vmatprep.subr.mxu0 0.0
      %1335 = vmatpush1.msra.mxu0 0.0
      %1336 = vmatprep.subr.mxu0 0.0
      %1337 = vmatpush1.msra.mxu0 0.0
      %1338 = vmatprep.subr.mxu0 0.0
      %1339 = vmatpush1.msra.mxu0 0.0
      %1340 = vmatprep.subr.mxu0 0.0
      %1341 = vmatpush1.msra.mxu0 0.0
      %1342 = vmatprep.subr.mxu0 0.0
      %1343 = vmatpush1.msra.mxu0 0.0
      %1344 = vmatprep.subr.mxu0 0.0
      %1345 = vmatpush1.msra.mxu0 0.0
      %1346 = vmatprep.subr.mxu0 0.0
      %1347 = vmatpush1.msra.mxu0 0.0
      %1348 = vmatprep.subr.mxu0 0.0
      %1349 = vmatpush1.msra.mxu0 0.0
      %1350 = vmatprep.subr.mxu0 0.0
      %1351 = vmatpush1.msra.mxu0 0.0
      %1352 = vmatprep.subr.mxu0 0.0
      %1353 = vmatpush1.msra.mxu0 0.0
      %1354 = vmatprep.subr.mxu0 0.0
      %1355 = vmatpush1.msra.mxu0 0.0
      %1356 = vmatprep.subr.mxu0 0.0
      %1357 = vmatpush1.msra.mxu0 0.0
      %1358 = vmatprep.subr.mxu0 0.0
      %1359 = vmatpush1.msra.mxu0 0.0
      %1360 = vmatprep.subr.mxu0 0.0
      %1361 = vmatpush1.msra.mxu0 0.0
      %1362 = vmatprep.subr.mxu0 0.0
      %1363 = vmatpush1.msra.mxu0 0.0
      %1364 = vmatprep.subr.mxu0 0.0
      %1365 = vmatpush1.msra.mxu0 0.0
      %1366 = vmatprep.subr.mxu0 0.0
      %1367 = vmatpush1.msra.mxu0 0.0
      %1368 = vmatprep.subr.mxu0 0.0
      %1369 = vmatpush1.msra.mxu0 0.0
      %1370 = vmatprep.subr.mxu0 0.0
      %1371 = vmatpush1.msra.mxu0 0.0
      %1372 = vmatprep.subr.mxu0 0.0
      %1373 = vmatpush1.msra.mxu0 0.0
      %1374 = vmatprep.subr.mxu0 0.0
      %1375 = vmatpush1.msra.mxu0 0.0
      %1376 = vmatprep.subr.mxu0 0.0
      %1377 = vmatpush1.msra.mxu0 0.0
      %1378 = vmatprep.subr.mxu0 0.0
      %1379 = vmatpush1.msra.mxu0 0.0
      %1380 = vmatprep.subr.mxu0 0.0
      %1381 = vmatpush1.msra.mxu0 0.0
      %1382 = vmatprep.subr.mxu0 0.0
      %1383 = vmatpush1.msra.mxu0 0.0
      %1384 = vmatprep.subr.mxu0 0.0
      %1385 = vmatpush1.msra.mxu0 0.0
      %1386 = vmatprep.subr.mxu0 0.0
      %1387 = vmatpush1.msra.mxu0 0.0
      %1388 = vmatprep.subr.mxu0 0.0
      %1389 = vmatpush1.msra.mxu0 0.0
      %1390 = vmatprep.mubr.f32.mxu0 0.0
      %1391 = vmatmul.mubr.f32.gmra.mrb[0].mxu0 %v1063
      %v1392 = vpop.f32.mrb[0].mxu0
      %v1393 = vadd.f32 %v1320, %v1392
      %v1394 = vpop.f32.mrb[0].mxu0
      %1395 = vdwg.mxu0
      %v1396 = vld [vmem:[%s9] sm:$0x1]
      %v1398 = vlaneseq
      %v1399 = vshrl.u32 %v1398, 7
      %v1400 = vsub.s32 0, %v1399
      %v1401 = vrot.slane %v1396, %v1400
      %v1403 = vadd.f32 %v1393, %v1401
      %v1404 = vtanh.pop %v1403
      %v1405 = vmul.f32 %v1404, 0.5
      %v1406 = vadd.f32 %v1405, 0.5
      %v1407 = vmul.f32 %v1406, %v847
      %1409 = vrot.lane.b32.xlu0 %v1404, 64
      %v1410 = vpop.permute.xlu0 %1409
      %v1412 = vmul.f32 %v1406, %v1410
      %1414 = vrot.lane.b32.xlu0 %v1412, 32
      %v1415 = vpop.permute.xlu0 %1414
      %v1417 = vadd.f32 %v1407, %v1415
      %v1418 = vtanh.pop %v1417
      %1420 = vrot.lane.b32.xlu0 %v1418, 64
      %v1421 = vpop.permute.xlu0 %1420
      %v1423 = vmul.f32 %v1406, %v1421
      %v1424 = vld [vmem:[%s10] sm:$0xff]
      %v1425 = vld [vmem:[%s10 + $0x8] sm:$0xff]
      %v1426 = vld [vmem:[%s10 + $0x10] sm:$0xff]
      %v1427 = vld [vmem:[%s10 + $0x18] sm:$0xf]
      %v1428 = vld [vmem:[%s11] sm:$0xff]
      %v1429 = vld [vmem:[%s11 + $0x8] sm:$0xff]
      %v1430 = vld [vmem:[%s11 + $0x10] sm:$0xff]
      %v1431 = vld [vmem:[%s11 + $0x18] sm:$0xf]
      %v1432 = vsel %vm471, %v859, 0
      %v1435 = vsel %vm474, %v1431, 0
      %1437 = vmatprep.subr.mxu0 0.0
      %1438 = vmatpush1.msra.mxu0 %v1428
      %1439 = vmatprep.subr.mxu0 0.0
      %1440 = vmatpush1.msra.mxu0 %v1429
      %1441 = vmatprep.subr.mxu0 0.0
      %1442 = vmatpush1.msra.mxu0 %v1430
      %1443 = vmatprep.subr.mxu0 0.0
      %1444 = vmatpush1.msra.mxu0 %v1435
      %1445 = vmatprep.subr.mxu0 0.0
      %1446 = vmatpush1.msra.mxu0 0.0
      %1447 = vmatprep.subr.mxu0 0.0
      %1448 = vmatpush1.msra.mxu0 0.0
      %1449 = vmatprep.subr.mxu0 0.0
      %1450 = vmatpush1.msra.mxu0 0.0
      %1451 = vmatprep.subr.mxu0 0.0
      %1452 = vmatpush1.msra.mxu0 0.0
      %1453 = vmatprep.subr.mxu0 0.0
      %1454 = vmatpush1.msra.mxu0 0.0
      %1455 = vmatprep.subr.mxu0 0.0
      %1456 = vmatpush1.msra.mxu0 0.0
      %1457 = vmatprep.subr.mxu0 0.0
      %1458 = vmatpush1.msra.mxu0 0.0
      %1459 = vmatprep.subr.mxu0 0.0
      %1460 = vmatpush1.msra.mxu0 0.0
      %1461 = vmatprep.subr.mxu0 0.0
      %1462 = vmatpush1.msra.mxu0 0.0
      %1463 = vmatprep.subr.mxu0 0.0
      %1464 = vmatpush1.msra.mxu0 0.0
      %1465 = vmatprep.subr.mxu0 0.0
      %1466 = vmatpush1.msra.mxu0 0.0
      %1467 = vmatprep.subr.mxu0 0.0
      %1468 = vmatpush1.msra.mxu0 0.0
      %1469 = vmatprep.subr.mxu0 0.0
      %1470 = vmatpush1.msra.mxu0 0.0
      %1471 = vmatprep.subr.mxu0 0.0
      %1472 = vmatpush1.msra.mxu0 0.0
      %1473 = vmatprep.subr.mxu0 0.0
      %1474 = vmatpush1.msra.mxu0 0.0
      %1475 = vmatprep.subr.mxu0 0.0
      %1476 = vmatpush1.msra.mxu0 0.0
      %1477 = vmatprep.subr.mxu0 0.0
      %1478 = vmatpush1.msra.mxu0 0.0
      %1479 = vmatprep.subr.mxu0 0.0
      %1480 = vmatpush1.msra.mxu0 0.0
      %1481 = vmatprep.subr.mxu0 0.0
      %1482 = vmatpush1.msra.mxu0 0.0
      %1483 = vmatprep.subr.mxu0 0.0
      %1484 = vmatpush1.msra.mxu0 0.0
      %1485 = vmatprep.subr.mxu0 0.0
      %1486 = vmatpush1.msra.mxu0 0.0
      %1487 = vmatprep.subr.mxu0 0.0
      %1488 = vmatpush1.msra.mxu0 0.0
      %1489 = vmatprep.subr.mxu0 0.0
      %1490 = vmatpush1.msra.mxu0 0.0
      %1491 = vmatprep.subr.mxu0 0.0
      %1492 = vmatpush1.msra.mxu0 0.0
      %1493 = vmatprep.subr.mxu0 0.0
      %1494 = vmatpush1.msra.mxu0 0.0
      %1495 = vmatprep.subr.mxu0 0.0
      %1496 = vmatpush1.msra.mxu0 0.0
      %1497 = vmatprep.subr.mxu0 0.0
      %1498 = vmatpush1.msra.mxu0 0.0
      %1499 = vmatprep.subr.mxu0 0.0
      %1500 = vmatpush1.msra.mxu0 0.0
      %1501 = vmatprep.mubr.f32.mxu0 0.0
      %1502 = vmatmul.mubr.f32.gmra.mrb[0].mxu0 %v1432
      %v1503 = vpop.f32.mrb[0].mxu0
      %v1504 = vadd.f32 0.0, %v1503
      %v1505 = vpop.f32.mrb[0].mxu0
      %1506 = vdwg.mxu0
      %v1508 = vsel %vm474, %v1427, 0
      %1510 = vmatprep.subr.mxu0 0.0
      %1511 = vmatpush1.msra.mxu0 %v1424
      %1512 = vmatprep.subr.mxu0 0.0
      %1513 = vmatpush1.msra.mxu0 %v1425
      %1514 = vmatprep.subr.mxu0 0.0
      %1515 = vmatpush1.msra.mxu0 %v1426
      %1516 = vmatprep.subr.mxu0 0.0
      %1517 = vmatpush1.msra.mxu0 %v1508
      %1518 = vmatprep.subr.mxu0 0.0
      %1519 = vmatpush1.msra.mxu0 0.0
      %1520 = vmatprep.subr.mxu0 0.0
      %1521 = vmatpush1.msra.mxu0 0.0
      %1522 = vmatprep.subr.mxu0 0.0
      %1523 = vmatpush1.msra.mxu0 0.0
      %1524 = vmatprep.subr.mxu0 0.0
      %1525 = vmatpush1.msra.mxu0 0.0
      %1526 = vmatprep.subr.mxu0 0.0
      %1527 = vmatpush1.msra.mxu0 0.0
      %1528 = vmatprep.subr.mxu0 0.0
      %1529 = vmatpush1.msra.mxu0 0.0
      %1530 = vmatprep.subr.mxu0 0.0
      %1531 = vmatpush1.msra.mxu0 0.0
      %1532 = vmatprep.subr.mxu0 0.0
      %1533 = vmatpush1.msra.mxu0 0.0
      %1534 = vmatprep.subr.mxu0 0.0
      %1535 = vmatpush1.msra.mxu0 0.0
      %1536 = vmatprep.subr.mxu0 0.0
      %1537 = vmatpush1.msra.mxu0 0.0
      %1538 = vmatprep.subr.mxu0 0.0
      %1539 = vmatpush1.msra.mxu0 0.0
      %1540 = vmatprep.subr.mxu0 0.0
      %1541 = vmatpush1.msra.mxu0 0.0
      %1542 = vmatprep.subr.mxu0 0.0
      %1543 = vmatpush1.msra.mxu0 0.0
      %1544 = vmatprep.subr.mxu0 0.0
      %1545 = vmatpush1.msra.mxu0 0.0
      %1546 = vmatprep.subr.mxu0 0.0
      %1547 = vmatpush1.msra.mxu0 0.0
      %1548 = vmatprep.subr.mxu0 0.0
      %1549 = vmatpush1.msra.mxu0 0.0
      %1550 = vmatprep.subr.mxu0 0.0
      %1551 = vmatpush1.msra.mxu0 0.0
      %1552 = vmatprep.subr.mxu0 0.0
      %1553 = vmatpush1.msra.mxu0 0.0
      %1554 = vmatprep.subr.mxu0 0.0
      %1555 = vmatpush1.msra.mxu0 0.0
      %1556 = vmatprep.subr.mxu0 0.0
      %1557 = vmatpush1.msra.mxu0 0.0
      %1558 = vmatprep.subr.mxu0 0.0
      %1559 = vmatpush1.msra.mxu0 0.0
      %1560 = vmatprep.subr.mxu0 0.0
      %1561 = vmatpush1.msra.mxu0 0.0
      %1562 = vmatprep.subr.mxu0 0.0
      %1563 = vmatpush1.msra.mxu0 0.0
      %1564 = vmatprep.subr.mxu0 0.0
      %1565 = vmatpush1.msra.mxu0 0.0
      %1566 = vmatprep.subr.mxu0 0.0
      %1567 = vmatpush1.msra.mxu0 0.0
      %1568 = vmatprep.subr.mxu0 0.0
      %1569 = vmatpush1.msra.mxu0 0.0
      %1570 = vmatprep.subr.mxu0 0.0
      %1571 = vmatpush1.msra.mxu0 0.0
      %1572 = vmatprep.subr.mxu0 0.0
      %1573 = vmatpush1.msra.mxu0 0.0
      %1574 = vmatprep.mubr.f32.mxu0 0.0
      %1575 = vmatmul.mubr.f32.gmra.mrb[0].mxu0 %v1248
      %v1576 = vpop.f32.mrb[0].mxu0
      %v1577 = vadd.f32 %v1504, %v1576
      %v1578 = vpop.f32.mrb[0].mxu0
      %1579 = vdwg.mxu0
      %v1580 = vld [vmem:[%s12] sm:$0x1]
      %v1582 = vlaneseq
      %v1583 = vshrl.u32 %v1582, 7
      %v1584 = vsub.s32 0, %v1583
      %v1585 = vrot.slane %v1580, %v1584
      %v1587 = vadd.f32 %v1577, %v1585
      %v1588 = vtanh.pop %v1587
      %v1589 = vmul.f32 %v1588, 0.5
      %v1590 = vadd.f32 %v1589, 0.5
      %v1591 = vmul.f32 %v1590, %v853
      %1593 = vrot.lane.b32.xlu0 %v1588, 64
      %v1594 = vpop.permute.xlu0 %1593
      %v1596 = vmul.f32 %v1590, %v1594
      %1598 = vrot.lane.b32.xlu0 %v1596, 32
      %v1599 = vpop.permute.xlu0 %1598
      %v1601 = vadd.f32 %v1591, %v1599
      %v1602 = vtanh.pop %v1601
      %1604 = vrot.lane.b32.xlu0 %v1602, 64
      %v1605 = vpop.permute.xlu0 %1604
      %v1607 = vmul.f32 %v1590, %v1605
      %p1608 = scmp.ge.s32.totalorder %s865, 1
      %s1609 = scalar_select %p1608, 1, 0
      %v1610 = vstv %s1609
      %vm1611 = vcmp.eq.s32.totalorder %v1610, 1
      %v1612 = vsel %vm1611, %v1238, 0.0
      %v1613 = vsel %vm1611, %v1232, 0.0
      %p1614 = scmp.ge.s32.totalorder %s865, 2
      %s1615 = scalar_select %p1614, 1, 0
      %v1616 = vstv %s1615
      %vm1617 = vcmp.eq.s32.totalorder %v1616, 1
      %v1618 = vsel %vm1617, %v1423, 0.0
      %v1619 = vsel %vm1617, %v1417, 0.0
      %p1620 = scmp.ge.s32.totalorder %s865, 3
      %s1621 = scalar_select %p1620, 1, 0
      %v1622 = vstv %s1621
      %vm1623 = vcmp.eq.s32.totalorder %v1622, 1
      %v1624 = vsel %vm1623, %v1607, 0.0
      %v1625 = vsel %vm1623, %v1601, 0.0
      %s1626 = sadd.s32 %s84, 4294967294
      %p1627 = scmp.gt.s32.totalorder %s1626, 0
      %s1628 = scalar_select %p1627, %s1626, 0
      %1630 = vrot.lane.b32.xlu0 %v1624, 32
      %v1631 = vpop.permute.xlu0 %1630
      %s1633 = smul.u32 %s1628, 2
      %s1634 = scalar_lea.vmem %s13, %s1633
      %1635 = vst.msk [vmem:[%s1634] sm:$0x3] %vm863, %v1631
      %s1636 = sadd.s32 %s84, 2
      %p1637 = scmp.lt.s32.totalorder %s1636, 63
      %s1638 = scalar_select %p1637, %s1636, 63
      %s1639 = smul.u32 %s1638, 2
      %s1640 = scalar_lea.vmem %s0, %s1639
      %v1641 = vld [vmem:[%s1640] sm:$0x3]
      %v1642 = vld [vmem:[#allocation2] sm:$0x7f]
      %v1643 = vld [vmem:[#allocation4] sm:$0xff]
      %v1644 = vld [vmem:[#allocation4 + $0x8] sm:$0x3f]
      %1646 = vrot.lane.b32.xlu0 %v1055, 32
      %v1647 = vpop.permute.xlu0 %1646
      %v1648 = vsel %vm96, %v1647, 0
      %v1651 = vsel %vm99, %v1644, 0
      %1653 = vmatprep.subr.mxu0 0.0
      %1654 = vmatpush1.msra.mxu0 %v1643
      %1655 = vmatprep.subr.mxu0 0.0
      %1656 = vmatpush1.msra.mxu0 %v1651
      %1657 = vmatprep.subr.mxu0 0.0
      %1658 = vmatpush1.msra.mxu0 0.0
      %1659 = vmatprep.subr.mxu0 0.0
      %1660 = vmatpush1.msra.mxu0 0.0
      %1661 = vmatprep.subr.mxu0 0.0
      %1662 = vmatpush1.msra.mxu0 0.0
      %1663 = vmatprep.subr.mxu0 0.0
      %1664 = vmatpush1.msra.mxu0 0.0
      %1665 = vmatprep.subr.mxu0 0.0
      %1666 = vmatpush1.msra.mxu0 0.0
      %1667 = vmatprep.subr.mxu0 0.0
      %1668 = vmatpush1.msra.mxu0 0.0
      %1669 = vmatprep.subr.mxu0 0.0
      %1670 = vmatpush1.msra.mxu0 0.0
      %1671 = vmatprep.subr.mxu0 0.0
      %1672 = vmatpush1.msra.mxu0 0.0
      %1673 = vmatprep.subr.mxu0 0.0
      %1674 = vmatpush1.msra.mxu0 0.0
      %1675 = vmatprep.subr.mxu0 0.0
      %1676 = vmatpush1.msra.mxu0 0.0
      %1677 = vmatprep.subr.mxu0 0.0
      %1678 = vmatpush1.msra.mxu0 0.0
      %1679 = vmatprep.subr.mxu0 0.0
      %1680 = vmatpush1.msra.mxu0 0.0
      %1681 = vmatprep.subr.mxu0 0.0
      %1682 = vmatpush1.msra.mxu0 0.0
      %1683 = vmatprep.subr.mxu0 0.0
      %1684 = vmatpush1.msra.mxu0 0.0
      %1685 = vmatprep.subr.mxu0 0.0
      %1686 = vmatpush1.msra.mxu0 0.0
      %1687 = vmatprep.subr.mxu0 0.0
      %1688 = vmatpush1.msra.mxu0 0.0
      %1689 = vmatprep.subr.mxu0 0.0
      %1690 = vmatpush1.msra.mxu0 0.0
      %1691 = vmatprep.subr.mxu0 0.0
      %1692 = vmatpush1.msra.mxu0 0.0
      %1693 = vmatprep.subr.mxu0 0.0
      %1694 = vmatpush1.msra.mxu0 0.0
      %1695 = vmatprep.subr.mxu0 0.0
      %1696 = vmatpush1.msra.mxu0 0.0
      %1697 = vmatprep.subr.mxu0 0.0
      %1698 = vmatpush1.msra.mxu0 0.0
      %1699 = vmatprep.subr.mxu0 0.0
      %1700 = vmatpush1.msra.mxu0 0.0
      %1701 = vmatprep.subr.mxu0 0.0
      %1702 = vmatpush1.msra.mxu0 0.0
      %1703 = vmatprep.subr.mxu0 0.0
      %1704 = vmatpush1.msra.mxu0 0.0
      %1705 = vmatprep.subr.mxu0 0.0
      %1706 = vmatpush1.msra.mxu0 0.0
      %1707 = vmatprep.subr.mxu0 0.0
      %1708 = vmatpush1.msra.mxu0 0.0
      %1709 = vmatprep.subr.mxu0 0.0
      %1710 = vmatpush1.msra.mxu0 0.0
      %1711 = vmatprep.subr.mxu0 0.0
      %1712 = vmatpush1.msra.mxu0 0.0
      %1713 = vmatprep.subr.mxu0 0.0
      %1714 = vmatpush1.msra.mxu0 0.0
      %1715 = vmatprep.subr.mxu0 0.0
      %1716 = vmatpush1.msra.mxu0 0.0
      %1717 = vmatprep.mubr.f32.mxu0 0.0
      %1718 = vmatmul.mubr.f32.gmra.mrb[0].mxu0 %v1648
      %v1719 = vpop.f32.mrb[0].mxu0
      %v1720 = vadd.f32 0.0, %v1719
      %v1721 = vpop.f32.mrb[0].mxu0
      %1722 = vdwg.mxu0
      %v1724 = vsel %vm173, %v1641, 0
      %v1727 = vsel %vm177, %v1642, 0
      %1729 = vmatprep.subr.mxu0 0.0
      %1730 = vmatpush1.msra.mxu0 %v1727
      %1731 = vmatprep.subr.mxu0 0.0
      %1732 = vmatpush1.msra.mxu0 0.0
      %1733 = vmatprep.subr.mxu0 0.0
      %1734 = vmatpush1.msra.mxu0 0.0
      %1735 = vmatprep.subr.mxu0 0.0
      %1736 = vmatpush1.msra.mxu0 0.0
      %1737 = vmatprep.subr.mxu0 0.0
      %1738 = vmatpush1.msra.mxu0 0.0
      %1739 = vmatprep.subr.mxu0 0.0
      %1740 = vmatpush1.msra.mxu0 0.0
      %1741 = vmatprep.subr.mxu0 0.0
      %1742 = vmatpush1.msra.mxu0 0.0
      %1743 = vmatprep.subr.mxu0 0.0
      %1744 = vmatpush1.msra.mxu0 0.0
      %1745 = vmatprep.subr.mxu0 0.0
      %1746 = vmatpush1.msra.mxu0 0.0
      %1747 = vmatprep.subr.mxu0 0.0
      %1748 = vmatpush1.msra.mxu0 0.0
      %1749 = vmatprep.subr.mxu0 0.0
      %1750 = vmatpush1.msra.mxu0 0.0
      %1751 = vmatprep.subr.mxu0 0.0
      %1752 = vmatpush1.msra.mxu0 0.0
      %1753 = vmatprep.subr.mxu0 0.0
      %1754 = vmatpush1.msra.mxu0 0.0
      %1755 = vmatprep.subr.mxu0 0.0
      %1756 = vmatpush1.msra.mxu0 0.0
      %1757 = vmatprep.subr.mxu0 0.0
      %1758 = vmatpush1.msra.mxu0 0.0
      %1759 = vmatprep.subr.mxu0 0.0
      %1760 = vmatpush1.msra.mxu0 0.0
      %1761 = vmatprep.subr.mxu0 0.0
      %1762 = vmatpush1.msra.mxu0 0.0
      %1763 = vmatprep.subr.mxu0 0.0
      %1764 = vmatpush1.msra.mxu0 0.0
      %1765 = vmatprep.subr.mxu0 0.0
      %1766 = vmatpush1.msra.mxu0 0.0
      %1767 = vmatprep.subr.mxu0 0.0
      %1768 = vmatpush1.msra.mxu0 0.0
      %1769 = vmatprep.subr.mxu0 0.0
      %1770 = vmatpush1.msra.mxu0 0.0
      %1771 = vmatprep.subr.mxu0 0.0
      %1772 = vmatpush1.msra.mxu0 0.0
      %1773 = vmatprep.subr.mxu0 0.0
      %1774 = vmatpush1.msra.mxu0 0.0
      %1775 = vmatprep.subr.mxu0 0.0
      %1776 = vmatpush1.msra.mxu0 0.0
      %1777 = vmatprep.subr.mxu0 0.0
      %1778 = vmatpush1.msra.mxu0 0.0
      %1779 = vmatprep.subr.mxu0 0.0
      %1780 = vmatpush1.msra.mxu0 0.0
      %1781 = vmatprep.subr.mxu0 0.0
      %1782 = vmatpush1.msra.mxu0 0.0
      %1783 = vmatprep.subr.mxu0 0.0
      %1784 = vmatpush1.msra.mxu0 0.0
      %1785 = vmatprep.subr.mxu0 0.0
      %1786 = vmatpush1.msra.mxu0 0.0
      %1787 = vmatprep.subr.mxu0 0.0
      %1788 = vmatpush1.msra.mxu0 0.0
      %1789 = vmatprep.subr.mxu0 0.0
      %1790 = vmatpush1.msra.mxu0 0.0
      %1791 = vmatprep.subr.mxu0 0.0
      %1792 = vmatpush1.msra.mxu0 0.0
      %1793 = vmatprep.mubr.f32.mxu0 0.0
      %1794 = vmatmul.mubr.f32.gmra.mrb[0].mxu0 %v1724
      %v1795 = vpop.f32.mrb[0].mxu0
      %v1796 = vadd.f32 %v1720, %v1795
      %v1797 = vpop.f32.mrb[0].mxu0
      %1798 = vdwg.mxu0
      %v1799 = vld [vmem:[%s3] sm:$0x1]
      %v1801 = vlaneseq
      %v1802 = vshrl.u32 %v1801, 7
      %v1803 = vsub.s32 0, %v1802
      %v1804 = vrot.slane %v1799, %v1803
      %v1806 = vadd.f32 %v1796, %v1804
      %v1807 = vtanh.pop %v1806
      %v1808 = vmul.f32 %v1807, 0.5
      %v1809 = vadd.f32 %v1808, 0.5
      %v1810 = vmul.f32 %v1809, %v1049
      %1812 = vrot.lane.b32.xlu0 %v1807, 64
      %v1813 = vpop.permute.xlu0 %1812
      %v1815 = vmul.f32 %v1809, %v1813
      %1817 = vrot.lane.b32.xlu0 %v1815, 32
      %v1818 = vpop.permute.xlu0 %1817
      %v1820 = vadd.f32 %v1810, %v1818
      %v1821 = vtanh.pop %v1820
      %1823 = vrot.lane.b32.xlu0 %v1821, 64
      %v1824 = vpop.permute.xlu0 %1823
      %v1826 = vmul.f32 %v1809, %v1824
      %v1827 = vld [vmem:[%s4] sm:$0xff]
      %v1828 = vld [vmem:[%s4 + $0x8] sm:$0x3f]
      %v1829 = vld [vmem:[%s5] sm:$0xff]
      %v1830 = vld [vmem:[%s5 + $0x8] sm:$0x3f]
      %1832 = vrot.lane.b32.xlu0 %v1612, 32
      %v1833 = vpop.permute.xlu0 %1832
      %v1834 = vsel %vm96, %v1833, 0
      %v1837 = vsel %vm99, %v1830, 0
      %1839 = vmatprep.subr.mxu0 0.0
      %1840 = vmatpush1.msra.mxu0 %v1829
      %1841 = vmatprep.subr.mxu0 0.0
      %1842 = vmatpush1.msra.mxu0 %v1837
      %1843 = vmatprep.subr.mxu0 0.0
      %1844 = vmatpush1.msra.mxu0 0.0
      %1845 = vmatprep.subr.mxu0 0.0
      %1846 = vmatpush1.msra.mxu0 0.0
      %1847 = vmatprep.subr.mxu0 0.0
      %1848 = vmatpush1.msra.mxu0 0.0
      %1849 = vmatprep.subr.mxu0 0.0
      %1850 = vmatpush1.msra.mxu0 0.0
      %1851 = vmatprep.subr.mxu0 0.0
      %1852 = vmatpush1.msra.mxu0 0.0
      %1853 = vmatprep.subr.mxu0 0.0
      %1854 = vmatpush1.msra.mxu0 0.0
      %1855 = vmatprep.subr.mxu0 0.0
      %1856 = vmatpush1.msra.mxu0 0.0
      %1857 = vmatprep.subr.mxu0 0.0
      %1858 = vmatpush1.msra.mxu0 0.0
      %1859 = vmatprep.subr.mxu0 0.0
      %1860 = vmatpush1.msra.mxu0 0.0
      %1861 = vmatprep.subr.mxu0 0.0
      %1862 = vmatpush1.msra.mxu0 0.0
      %1863 = vmatprep.subr.mxu0 0.0
      %1864 = vmatpush1.msra.mxu0 0.0
      %1865 = vmatprep.subr.mxu0 0.0
      %1866 = vmatpush1.msra.mxu0 0.0
      %1867 = vmatprep.subr.mxu0 0.0
      %1868 = vmatpush1.msra.mxu0 0.0
      %1869 = vmatprep.subr.mxu0 0.0
      %1870 = vmatpush1.msra.mxu0 0.0
      %1871 = vmatprep.subr.mxu0 0.0
      %1872 = vmatpush1.msra.mxu0 0.0
      %1873 = vmatprep.subr.mxu0 0.0
      %1874 = vmatpush1.msra.mxu0 0.0
      %1875 = vmatprep.subr.mxu0 0.0
      %1876 = vmatpush1.msra.mxu0 0.0
      %1877 = vmatprep.subr.mxu0 0.0
      %1878 = vmatpush1.msra.mxu0 0.0
      %1879 = vmatprep.subr.mxu0 0.0
      %1880 = vmatpush1.msra.mxu0 0.0
      %1881 = vmatprep.subr.mxu0 0.0
      %1882 = vmatpush1.msra.mxu0 0.0
      %1883 = vmatprep.subr.mxu0 0.0
      %1884 = vmatpush1.msra.mxu0 0.0
      %1885 = vmatprep.subr.mxu0 0.0
      %1886 = vmatpush1.msra.mxu0 0.0
      %1887 = vmatprep.subr.mxu0 0.0
      %1888 = vmatpush1.msra.mxu0 0.0
      %1889 = vmatprep.subr.mxu0 0.0
      %1890 = vmatpush1.msra.mxu0 0.0
      %1891 = vmatprep.subr.mxu0 0.0
      %1892 = vmatpush1.msra.mxu0 0.0
      %1893 = vmatprep.subr.mxu0 0.0
      %1894 = vmatpush1.msra.mxu0 0.0
      %1895 = vmatprep.subr.mxu0 0.0
      %1896 = vmatpush1.msra.mxu0 0.0
      %1897 = vmatprep.subr.mxu0 0.0
      %1898 = vmatpush1.msra.mxu0 0.0
      %1899 = vmatprep.subr.mxu0 0.0
      %1900 = vmatpush1.msra.mxu0 0.0
      %1901 = vmatprep.subr.mxu0 0.0
      %1902 = vmatpush1.msra.mxu0 0.0
      %1903 = vmatprep.mubr.f32.mxu0 0.0
      %1904 = vmatmul.mubr.f32.gmra.mrb[0].mxu0 %v1834
      %v1905 = vpop.f32.mrb[0].mxu0
      %v1906 = vadd.f32 0.0, %v1905
      %v1907 = vpop.f32.mrb[0].mxu0
      %1908 = vdwg.mxu0
      %v1910 = vsel %vm99, %v1828, 0
      %1912 = vmatprep.subr.mxu0 0.0
      %1913 = vmatpush1.msra.mxu0 %v1827
      %1914 = vmatprep.subr.mxu0 0.0
      %1915 = vmatpush1.msra.mxu0 %v1910
      %1916 = vmatprep.subr.mxu0 0.0
      %1917 = vmatpush1.msra.mxu0 0.0
      %1918 = vmatprep.subr.mxu0 0.0
      %1919 = vmatpush1.msra.mxu0 0.0
      %1920 = vmatprep.subr.mxu0 0.0
      %1921 = vmatpush1.msra.mxu0 0.0
      %1922 = vmatprep.subr.mxu0 0.0
      %1923 = vmatpush1.msra.mxu0 0.0
      %1924 = vmatprep.subr.mxu0 0.0
      %1925 = vmatpush1.msra.mxu0 0.0
      %1926 = vmatprep.subr.mxu0 0.0
      %1927 = vmatpush1.msra.mxu0 0.0
      %1928 = vmatprep.subr.mxu0 0.0
      %1929 = vmatpush1.msra.mxu0 0.0
      %1930 = vmatprep.subr.mxu0 0.0
      %1931 = vmatpush1.msra.mxu0 0.0
      %1932 = vmatprep.subr.mxu0 0.0
      %1933 = vmatpush1.msra.mxu0 0.0
      %1934 = vmatprep.subr.mxu0 0.0
      %1935 = vmatpush1.msra.mxu0 0.0
      %1936 = vmatprep.subr.mxu0 0.0
      %1937 = vmatpush1.msra.mxu0 0.0
      %1938 = vmatprep.subr.mxu0 0.0
      %1939 = vmatpush1.msra.mxu0 0.0
      %1940 = vmatprep.subr.mxu0 0.0
      %1941 = vmatpush1.msra.mxu0 0.0
      %1942 = vmatprep.subr.mxu0 0.0
      %1943 = vmatpush1.msra.mxu0 0.0
      %1944 = vmatprep.subr.mxu0 0.0
      %1945 = vmatpush1.msra.mxu0 0.0
      %1946 = vmatprep.subr.mxu0 0.0
      %1947 = vmatpush1.msra.mxu0 0.0
      %1948 = vmatprep.subr.mxu0 0.0
      %1949 = vmatpush1.msra.mxu0 0.0
      %1950 = vmatprep.subr.mxu0 0.0
      %1951 = vmatpush1.msra.mxu0 0.0
      %1952 = vmatprep.subr.mxu0 0.0
      %1953 = vmatpush1.msra.mxu0 0.0
      %1954 = vmatprep.subr.mxu0 0.0
      %1955 = vmatpush1.msra.mxu0 0.0
      %1956 = vmatprep.subr.mxu0 0.0
      %1957 = vmatpush1.msra.mxu0 0.0
      %1958 = vmatprep.subr.mxu0 0.0
      %1959 = vmatpush1.msra.mxu0 0.0
      %1960 = vmatprep.subr.mxu0 0.0
      %1961 = vmatpush1.msra.mxu0 0.0
      %1962 = vmatprep.subr.mxu0 0.0
      %1963 = vmatpush1.msra.mxu0 0.0
      %1964 = vmatprep.subr.mxu0 0.0
      %1965 = vmatpush1.msra.mxu0 0.0
      %1966 = vmatprep.subr.mxu0 0.0
      %1967 = vmatpush1.msra.mxu0 0.0
      %1968 = vmatprep.subr.mxu0 0.0
      %1969 = vmatpush1.msra.mxu0 0.0
      %1970 = vmatprep.subr.mxu0 0.0
      %1971 = vmatpush1.msra.mxu0 0.0
      %1972 = vmatprep.subr.mxu0 0.0
      %1973 = vmatpush1.msra.mxu0 0.0
      %1974 = vmatprep.subr.mxu0 0.0
      %1975 = vmatpush1.msra.mxu0 0.0
      %1976 = vmatprep.mubr.f32.mxu0 0.0
      %1977 = vmatmul.mubr.f32.gmra.mrb[0].mxu0 %v1648
      %v1978 = vpop.f32.mrb[0].mxu0
      %v1979 = vadd.f32 %v1906, %v1978
      %v1980 = vpop.f32.mrb[0].mxu0
      %1981 = vdwg.mxu0
      %v1982 = vld [vmem:[%s6] sm:$0x1]
      %v1984 = vlaneseq
      %v1985 = vshrl.u32 %v1984, 7
      %v1986 = vsub.s32 0, %v1985
      %v1987 = vrot.slane %v1982, %v1986
      %v1989 = vadd.f32 %v1979, %v1987
      %v1990 = vtanh.pop %v1989
      %v1991 = vmul.f32 %v1990, 0.5
      %v1992 = vadd.f32 %v1991, 0.5
      %v1993 = vmul.f32 %v1992, %v1613
      %1995 = vrot.lane.b32.xlu0 %v1990, 64
      %v1996 = vpop.permute.xlu0 %1995
      %v1998 = vmul.f32 %v1992, %v1996
      %2000 = vrot.lane.b32.xlu0 %v1998, 32
      %v2001 = vpop.permute.xlu0 %2000
      %v2003 = vadd.f32 %v1993, %v2001
      %v2004 = vtanh.pop %v2003
      %2006 = vrot.lane.b32.xlu0 %v2004, 64
      %v2007 = vpop.permute.xlu0 %2006
      %v2009 = vmul.f32 %v1992, %v2007
      %v2010 = vld [vmem:[%s7] sm:$0xff]
      %v2011 = vld [vmem:[%s7 + $0x8] sm:$0x3f]
      %v2012 = vld [vmem:[%s8] sm:$0xff]
      %v2013 = vld [vmem:[%s8 + $0x8] sm:$0xff]
      %v2014 = vld [vmem:[%s8 + $0x10] sm:$0xff]
      %v2015 = vld [vmem:[%s8 + $0x18] sm:$0xf]
      %2017 = vrot.lane.b32.xlu0 %v1618, 32
      %v2018 = vpop.permute.xlu0 %2017
      %v2019 = vsel %vm471, %v2018, 0
      %v2022 = vsel %vm474, %v2015, 0
      %2024 = vmatprep.subr.mxu0 0.0
      %2025 = vmatpush1.msra.mxu0 %v2012
      %2026 = vmatprep.subr.mxu0 0.0
      %2027 = vmatpush1.msra.mxu0 %v2013
      %2028 = vmatprep.subr.mxu0 0.0
      %2029 = vmatpush1.msra.mxu0 %v2014
      %2030 = vmatprep.subr.mxu0 0.0
      %2031 = vmatpush1.msra.mxu0 %v2022
      %2032 = vmatprep.subr.mxu0 0.0
      %2033 = vmatpush1.msra.mxu0 0.0
      %2034 = vmatprep.subr.mxu0 0.0
      %2035 = vmatpush1.msra.mxu0 0.0
      %2036 = vmatprep.subr.mxu0 0.0
      %2037 = vmatpush1.msra.mxu0 0.0
      %2038 = vmatprep.subr.mxu0 0.0
      %2039 = vmatpush1.msra.mxu0 0.0
      %2040 = vmatprep.subr.mxu0 0.0
      %2041 = vmatpush1.msra.mxu0 0.0
      %2042 = vmatprep.subr.mxu0 0.0
      %2043 = vmatpush1.msra.mxu0 0.0
      %2044 = vmatprep.subr.mxu0 0.0
      %2045 = vmatpush1.msra.mxu0 0.0
      %2046 = vmatprep.subr.mxu0 0.0
      %2047 = vmatpush1.msra.mxu0 0.0
      %2048 = vmatprep.subr.mxu0 0.0
      %2049 = vmatpush1.msra.mxu0 0.0
      %2050 = vmatprep.subr.mxu0 0.0
      %2051 = vmatpush1.msra.mxu0 0.0
      %2052 = vmatprep.subr.mxu0 0.0
      %2053 = vmatpush1.msra.mxu0 0.0
      %2054 = vmatprep.subr.mxu0 0.0
      %2055 = vmatpush1.msra.mxu0 0.0
      %2056 = vmatprep.subr.mxu0 0.0
      %2057 = vmatpush1.msra.mxu0 0.0
      %2058 = vmatprep.subr.mxu0 0.0
      %2059 = vmatpush1.msra.mxu0 0.0
      %2060 = vmatprep.subr.mxu0 0.0
      %2061 = vmatpush1.msra.mxu0 0.0
      %2062 = vmatprep.subr.mxu0 0.0
      %2063 = vmatpush1.msra.mxu0 0.0
      %2064 = vmatprep.subr.mxu0 0.0
      %2065 = vmatpush1.msra.mxu0 0.0
      %2066 = vmatprep.subr.mxu0 0.0
      %2067 = vmatpush1.msra.mxu0 0.0
      %2068 = vmatprep.subr.mxu0 0.0
      %2069 = vmatpush1.msra.mxu0 0.0
      %2070 = vmatprep.subr.mxu0 0.0
      %2071 = vmatpush1.msra.mxu0 0.0
      %2072 = vmatprep.subr.mxu0 0.0
      %2073 = vmatpush1.msra.mxu0 0.0
      %2074 = vmatprep.subr.mxu0 0.0
      %2075 = vmatpush1.msra.mxu0 0.0
      %2076 = vmatprep.subr.mxu0 0.0
      %2077 = vmatpush1.msra.mxu0 0.0
      %2078 = vmatprep.subr.mxu0 0.0
      %2079 = vmatpush1.msra.mxu0 0.0
      %2080 = vmatprep.subr.mxu0 0.0
      %2081 = vmatpush1.msra.mxu0 0.0
      %2082 = vmatprep.subr.mxu0 0.0
      %2083 = vmatpush1.msra.mxu0 0.0
      %2084 = vmatprep.subr.mxu0 0.0
      %2085 = vmatpush1.msra.mxu0 0.0
      %2086 = vmatprep.subr.mxu0 0.0
      %2087 = vmatpush1.msra.mxu0 0.0
      %2088 = vmatprep.mubr.f32.mxu0 0.0
      %2089 = vmatmul.mubr.f32.gmra.mrb[0].mxu0 %v2019
      %v2090 = vpop.f32.mrb[0].mxu0
      %v2091 = vadd.f32 0.0, %v2090
      %v2092 = vpop.f32.mrb[0].mxu0
      %2093 = vdwg.mxu0
      %v2095 = vsel %vm99, %v2011, 0
      %2097 = vmatprep.subr.mxu0 0.0
      %2098 = vmatpush1.msra.mxu0 %v2010
      %2099 = vmatprep.subr.mxu0 0.0
      %2100 = vmatpush1.msra.mxu0 %v2095
      %2101 = vmatprep.subr.mxu0 0.0
      %2102 = vmatpush1.msra.mxu0 0.0
      %2103 = vmatprep.subr.mxu0 0.0
      %2104 = vmatpush1.msra.mxu0 0.0
      %2105 = vmatprep.subr.mxu0 0.0
      %2106 = vmatpush1.msra.mxu0 0.0
      %2107 = vmatprep.subr.mxu0 0.0
      %2108 = vmatpush1.msra.mxu0 0.0
      %2109 = vmatprep.subr.mxu0 0.0
      %2110 = vmatpush1.msra.mxu0 0.0
      %2111 = vmatprep.subr.mxu0 0.0
      %2112 = vmatpush1.msra.mxu0 0.0
      %2113 = vmatprep.subr.mxu0 0.0
      %2114 = vmatpush1.msra.mxu0 0.0
      %2115 = vmatprep.subr.mxu0 0.0
      %2116 = vmatpush1.msra.mxu0 0.0
      %2117 = vmatprep.subr.mxu0 0.0
      %2118 = vmatpush1.msra.mxu0 0.0
      %2119 = vmatprep.subr.mxu0 0.0
      %2120 = vmatpush1.msra.mxu0 0.0
      %2121 = vmatprep.subr.mxu0 0.0
      %2122 = vmatpush1.msra.mxu0 0.0
      %2123 = vmatprep.subr.mxu0 0.0
      %2124 = vmatpush1.msra.mxu0 0.0
      %2125 = vmatprep.subr.mxu0 0.0
      %2126 = vmatpush1.msra.mxu0 0.0
      %2127 = vmatprep.subr.mxu0 0.0
      %2128 = vmatpush1.msra.mxu0 0.0
      %2129 = vmatprep.subr.mxu0 0.0
      %2130 = vmatpush1.msra.mxu0 0.0
      %2131 = vmatprep.subr.mxu0 0.0
      %2132 = vmatpush1.msra.mxu0 0.0
      %2133 = vmatprep.subr.mxu0 0.0
      %2134 = vmatpush1.msra.mxu0 0.0
      %2135 = vmatprep.subr.mxu0 0.0
      %2136 = vmatpush1.msra.mxu0 0.0
      %2137 = vmatprep.subr.mxu0 0.0
      %2138 = vmatpush1.msra.mxu0 0.0
      %2139 = vmatprep.subr.mxu0 0.0
      %2140 = vmatpush1.msra.mxu0 0.0
      %2141 = vmatprep.subr.mxu0 0.0
      %2142 = vmatpush1.msra.mxu0 0.0
      %2143 = vmatprep.subr.mxu0 0.0
      %2144 = vmatpush1.msra.mxu0 0.0
      %2145 = vmatprep.subr.mxu0 0.0
      %2146 = vmatpush1.msra.mxu0 0.0
      %2147 = vmatprep.subr.mxu0 0.0
      %2148 = vmatpush1.msra.mxu0 0.0
      %2149 = vmatprep.subr.mxu0 0.0
      %2150 = vmatpush1.msra.mxu0 0.0
      %2151 = vmatprep.subr.mxu0 0.0
      %2152 = vmatpush1.msra.mxu0 0.0
      %2153 = vmatprep.subr.mxu0 0.0
      %2154 = vmatpush1.msra.mxu0 0.0
      %2155 = vmatprep.subr.mxu0 0.0
      %2156 = vmatpush1.msra.mxu0 0.0
      %2157 = vmatprep.subr.mxu0 0.0
      %2158 = vmatpush1.msra.mxu0 0.0
      %2159 = vmatprep.subr.mxu0 0.0
      %2160 = vmatpush1.msra.mxu0 0.0
      %2161 = vmatprep.mubr.f32.mxu0 0.0
      %2162 = vmatmul.mubr.f32.gmra.mrb[0].mxu0 %v1834
      %v2163 = vpop.f32.mrb[0].mxu0
      %v2164 = vadd.f32 %v2091, %v2163
      %v2165 = vpop.f32.mrb[0].mxu0
      %2166 = vdwg.mxu0
      %v2167 = vld [vmem:[%s9] sm:$0x1]
      %v2169 = vlaneseq
      %v2170 = vshrl.u32 %v2169, 7
      %v2171 = vsub.s32 0, %v2170
      %v2172 = vrot.slane %v2167, %v2171
      %v2174 = vadd.f32 %v2164, %v2172
      %v2175 = vtanh.pop %v2174
      %v2176 = vmul.f32 %v2175, 0.5
      %v2177 = vadd.f32 %v2176, 0.5
      %v2178 = vmul.f32 %v2177, %v1619
      %2180 = vrot.lane.b32.xlu0 %v2175, 64
      %v2181 = vpop.permute.xlu0 %2180
      %v2183 = vmul.f32 %v2177, %v2181
      %2185 = vrot.lane.b32.xlu0 %v2183, 32
      %v2186 = vpop.permute.xlu0 %2185
      %v2188 = vadd.f32 %v2178, %v2186
      %v2189 = vtanh.pop %v2188
      %2191 = vrot.lane.b32.xlu0 %v2189, 64
      %v2192 = vpop.permute.xlu0 %2191
      %v2194 = vmul.f32 %v2177, %v2192
      %v2195 = vld [vmem:[%s10] sm:$0xff]
      %v2196 = vld [vmem:[%s10 + $0x8] sm:$0xff]
      %v2197 = vld [vmem:[%s10 + $0x10] sm:$0xff]
      %v2198 = vld [vmem:[%s10 + $0x18] sm:$0xf]
      %v2199 = vld [vmem:[%s11] sm:$0xff]
      %v2200 = vld [vmem:[%s11 + $0x8] sm:$0xff]
      %v2201 = vld [vmem:[%s11 + $0x10] sm:$0xff]
      %v2202 = vld [vmem:[%s11 + $0x18] sm:$0xf]
      %v2203 = vsel %vm471, %v1631, 0
      %v2206 = vsel %vm474, %v2202, 0
      %2208 = vmatprep.subr.mxu0 0.0
      %2209 = vmatpush1.msra.mxu0 %v2199
      %2210 = vmatprep.subr.mxu0 0.0
      %2211 = vmatpush1.msra.mxu0 %v2200
      %2212 = vmatprep.subr.mxu0 0.0
      %2213 = vmatpush1.msra.mxu0 %v2201
      %2214 = vmatprep.subr.mxu0 0.0
      %2215 = vmatpush1.msra.mxu0 %v2206
      %2216 = vmatprep.subr.mxu0 0.0
      %2217 = vmatpush1.msra.mxu0 0.0
      %2218 = vmatprep.subr.mxu0 0.0
      %2219 = vmatpush1.msra.mxu0 0.0
      %2220 = vmatprep.subr.mxu0 0.0
      %2221 = vmatpush1.msra.mxu0 0.0
      %2222 = vmatprep.subr.mxu0 0.0
      %2223 = vmatpush1.msra.mxu0 0.0
      %2224 = vmatprep.subr.mxu0 0.0
      %2225 = vmatpush1.msra.mxu0 0.0
      %2226 = vmatprep.subr.mxu0 0.0
      %2227 = vmatpush1.msra.mxu0 0.0
      %2228 = vmatprep.subr.mxu0 0.0
      %2229 = vmatpush1.msra.mxu0 0.0
      %2230 = vmatprep.subr.mxu0 0.0
      %2231 = vmatpush1.msra.mxu0 0.0
      %2232 = vmatprep.subr.mxu0 0.0
      %2233 = vmatpush1.msra.mxu0 0.0
      %2234 = vmatprep.subr.mxu0 0.0
      %2235 = vmatpush1.msra.mxu0 0.0
      %2236 = vmatprep.subr.mxu0 0.0
      %2237 = vmatpush1.msra.mxu0 0.0
      %2238 = vmatprep.subr.mxu0 0.0
      %2239 = vmatpush1.msra.mxu0 0.0
      %2240 = vmatprep.subr.mxu0 0.0
      %2241 = vmatpush1.msra.mxu0 0.0
      %2242 = vmatprep.subr.mxu0 0.0
      %2243 = vmatpush1.msra.mxu0 0.0
      %2244 = vmatprep.subr.mxu0 0.0
      %2245 = vmatpush1.msra.mxu0 0.0
      %2246 = vmatprep.subr.mxu0 0.0
      %2247 = vmatpush1.msra.mxu0 0.0
      %2248 = vmatprep.subr.mxu0 0.0
      %2249 = vmatpush1.msra.mxu0 0.0
      %2250 = vmatprep.subr.mxu0 0.0
      %2251 = vmatpush1.msra.mxu0 0.0
      %2252 = vmatprep.subr.mxu0 0.0
      %2253 = vmatpush1.msra.mxu0 0.0
      %2254 = vmatprep.subr.mxu0 0.0
      %2255 = vmatpush1.msra.mxu0 0.0
      %2256 = vmatprep.subr.mxu0 0.0
      %2257 = vmatpush1.msra.mxu0 0.0
      %2258 = vmatprep.subr.mxu0 0.0
      %2259 = vmatpush1.msra.mxu0 0.0
      %2260 = vmatprep.subr.mxu0 0.0
      %2261 = vmatpush1.msra.mxu0 0.0
      %2262 = vmatprep.subr.mxu0 0.0
      %2263 = vmatpush1.msra.mxu0 0.0
      %2264 = vmatprep.subr.mxu0 0.0
      %2265 = vmatpush1.msra.mxu0 0.0
      %2266 = vmatprep.subr.mxu0 0.0
      %2267 = vmatpush1.msra.mxu0 0.0
      %2268 = vmatprep.subr.mxu0 0.0
      %2269 = vmatpush1.msra.mxu0 0.0
      %2270 = vmatprep.subr.mxu0 0.0
      %2271 = vmatpush1.msra.mxu0 0.0
      %2272 = vmatprep.mubr.f32.mxu0 0.0
      %2273 = vmatmul.mubr.f32.gmra.mrb[0].mxu0 %v2203
      %v2274 = vpop.f32.mrb[0].mxu0
      %v2275 = vadd.f32 0.0, %v2274
      %v2276 = vpop.f32.mrb[0].mxu0
      %2277 = vdwg.mxu0
      %v2279 = vsel %vm474, %v2198, 0
      %2281 = vmatprep.subr.mxu0 0.0
      %2282 = vmatpush1.msra.mxu0 %v2195
      %2283 = vmatprep.subr.mxu0 0.0
      %2284 = vmatpush1.msra.mxu0 %v2196
      %2285 = vmatprep.subr.mxu0 0.0
      %2286 = vmatpush1.msra.mxu0 %v2197
      %2287 = vmatprep.subr.mxu0 0.0
      %2288 = vmatpush1.msra.mxu0 %v2279
      %2289 = vmatprep.subr.mxu0 0.0
      %2290 = vmatpush1.msra.mxu0 0.0
      %2291 = vmatprep.subr.mxu0 0.0
      %2292 = vmatpush1.msra.mxu0 0.0
      %2293 = vmatprep.subr.mxu0 0.0
      %2294 = vmatpush1.msra.mxu0 0.0
      %2295 = vmatprep.subr.mxu0 0.0
      %2296 = vmatpush1.msra.mxu0 0.0
      %2297 = vmatprep.subr.mxu0 0.0
      %2298 = vmatpush1.msra.mxu0 0.0
      %2299 = vmatprep.subr.mxu0 0.0
      %2300 = vmatpush1.msra.mxu0 0.0
      %2301 = vmatprep.subr.mxu0 0.0
      %2302 = vmatpush1.msra.mxu0 0.0
      %2303 = vmatprep.subr.mxu0 0.0
      %2304 = vmatpush1.msra.mxu0 0.0
      %2305 = vmatprep.subr.mxu0 0.0
      %2306 = vmatpush1.msra.mxu0 0.0
      %2307 = vmatprep.subr.mxu0 0.0
      %2308 = vmatpush1.msra.mxu0 0.0
      %2309 = vmatprep.subr.mxu0 0.0
      %2310 = vmatpush1.msra.mxu0 0.0
      %2311 = vmatprep.subr.mxu0 0.0
      %2312 = vmatpush1.msra.mxu0 0.0
      %2313 = vmatprep.subr.mxu0 0.0
      %2314 = vmatpush1.msra.mxu0 0.0
      %2315 = vmatprep.subr.mxu0 0.0
      %2316 = vmatpush1.msra.mxu0 0.0
      %2317 = vmatprep.subr.mxu0 0.0
      %2318 = vmatpush1.msra.mxu0 0.0
      %2319 = vmatprep.subr.mxu0 0.0
      %2320 = vmatpush1.msra.mxu0 0.0
      %2321 = vmatprep.subr.mxu0 0.0
      %2322 = vmatpush1.msra.mxu0 0.0
      %2323 = vmatprep.subr.mxu0 0.0
      %2324 = vmatpush1.msra.mxu0 0.0
      %2325 = vmatprep.subr.mxu0 0.0
      %2326 = vmatpush1.msra.mxu0 0.0
      %2327 = vmatprep.subr.mxu0 0.0
      %2328 = vmatpush1.msra.mxu0 0.0
      %2329 = vmatprep.subr.mxu0 0.0
      %2330 = vmatpush1.msra.mxu0 0.0
      %2331 = vmatprep.subr.mxu0 0.0
      %2332 = vmatpush1.msra.mxu0 0.0
      %2333 = vmatprep.subr.mxu0 0.0
      %2334 = vmatpush1.msra.mxu0 0.0
      %2335 = vmatprep.subr.mxu0 0.0
      %2336 = vmatpush1.msra.mxu0 0.0
      %2337 = vmatprep.subr.mxu0 0.0
      %2338 = vmatpush1.msra.mxu0 0.0
      %2339 = vmatprep.subr.mxu0 0.0
      %2340 = vmatpush1.msra.mxu0 0.0
      %2341 = vmatprep.subr.mxu0 0.0
      %2342 = vmatpush1.msra.mxu0 0.0
      %2343 = vmatprep.subr.mxu0 0.0
      %2344 = vmatpush1.msra.mxu0 0.0
      %2345 = vmatprep.mubr.f32.mxu0 0.0
      %2346 = vmatmul.mubr.f32.gmra.mrb[0].mxu0 %v2019
      %v2347 = vpop.f32.mrb[0].mxu0
      %v2348 = vadd.f32 %v2275, %v2347
      %v2349 = vpop.f32.mrb[0].mxu0
      %2350 = vdwg.mxu0
      %v2351 = vld [vmem:[%s12] sm:$0x1]
      %v2353 = vlaneseq
      %v2354 = vshrl.u32 %v2353, 7
      %v2355 = vsub.s32 0, %v2354
      %v2356 = vrot.slane %v2351, %v2355
      %v2358 = vadd.f32 %v2348, %v2356
      %v2359 = vtanh.pop %v2358
      %v2360 = vmul.f32 %v2359, 0.5
      %v2361 = vadd.f32 %v2360, 0.5
      %v2362 = vmul.f32 %v2361, %v1625
      %2364 = vrot.lane.b32.xlu0 %v2359, 64
      %v2365 = vpop.permute.xlu0 %2364
      %v2367 = vmul.f32 %v2361, %v2365
      %2369 = vrot.lane.b32.xlu0 %v2367, 32
      %v2370 = vpop.permute.xlu0 %2369
      %v2372 = vadd.f32 %v2362, %v2370
      %v2373 = vtanh.pop %v2372
      %2375 = vrot.lane.b32.xlu0 %v2373, 64
      %v2376 = vpop.permute.xlu0 %2375
      %v2378 = vmul.f32 %v2361, %v2376
      %p2379 = scmp.ge.s32.totalorder %s1636, 1
      %s2380 = scalar_select %p2379, 1, 0
      %v2381 = vstv %s2380
      %vm2382 = vcmp.eq.s32.totalorder %v2381, 1
      %v2383 = vsel %vm2382, %v2009, 0.0
      %v2384 = vsel %vm2382, %v2003, 0.0
      %p2385 = scmp.ge.s32.totalorder %s1636, 2
      %s2386 = scalar_select %p2385, 1, 0
      %v2387 = vstv %s2386
      %vm2388 = vcmp.eq.s32.totalorder %v2387, 1
      %v2389 = vsel %vm2388, %v2194, 0.0
      %v2390 = vsel %vm2388, %v2188, 0.0
      %p2391 = scmp.ge.s32.totalorder %s1636, 3
      %s2392 = scalar_select %p2391, 1, 0
      %v2393 = vstv %s2392
      %vm2394 = vcmp.eq.s32.totalorder %v2393, 1
      %v2395 = vsel %vm2394, %v2378, 0.0
      %v2396 = vsel %vm2394, %v2372, 0.0
      %s2397 = sadd.s32 %s84, 4294967295
      %p2398 = scmp.gt.s32.totalorder %s2397, 0
      %s2399 = scalar_select %p2398, %s2397, 0
      %2401 = vrot.lane.b32.xlu0 %v2395, 32
      %v2402 = vpop.permute.xlu0 %2401
      %s2404 = smul.u32 %s2399, 2
      %s2405 = scalar_lea.vmem %s13, %s2404
      %2406 = vst.msk [vmem:[%s2405] sm:$0x3] %vm863, %v2402
      %s2407 = sadd.s32 %s84, 3
      %p2408 = scmp.lt.s32.totalorder %s2407, 63
      %s2409 = scalar_select %p2408, %s2407, 63
      %s2410 = smul.u32 %s2409, 2
      %s2411 = scalar_lea.vmem %s0, %s2410
      %v2412 = vld [vmem:[%s2411] sm:$0x3]
      %v2413 = vld [vmem:[#allocation2] sm:$0x7f]
      %v2414 = vld [vmem:[#allocation4] sm:$0xff]
      %v2415 = vld [vmem:[#allocation4 + $0x8] sm:$0x3f]
      %2417 = vrot.lane.b32.xlu0 %v1826, 32
      %v2418 = vpop.permute.xlu0 %2417
      %v2419 = vsel %vm96, %v2418, 0
      %v2422 = vsel %vm99, %v2415, 0
      %2424 = vmatprep.subr.mxu0 0.0
      %2425 = vmatpush1.msra.mxu0 %v2414
      %2426 = vmatprep.subr.mxu0 0.0
      %2427 = vmatpush1.msra.mxu0 %v2422
      %2428 = vmatprep.subr.mxu0 0.0
      %2429 = vmatpush1.msra.mxu0 0.0
      %2430 = vmatprep.subr.mxu0 0.0
      %2431 = vmatpush1.msra.mxu0 0.0
      %2432 = vmatprep.subr.mxu0 0.0
      %2433 = vmatpush1.msra.mxu0 0.0
      %2434 = vmatprep.subr.mxu0 0.0
      %2435 = vmatpush1.msra.mxu0 0.0
      %2436 = vmatprep.subr.mxu0 0.0
      %2437 = vmatpush1.msra.mxu0 0.0
      %2438 = vmatprep.subr.mxu0 0.0
      %2439 = vmatpush1.msra.mxu0 0.0
      %2440 = vmatprep.subr.mxu0 0.0
      %2441 = vmatpush1.msra.mxu0 0.0
      %2442 = vmatprep.subr.mxu0 0.0
      %2443 = vmatpush1.msra.mxu0 0.0
      %2444 = vmatprep.subr.mxu0 0.0
      %2445 = vmatpush1.msra.mxu0 0.0
      %2446 = vmatprep.subr.mxu0 0.0
      %2447 = vmatpush1.msra.mxu0 0.0
      %2448 = vmatprep.subr.mxu0 0.0
      %2449 = vmatpush1.msra.mxu0 0.0
      %2450 = vmatprep.subr.mxu0 0.0
      %2451 = vmatpush1.msra.mxu0 0.0
      %2452 = vmatprep.subr.mxu0 0.0
      %2453 = vmatpush1.msra.mxu0 0.0
      %2454 = vmatprep.subr.mxu0 0.0
      %2455 = vmatpush1.msra.mxu0 0.0
      %2456 = vmatprep.subr.mxu0 0.0
      %2457 = vmatpush1.msra.mxu0 0.0
      %2458 = vmatprep.subr.mxu0 0.0
      %2459 = vmatpush1.msra.mxu0 0.0
      %2460 = vmatprep.subr.mxu0 0.0
      %2461 = vmatpush1.msra.mxu0 0.0
      %2462 = vmatprep.subr.mxu0 0.0
      %2463 = vmatpush1.msra.mxu0 0.0
      %2464 = vmatprep.subr.mxu0 0.0
      %2465 = vmatpush1.msra.mxu0 0.0
      %2466 = vmatprep.subr.mxu0 0.0
      %2467 = vmatpush1.msra.mxu0 0.0
      %2468 = vmatprep.subr.mxu0 0.0
      %2469 = vmatpush1.msra.mxu0 0.0
      %2470 = vmatprep.subr.mxu0 0.0
      %2471 = vmatpush1.msra.mxu0 0.0
      %2472 = vmatprep.subr.mxu0 0.0
      %2473 = vmatpush1.msra.mxu0 0.0
      %2474 = vmatprep.subr.mxu0 0.0
      %2475 = vmatpush1.msra.mxu0 0.0
      %2476 = vmatprep.subr.mxu0 0.0
      %2477 = vmatpush1.msra.mxu0 0.0
      %2478 = vmatprep.subr.mxu0 0.0
      %2479 = vmatpush1.msra.mxu0 0.0
      %2480 = vmatprep.subr.mxu0 0.0
      %2481 = vmatpush1.msra.mxu0 0.0
      %2482 = vmatprep.subr.mxu0 0.0
      %2483 = vmatpush1.msra.mxu0 0.0
      %2484 = vmatprep.subr.mxu0 0.0
      %2485 = vmatpush1.msra.mxu0 0.0
      %2486 = vmatprep.subr.mxu0 0.0
      %2487 = vmatpush1.msra.mxu0 0.0
      %2488 = vmatprep.mubr.f32.mxu0 0.0
      %2489 = vmatmul.mubr.f32.gmra.mrb[0].mxu0 %v2419
      %v2490 = vpop.f32.mrb[0].mxu0
      %v2491 = vadd.f32 0.0, %v2490
      %v2492 = vpop.f32.mrb[0].mxu0
      %2493 = vdwg.mxu0
      %v2495 = vsel %vm173, %v2412, 0
      %v2498 = vsel %vm177, %v2413, 0
      %2500 = vmatprep.subr.mxu0 0.0
      %2501 = vmatpush1.msra.mxu0 %v2498
      %2502 = vmatprep.subr.mxu0 0.0
      %2503 = vmatpush1.msra.mxu0 0.0
      %2504 = vmatprep.subr.mxu0 0.0
      %2505 = vmatpush1.msra.mxu0 0.0
      %2506 = vmatprep.subr.mxu0 0.0
      %2507 = vmatpush1.msra.mxu0 0.0
      %2508 = vmatprep.subr.mxu0 0.0
      %2509 = vmatpush1.msra.mxu0 0.0
      %2510 = vmatprep.subr.mxu0 0.0
      %2511 = vmatpush1.msra.mxu0 0.0
      %2512 = vmatprep.subr.mxu0 0.0
      %2513 = vmatpush1.msra.mxu0 0.0
      %2514 = vmatprep.subr.mxu0 0.0
      %2515 = vmatpush1.msra.mxu0 0.0
      %2516 = vmatprep.subr.mxu0 0.0
      %2517 = vmatpush1.msra.mxu0 0.0
      %2518 = vmatprep.subr.mxu0 0.0
      %2519 = vmatpush1.msra.mxu0 0.0
      %2520 = vmatprep.subr.mxu0 0.0
      %2521 = vmatpush1.msra.mxu0 0.0
      %2522 = vmatprep.subr.mxu0 0.0
      %2523 = vmatpush1.msra.mxu0 0.0
      %2524 = vmatprep.subr.mxu0 0.0
      %2525 = vmatpush1.msra.mxu0 0.0
      %2526 = vmatprep.subr.mxu0 0.0
      %2527 = vmatpush1.msra.mxu0 0.0
      %2528 = vmatprep.subr.mxu0 0.0
      %2529 = vmatpush1.msra.mxu0 0.0
      %2530 = vmatprep.subr.mxu0 0.0
      %2531 = vmatpush1.msra.mxu0 0.0
      %2532 = vmatprep.subr.mxu0 0.0
      %2533 = vmatpush1.msra.mxu0 0.0
      %2534 = vmatprep.subr.mxu0 0.0
      %2535 = vmatpush1.msra.mxu0 0.0
      %2536 = vmatprep.subr.mxu0 0.0
      %2537 = vmatpush1.msra.mxu0 0.0
      %2538 = vmatprep.subr.mxu0 0.0
      %2539 = vmatpush1.msra.mxu0 0.0
      %2540 = vmatprep.subr.mxu0 0.0
      %2541 = vmatpush1.msra.mxu0 0.0
      %2542 = vmatprep.subr.mxu0 0.0
      %2543 = vmatpush1.msra.mxu0 0.0
      %2544 = vmatprep.subr.mxu0 0.0
      %2545 = vmatpush1.msra.mxu0 0.0
      %2546 = vmatprep.subr.mxu0 0.0
      %2547 = vmatpush1.msra.mxu0 0.0
      %2548 = vmatprep.subr.mxu0 0.0
      %2549 = vmatpush1.msra.mxu0 0.0
      %2550 = vmatprep.subr.mxu0 0.0
      %2551 = vmatpush1.msra.mxu0 0.0
      %2552 = vmatprep.subr.mxu0 0.0
      %2553 = vmatpush1.msra.mxu0 0.0
      %2554 = vmatprep.subr.mxu0 0.0
      %2555 = vmatpush1.msra.mxu0 0.0
      %2556 = vmatprep.subr.mxu0 0.0
      %2557 = vmatpush1.msra.mxu0 0.0
      %2558 = vmatprep.subr.mxu0 0.0
      %2559 = vmatpush1.msra.mxu0 0.0
      %2560 = vmatprep.subr.mxu0 0.0
      %2561 = vmatpush1.msra.mxu0 0.0
      %2562 = vmatprep.subr.mxu0 0.0
      %2563 = vmatpush1.msra.mxu0 0.0
      %2564 = vmatprep.mubr.f32.mxu0 0.0
      %2565 = vmatmul.mubr.f32.gmra.mrb[0].mxu0 %v2495
      %v2566 = vpop.f32.mrb[0].mxu0
      %v2567 = vadd.f32 %v2491, %v2566
      %v2568 = vpop.f32.mrb[0].mxu0
      %2569 = vdwg.mxu0
      %v2570 = vld [vmem:[%s3] sm:$0x1]
      %v2572 = vlaneseq
      %v2573 = vshrl.u32 %v2572, 7
      %v2574 = vsub.s32 0, %v2573
      %v2575 = vrot.slane %v2570, %v2574
      %v2577 = vadd.f32 %v2567, %v2575
      %v2578 = vtanh.pop %v2577
      %v2579 = vmul.f32 %v2578, 0.5
      %v2580 = vadd.f32 %v2579, 0.5
      %v2581 = vmul.f32 %v2580, %v1820
      %2583 = vrot.lane.b32.xlu0 %v2578, 64
      %v2584 = vpop.permute.xlu0 %2583
      %v2586 = vmul.f32 %v2580, %v2584
      %2588 = vrot.lane.b32.xlu0 %v2586, 32
      %v2589 = vpop.permute.xlu0 %2588
      %v2591 = vadd.f32 %v2581, %v2589
      %v2592 = vtanh.pop %v2591
      %2594 = vrot.lane.b32.xlu0 %v2592, 64
      %v2595 = vpop.permute.xlu0 %2594
      %v2597 = vmul.f32 %v2580, %v2595
      %v2598 = vld [vmem:[%s4] sm:$0xff]
      %v2599 = vld [vmem:[%s4 + $0x8] sm:$0x3f]
      %v2600 = vld [vmem:[%s5] sm:$0xff]
      %v2601 = vld [vmem:[%s5 + $0x8] sm:$0x3f]
      %2603 = vrot.lane.b32.xlu0 %v2383, 32
      %v2604 = vpop.permute.xlu0 %2603
      %v2605 = vsel %vm96, %v2604, 0
      %v2608 = vsel %vm99, %v2601, 0
      %2610 = vmatprep.subr.mxu0 0.0
      %2611 = vmatpush1.msra.mxu0 %v2600
      %2612 = vmatprep.subr.mxu0 0.0
      %2613 = vmatpush1.msra.mxu0 %v2608
      %2614 = vmatprep.subr.mxu0 0.0
      %2615 = vmatpush1.msra.mxu0 0.0
      %2616 = vmatprep.subr.mxu0 0.0
      %2617 = vmatpush1.msra.mxu0 0.0
      %2618 = vmatprep.subr.mxu0 0.0
      %2619 = vmatpush1.msra.mxu0 0.0
      %2620 = vmatprep.subr.mxu0 0.0
      %2621 = vmatpush1.msra.mxu0 0.0
      %2622 = vmatprep.subr.mxu0 0.0
      %2623 = vmatpush1.msra.mxu0 0.0
      %2624 = vmatprep.subr.mxu0 0.0
      %2625 = vmatpush1.msra.mxu0 0.0
      %2626 = vmatprep.subr.mxu0 0.0
      %2627 = vmatpush1.msra.mxu0 0.0
      %2628 = vmatprep.subr.mxu0 0.0
      %2629 = vmatpush1.msra.mxu0 0.0
      %2630 = vmatprep.subr.mxu0 0.0
      %2631 = vmatpush1.msra.mxu0 0.0
      %2632 = vmatprep.subr.mxu0 0.0
      %2633 = vmatpush1.msra.mxu0 0.0
      %2634 = vmatprep.subr.mxu0 0.0
      %2635 = vmatpush1.msra.mxu0 0.0
      %2636 = vmatprep.subr.mxu0 0.0
      %2637 = vmatpush1.msra.mxu0 0.0
      %2638 = vmatprep.subr.mxu0 0.0
      %2639 = vmatpush1.msra.mxu0 0.0
      %2640 = vmatprep.subr.mxu0 0.0
      %2641 = vmatpush1.msra.mxu0 0.0
      %2642 = vmatprep.subr.mxu0 0.0
      %2643 = vmatpush1.msra.mxu0 0.0
      %2644 = vmatprep.subr.mxu0 0.0
      %2645 = vmatpush1.msra.mxu0 0.0
      %2646 = vmatprep.subr.mxu0 0.0
      %2647 = vmatpush1.msra.mxu0 0.0
      %2648 = vmatprep.subr.mxu0 0.0
      %2649 = vmatpush1.msra.mxu0 0.0
      %2650 = vmatprep.subr.mxu0 0.0
      %2651 = vmatpush1.msra.mxu0 0.0
      %2652 = vmatprep.subr.mxu0 0.0
      %2653 = vmatpush1.msra.mxu0 0.0
      %2654 = vmatprep.subr.mxu0 0.0
      %2655 = vmatpush1.msra.mxu0 0.0
      %2656 = vmatprep.subr.mxu0 0.0
      %2657 = vmatpush1.msra.mxu0 0.0
      %2658 = vmatprep.subr.mxu0 0.0
      %2659 = vmatpush1.msra.mxu0 0.0
      %2660 = vmatprep.subr.mxu0 0.0
      %2661 = vmatpush1.msra.mxu0 0.0
      %2662 = vmatprep.subr.mxu0 0.0
      %2663 = vmatpush1.msra.mxu0 0.0
      %2664 = vmatprep.subr.mxu0 0.0
      %2665 = vmatpush1.msra.mxu0 0.0
      %2666 = vmatprep.subr.mxu0 0.0
      %2667 = vmatpush1.msra.mxu0 0.0
      %2668 = vmatprep.subr.mxu0 0.0
      %2669 = vmatpush1.msra.mxu0 0.0
      %2670 = vmatprep.subr.mxu0 0.0
      %2671 = vmatpush1.msra.mxu0 0.0
      %2672 = vmatprep.subr.mxu0 0.0
      %2673 = vmatpush1.msra.mxu0 0.0
      %2674 = vmatprep.mubr.f32.mxu0 0.0
      %2675 = vmatmul.mubr.f32.gmra.mrb[0].mxu0 %v2605
      %v2676 = vpop.f32.mrb[0].mxu0
      %v2677 = vadd.f32 0.0, %v2676
      %v2678 = vpop.f32.mrb[0].mxu0
      %2679 = vdwg.mxu0
      %v2681 = vsel %vm99, %v2599, 0
      %2683 = vmatprep.subr.mxu0 0.0
      %2684 = vmatpush1.msra.mxu0 %v2598
      %2685 = vmatprep.subr.mxu0 0.0
      %2686 = vmatpush1.msra.mxu0 %v2681
      %2687 = vmatprep.subr.mxu0 0.0
      %2688 = vmatpush1.msra.mxu0 0.0
      %2689 = vmatprep.subr.mxu0 0.0
      %2690 = vmatpush1.msra.mxu0 0.0
      %2691 = vmatprep.subr.mxu0 0.0
      %2692 = vmatpush1.msra.mxu0 0.0
      %2693 = vmatprep.subr.mxu0 0.0
      %2694 = vmatpush1.msra.mxu0 0.0
      %2695 = vmatprep.subr.mxu0 0.0
      %2696 = vmatpush1.msra.mxu0 0.0
      %2697 = vmatprep.subr.mxu0 0.0
      %2698 = vmatpush1.msra.mxu0 0.0
      %2699 = vmatprep.subr.mxu0 0.0
      %2700 = vmatpush1.msra.mxu0 0.0
      %2701 = vmatprep.subr.mxu0 0.0
      %2702 = vmatpush1.msra.mxu0 0.0
      %2703 = vmatprep.subr.mxu0 0.0
      %2704 = vmatpush1.msra.mxu0 0.0
      %2705 = vmatprep.subr.mxu0 0.0
      %2706 = vmatpush1.msra.mxu0 0.0
      %2707 = vmatprep.subr.mxu0 0.0
      %2708 = vmatpush1.msra.mxu0 0.0
      %2709 = vmatprep.subr.mxu0 0.0
      %2710 = vmatpush1.msra.mxu0 0.0
      %2711 = vmatprep.subr.mxu0 0.0
      %2712 = vmatpush1.msra.mxu0 0.0
      %2713 = vmatprep.subr.mxu0 0.0
      %2714 = vmatpush1.msra.mxu0 0.0
      %2715 = vmatprep.subr.mxu0 0.0
      %2716 = vmatpush1.msra.mxu0 0.0
      %2717 = vmatprep.subr.mxu0 0.0
      %2718 = vmatpush1.msra.mxu0 0.0
      %2719 = vmatprep.subr.mxu0 0.0
      %2720 = vmatpush1.msra.mxu0 0.0
      %2721 = vmatprep.subr.mxu0 0.0
      %2722 = vmatpush1.msra.mxu0 0.0
      %2723 = vmatprep.subr.mxu0 0.0
      %2724 = vmatpush1.msra.mxu0 0.0
      %2725 = vmatprep.subr.mxu0 0.0
      %2726 = vmatpush1.msra.mxu0 0.0
      %2727 = vmatprep.subr.mxu0 0.0
      %2728 = vmatpush1.msra.mxu0 0.0
      %2729 = vmatprep.subr.mxu0 0.0
      %2730 = vmatpush1.msra.mxu0 0.0
      %2731 = vmatprep.subr.mxu0 0.0
      %2732 = vmatpush1.msra.mxu0 0.0
      %2733 = vmatprep.subr.mxu0 0.0
      %2734 = vmatpush1.msra.mxu0 0.0
      %2735 = vmatprep.subr.mxu0 0.0
      %2736 = vmatpush1.msra.mxu0 0.0
      %2737 = vmatprep.subr.mxu0 0.0
      %2738 = vmatpush1.msra.mxu0 0.0
      %2739 = vmatprep.subr.mxu0 0.0
      %2740 = vmatpush1.msra.mxu0 0.0
      %2741 = vmatprep.subr.mxu0 0.0
      %2742 = vmatpush1.msra.mxu0 0.0
      %2743 = vmatprep.subr.mxu0 0.0
      %2744 = vmatpush1.msra.mxu0 0.0
      %2745 = vmatprep.subr.mxu0 0.0
      %2746 = vmatpush1.msra.mxu0 0.0
      %2747 = vmatprep.mubr.f32.mxu0 0.0
      %2748 = vmatmul.mubr.f32.gmra.mrb[0].mxu0 %v2419
      %v2749 = vpop.f32.mrb[0].mxu0
      %v2750 = vadd.f32 %v2677, %v2749
      %v2751 = vpop.f32.mrb[0].mxu0
      %2752 = vdwg.mxu0
      %v2753 = vld [vmem:[%s6] sm:$0x1]
      %v2755 = vlaneseq
      %v2756 = vshrl.u32 %v2755, 7
      %v2757 = vsub.s32 0, %v2756
      %v2758 = vrot.slane %v2753, %v2757
      %v2760 = vadd.f32 %v2750, %v2758
      %v2761 = vtanh.pop %v2760
      %v2762 = vmul.f32 %v2761, 0.5
      %v2763 = vadd.f32 %v2762, 0.5
      %v2764 = vmul.f32 %v2763, %v2384
      %2766 = vrot.lane.b32.xlu0 %v2761, 64
      %v2767 = vpop.permute.xlu0 %2766
      %v2769 = vmul.f32 %v2763, %v2767
      %2771 = vrot.lane.b32.xlu0 %v2769, 32
      %v2772 = vpop.permute.xlu0 %2771
      %v2774 = vadd.f32 %v2764, %v2772
      %v2775 = vtanh.pop %v2774
      %2777 = vrot.lane.b32.xlu0 %v2775, 64
      %v2778 = vpop.permute.xlu0 %2777
      %v2780 = vmul.f32 %v2763, %v2778
      %v2781 = vld [vmem:[%s7] sm:$0xff]
      %v2782 = vld [vmem:[%s7 + $0x8] sm:$0x3f]
      %v2783 = vld [vmem:[%s8] sm:$0xff]
      %v2784 = vld [vmem:[%s8 + $0x8] sm:$0xff]
      %v2785 = vld [vmem:[%s8 + $0x10] sm:$0xff]
      %v2786 = vld [vmem:[%s8 + $0x18] sm:$0xf]
      %2788 = vrot.lane.b32.xlu0 %v2389, 32
      %v2789 = vpop.permute.xlu0 %2788
      %v2790 = vsel %vm471, %v2789, 0
      %v2793 = vsel %vm474, %v2786, 0
      %2795 = vmatprep.subr.mxu0 0.0
      %2796 = vmatpush1.msra.mxu0 %v2783
      %2797 = vmatprep.subr.mxu0 0.0
      %2798 = vmatpush1.msra.mxu0 %v2784
      %2799 = vmatprep.subr.mxu0 0.0
      %2800 = vmatpush1.msra.mxu0 %v2785
      %2801 = vmatprep.subr.mxu0 0.0
      %2802 = vmatpush1.msra.mxu0 %v2793
      %2803 = vmatprep.subr.mxu0 0.0
      %2804 = vmatpush1.msra.mxu0 0.0
      %2805 = vmatprep.subr.mxu0 0.0
      %2806 = vmatpush1.msra.mxu0 0.0
      %2807 = vmatprep.subr.mxu0 0.0
      %2808 = vmatpush1.msra.mxu0 0.0
      %2809 = vmatprep.subr.mxu0 0.0
      %2810 = vmatpush1.msra.mxu0 0.0
      %2811 = vmatprep.subr.mxu0 0.0
      %2812 = vmatpush1.msra.mxu0 0.0
      %2813 = vmatprep.subr.mxu0 0.0
      %2814 = vmatpush1.msra.mxu0 0.0
      %2815 = vmatprep.subr.mxu0 0.0
      %2816 = vmatpush1.msra.mxu0 0.0
      %2817 = vmatprep.subr.mxu0 0.0
      %2818 = vmatpush1.msra.mxu0 0.0
      %2819 = vmatprep.subr.mxu0 0.0
      %2820 = vmatpush1.msra.mxu0 0.0
      %2821 = vmatprep.subr.mxu0 0.0
      %2822 = vmatpush1.msra.mxu0 0.0
      %2823 = vmatprep.subr.mxu0 0.0
      %2824 = vmatpush1.msra.mxu0 0.0
      %2825 = vmatprep.subr.mxu0 0.0
      %2826 = vmatpush1.msra.mxu0 0.0
      %2827 = vmatprep.subr.mxu0 0.0
      %2828 = vmatpush1.msra.mxu0 0.0
      %2829 = vmatprep.subr.mxu0 0.0
      %2830 = vmatpush1.msra.mxu0 0.0
      %2831 = vmatprep.subr.mxu0 0.0
      %2832 = vmatpush1.msra.mxu0 0.0
      %2833 = vmatprep.subr.mxu0 0.0
      %2834 = vmatpush1.msra.mxu0 0.0
      %2835 = vmatprep.subr.mxu0 0.0
      %2836 = vmatpush1.msra.mxu0 0.0
      %2837 = vmatprep.subr.mxu0 0.0
      %2838 = vmatpush1.msra.mxu0 0.0
      %2839 = vmatprep.subr.mxu0 0.0
      %2840 = vmatpush1.msra.mxu0 0.0
      %2841 = vmatprep.subr.mxu0 0.0
      %2842 = vmatpush1.msra.mxu0 0.0
      %2843 = vmatprep.subr.mxu0 0.0
      %2844 = vmatpush1.msra.mxu0 0.0
      %2845 = vmatprep.subr.mxu0 0.0
      %2846 = vmatpush1.msra.mxu0 0.0
      %2847 = vmatprep.subr.mxu0 0.0
      %2848 = vmatpush1.msra.mxu0 0.0
      %2849 = vmatprep.subr.mxu0 0.0
      %2850 = vmatpush1.msra.mxu0 0.0
      %2851 = vmatprep.subr.mxu0 0.0
      %2852 = vmatpush1.msra.mxu0 0.0
      %2853 = vmatprep.subr.mxu0 0.0
      %2854 = vmatpush1.msra.mxu0 0.0
      %2855 = vmatprep.subr.mxu0 0.0
      %2856 = vmatpush1.msra.mxu0 0.0
      %2857 = vmatprep.subr.mxu0 0.0
      %2858 = vmatpush1.msra.mxu0 0.0
      %2859 = vmatprep.mubr.f32.mxu0 0.0
      %2860 = vmatmul.mubr.f32.gmra.mrb[0].mxu0 %v2790
      %v2861 = vpop.f32.mrb[0].mxu0
      %v2862 = vadd.f32 0.0, %v2861
      %v2863 = vpop.f32.mrb[0].mxu0
      %2864 = vdwg.mxu0
      %v2866 = vsel %vm99, %v2782, 0
      %2868 = vmatprep.subr.mxu0 0.0
      %2869 = vmatpush1.msra.mxu0 %v2781
      %2870 = vmatprep.subr.mxu0 0.0
      %2871 = vmatpush1.msra.mxu0 %v2866
      %2872 = vmatprep.subr.mxu0 0.0
      %2873 = vmatpush1.msra.mxu0 0.0
      %2874 = vmatprep.subr.mxu0 0.0
      %2875 = vmatpush1.msra.mxu0 0.0
      %2876 = vmatprep.subr.mxu0 0.0
      %2877 = vmatpush1.msra.mxu0 0.0
      %2878 = vmatprep.subr.mxu0 0.0
      %2879 = vmatpush1.msra.mxu0 0.0
      %2880 = vmatprep.subr.mxu0 0.0
      %2881 = vmatpush1.msra.mxu0 0.0
      %2882 = vmatprep.subr.mxu0 0.0
      %2883 = vmatpush1.msra.mxu0 0.0
      %2884 = vmatprep.subr.mxu0 0.0
      %2885 = vmatpush1.msra.mxu0 0.0
      %2886 = vmatprep.subr.mxu0 0.0
      %2887 = vmatpush1.msra.mxu0 0.0
      %2888 = vmatprep.subr.mxu0 0.0
      %2889 = vmatpush1.msra.mxu0 0.0
      %2890 = vmatprep.subr.mxu0 0.0
      %2891 = vmatpush1.msra.mxu0 0.0
      %2892 = vmatprep.subr.mxu0 0.0
      %2893 = vmatpush1.msra.mxu0 0.0
      %2894 = vmatprep.subr.mxu0 0.0
      %2895 = vmatpush1.msra.mxu0 0.0
      %2896 = vmatprep.subr.mxu0 0.0
      %2897 = vmatpush1.msra.mxu0 0.0
      %2898 = vmatprep.subr.mxu0 0.0
      %2899 = vmatpush1.msra.mxu0 0.0
      %2900 = vmatprep.subr.mxu0 0.0
      %2901 = vmatpush1.msra.mxu0 0.0
      %2902 = vmatprep.subr.mxu0 0.0
      %2903 = vmatpush1.msra.mxu0 0.0
      %2904 = vmatprep.subr.mxu0 0.0
      %2905 = vmatpush1.msra.mxu0 0.0
      %2906 = vmatprep.subr.mxu0 0.0
      %2907 = vmatpush1.msra.mxu0 0.0
      %2908 = vmatprep.subr.mxu0 0.0
      %2909 = vmatpush1.msra.mxu0 0.0
      %2910 = vmatprep.subr.mxu0 0.0
      %2911 = vmatpush1.msra.mxu0 0.0
      %2912 = vmatprep.subr.mxu0 0.0
      %2913 = vmatpush1.msra.mxu0 0.0
      %2914 = vmatprep.subr.mxu0 0.0
      %2915 = vmatpush1.msra.mxu0 0.0
      %2916 = vmatprep.subr.mxu0 0.0
      %2917 = vmatpush1.msra.mxu0 0.0
      %2918 = vmatprep.subr.mxu0 0.0
      %2919 = vmatpush1.msra.mxu0 0.0
      %2920 = vmatprep.subr.mxu0 0.0
      %2921 = vmatpush1.msra.mxu0 0.0
      %2922 = vmatprep.subr.mxu0 0.0
      %2923 = vmatpush1.msra.mxu0 0.0
      %2924 = vmatprep.subr.mxu0 0.0
      %2925 = vmatpush1.msra.mxu0 0.0
      %2926 = vmatprep.subr.mxu0 0.0
      %2927 = vmatpush1.msra.mxu0 0.0
      %2928 = vmatprep.subr.mxu0 0.0
      %2929 = vmatpush1.msra.mxu0 0.0
      %2930 = vmatprep.subr.mxu0 0.0
      %2931 = vmatpush1.msra.mxu0 0.0
      %2932 = vmatprep.mubr.f32.mxu0 0.0
      %2933 = vmatmul.mubr.f32.gmra.mrb[0].mxu0 %v2605
      %v2934 = vpop.f32.mrb[0].mxu0
      %v2935 = vadd.f32 %v2862, %v2934
      %v2936 = vpop.f32.mrb[0].mxu0
      %2937 = vdwg.mxu0
      %v2938 = vld [vmem:[%s9] sm:$0x1]
      %v2940 = vlaneseq
      %v2941 = vshrl.u32 %v2940, 7
      %v2942 = vsub.s32 0, %v2941
      %v2943 = vrot.slane %v2938, %v2942
      %v2945 = vadd.f32 %v2935, %v2943
      %v2946 = vtanh.pop %v2945
      %v2947 = vmul.f32 %v2946, 0.5
      %v2948 = vadd.f32 %v2947, 0.5
      %v2949 = vmul.f32 %v2948, %v2390
      %2951 = vrot.lane.b32.xlu0 %v2946, 64
      %v2952 = vpop.permute.xlu0 %2951
      %v2954 = vmul.f32 %v2948, %v2952
      %2956 = vrot.lane.b32.xlu0 %v2954, 32
      %v2957 = vpop.permute.xlu0 %2956
      %v2959 = vadd.f32 %v2949, %v2957
      %v2960 = vtanh.pop %v2959
      %2962 = vrot.lane.b32.xlu0 %v2960, 64
      %v2963 = vpop.permute.xlu0 %2962
      %v2965 = vmul.f32 %v2948, %v2963
      %v2966 = vld [vmem:[%s10] sm:$0xff]
      %v2967 = vld [vmem:[%s10 + $0x8] sm:$0xff]
      %v2968 = vld [vmem:[%s10 + $0x10] sm:$0xff]
      %v2969 = vld [vmem:[%s10 + $0x18] sm:$0xf]
      %v2970 = vld [vmem:[%s11] sm:$0xff]
      %v2971 = vld [vmem:[%s11 + $0x8] sm:$0xff]
      %v2972 = vld [vmem:[%s11 + $0x10] sm:$0xff]
      %v2973 = vld [vmem:[%s11 + $0x18] sm:$0xf]
      %v2974 = vsel %vm471, %v2402, 0
      %v2977 = vsel %vm474, %v2973, 0
      %2979 = vmatprep.subr.mxu0 0.0
      %2980 = vmatpush1.msra.mxu0 %v2970
      %2981 = vmatprep.subr.mxu0 0.0
      %2982 = vmatpush1.msra.mxu0 %v2971
      %2983 = vmatprep.subr.mxu0 0.0
      %2984 = vmatpush1.msra.mxu0 %v2972
      %2985 = vmatprep.subr.mxu0 0.0
      %2986 = vmatpush1.msra.mxu0 %v2977
      %2987 = vmatprep.subr.mxu0 0.0
      %2988 = vmatpush1.msra.mxu0 0.0
      %2989 = vmatprep.subr.mxu0 0.0
      %2990 = vmatpush1.msra.mxu0 0.0
      %2991 = vmatprep.subr.mxu0 0.0
      %2992 = vmatpush1.msra.mxu0 0.0
      %2993 = vmatprep.subr.mxu0 0.0
      %2994 = vmatpush1.msra.mxu0 0.0
      %2995 = vmatprep.subr.mxu0 0.0
      %2996 = vmatpush1.msra.mxu0 0.0
      %2997 = vmatprep.subr.mxu0 0.0
      %2998 = vmatpush1.msra.mxu0 0.0
      %2999 = vmatprep.subr.mxu0 0.0
      %3000 = vmatpush1.msra.mxu0 0.0
      %3001 = vmatprep.subr.mxu0 0.0
      %3002 = vmatpush1.msra.mxu0 0.0
      %3003 = vmatprep.subr.mxu0 0.0
      %3004 = vmatpush1.msra.mxu0 0.0
      %3005 = vmatprep.subr.mxu0 0.0
      %3006 = vmatpush1.msra.mxu0 0.0
      %3007 = vmatprep.subr.mxu0 0.0
      %3008 = vmatpush1.msra.mxu0 0.0
      %3009 = vmatprep.subr.mxu0 0.0
      %3010 = vmatpush1.msra.mxu0 0.0
      %3011 = vmatprep.subr.mxu0 0.0
      %3012 = vmatpush1.msra.mxu0 0.0
      %3013 = vmatprep.subr.mxu0 0.0
      %3014 = vmatpush1.msra.mxu0 0.0
      %3015 = vmatprep.subr.mxu0 0.0
      %3016 = vmatpush1.msra.mxu0 0.0
      %3017 = vmatprep.subr.mxu0 0.0
      %3018 = vmatpush1.msra.mxu0 0.0
      %3019 = vmatprep.subr.mxu0 0.0
      %3020 = vmatpush1.msra.mxu0 0.0
      %3021 = vmatprep.subr.mxu0 0.0
      %3022 = vmatpush1.msra.mxu0 0.0
      %3023 = vmatprep.subr.mxu0 0.0
      %3024 = vmatpush1.msra.mxu0 0.0
      %3025 = vmatprep.subr.mxu0 0.0
      %3026 = vmatpush1.msra.mxu0 0.0
      %3027 = vmatprep.subr.mxu0 0.0
      %3028 = vmatpush1.msra.mxu0 0.0
      %3029 = vmatprep.subr.mxu0 0.0
      %3030 = vmatpush1.msra.mxu0 0.0
      %3031 = vmatprep.subr.mxu0 0.0
      %3032 = vmatpush1.msra.mxu0 0.0
      %3033 = vmatprep.subr.mxu0 0.0
      %3034 = vmatpush1.msra.mxu0 0.0
      %3035 = vmatprep.subr.mxu0 0.0
      %3036 = vmatpush1.msra.mxu0 0.0
      %3037 = vmatprep.subr.mxu0 0.0
      %3038 = vmatpush1.msra.mxu0 0.0
      %3039 = vmatprep.subr.mxu0 0.0
      %3040 = vmatpush1.msra.mxu0 0.0
      %3041 = vmatprep.subr.mxu0 0.0
      %3042 = vmatpush1.msra.mxu0 0.0
      %3043 = vmatprep.mubr.f32.mxu0 0.0
      %3044 = vmatmul.mubr.f32.gmra.mrb[0].mxu0 %v2974
      %v3045 = vpop.f32.mrb[0].mxu0
      %v3046 = vadd.f32 0.0, %v3045
      %v3047 = vpop.f32.mrb[0].mxu0
      %3048 = vdwg.mxu0
      %v3050 = vsel %vm474, %v2969, 0
      %3052 = vmatprep.subr.mxu0 0.0
      %3053 = vmatpush1.msra.mxu0 %v2966
      %3054 = vmatprep.subr.mxu0 0.0
      %3055 = vmatpush1.msra.mxu0 %v2967
      %3056 = vmatprep.subr.mxu0 0.0
      %3057 = vmatpush1.msra.mxu0 %v2968
      %3058 = vmatprep.subr.mxu0 0.0
      %3059 = vmatpush1.msra.mxu0 %v3050
      %3060 = vmatprep.subr.mxu0 0.0
      %3061 = vmatpush1.msra.mxu0 0.0
      %3062 = vmatprep.subr.mxu0 0.0
      %3063 = vmatpush1.msra.mxu0 0.0
      %3064 = vmatprep.subr.mxu0 0.0
      %3065 = vmatpush1.msra.mxu0 0.0
      %3066 = vmatprep.subr.mxu0 0.0
      %3067 = vmatpush1.msra.mxu0 0.0
      %3068 = vmatprep.subr.mxu0 0.0
      %3069 = vmatpush1.msra.mxu0 0.0
      %3070 = vmatprep.subr.mxu0 0.0
      %3071 = vmatpush1.msra.mxu0 0.0
      %3072 = vmatprep.subr.mxu0 0.0
      %3073 = vmatpush1.msra.mxu0 0.0
      %3074 = vmatprep.subr.mxu0 0.0
      %3075 = vmatpush1.msra.mxu0 0.0
      %3076 = vmatprep.subr.mxu0 0.0
      %3077 = vmatpush1.msra.mxu0 0.0
      %3078 = vmatprep.subr.mxu0 0.0
      %3079 = vmatpush1.msra.mxu0 0.0
      %3080 = vmatprep.subr.mxu0 0.0
      %3081 = vmatpush1.msra.mxu0 0.0
      %3082 = vmatprep.subr.mxu0 0.0
      %3083 = vmatpush1.msra.mxu0 0.0
      %3084 = vmatprep.subr.mxu0 0.0
      %3085 = vmatpush1.msra.mxu0 0.0
      %3086 = vmatprep.subr.mxu0 0.0
      %3087 = vmatpush1.msra.mxu0 0.0
      %3088 = vmatprep.subr.mxu0 0.0
      %3089 = vmatpush1.msra.mxu0 0.0
      %3090 = vmatprep.subr.mxu0 0.0
      %3091 = vmatpush1.msra.mxu0 0.0
      %3092 = vmatprep.subr.mxu0 0.0
      %3093 = vmatpush1.msra.mxu0 0.0
      %3094 = vmatprep.subr.mxu0 0.0
      %3095 = vmatpush1.msra.mxu0 0.0
      %3096 = vmatprep.subr.mxu0 0.0
      %3097 = vmatpush1.msra.mxu0 0.0
      %3098 = vmatprep.subr.mxu0 0.0
      %3099 = vmatpush1.msra.mxu0 0.0
      %3100 = vmatprep.subr.mxu0 0.0
      %3101 = vmatpush1.msra.mxu0 0.0
      %3102 = vmatprep.subr.mxu0 0.0
      %3103 = vmatpush1.msra.mxu0 0.0
      %3104 = vmatprep.subr.mxu0 0.0
      %3105 = vmatpush1.msra.mxu0 0.0
      %3106 = vmatprep.subr.mxu0 0.0
      %3107 = vmatpush1.msra.mxu0 0.0
      %3108 = vmatprep.subr.mxu0 0.0
      %3109 = vmatpush1.msra.mxu0 0.0
      %3110 = vmatprep.subr.mxu0 0.0
      %3111 = vmatpush1.msra.mxu0 0.0
      %3112 = vmatprep.subr.mxu0 0.0
      %3113 = vmatpush1.msra.mxu0 0.0
      %3114 = vmatprep.subr.mxu0 0.0
      %3115 = vmatpush1.msra.mxu0 0.0
      %3116 = vmatprep.mubr.f32.mxu0 0.0
      %3117 = vmatmul.mubr.f32.gmra.mrb[0].mxu0 %v2790
      %v3118 = vpop.f32.mrb[0].mxu0
      %v3119 = vadd.f32 %v3046, %v3118
      %v3120 = vpop.f32.mrb[0].mxu0
      %3121 = vdwg.mxu0
      %v3122 = vld [vmem:[%s12] sm:$0x1]
      %v3124 = vlaneseq
      %v3125 = vshrl.u32 %v3124, 7
      %v3126 = vsub.s32 0, %v3125
      %v3127 = vrot.slane %v3122, %v3126
      %v3129 = vadd.f32 %v3119, %v3127
      %v3130 = vtanh.pop %v3129
      %v3131 = vmul.f32 %v3130, 0.5
      %v3132 = vadd.f32 %v3131, 0.5
      %v3133 = vmul.f32 %v3132, %v2396
      %3135 = vrot.lane.b32.xlu0 %v3130, 64
      %v3136 = vpop.permute.xlu0 %3135
      %v3138 = vmul.f32 %v3132, %v3136
      %3140 = vrot.lane.b32.xlu0 %v3138, 32
      %v3141 = vpop.permute.xlu0 %3140
      %v3143 = vadd.f32 %v3133, %v3141
      %v3144 = vtanh.pop %v3143
      %3146 = vrot.lane.b32.xlu0 %v3144, 64
      %v3147 = vpop.permute.xlu0 %3146
      %v3149 = vmul.f32 %v3132, %v3147
      %p3150 = scmp.ge.s32.totalorder %s2407, 1
      %s3151 = scalar_select %p3150, 1, 0
      %v3152 = vstv %s3151
      %vm3153 = vcmp.eq.s32.totalorder %v3152, 1
      %v3154 = vsel %vm3153, %v2780, 0.0
      %v3155 = vsel %vm3153, %v2774, 0.0
      %p3156 = scmp.ge.s32.totalorder %s2407, 2
      %s3157 = scalar_select %p3156, 1, 0
      %v3158 = vstv %s3157
      %vm3159 = vcmp.eq.s32.totalorder %v3158, 1
      %v3160 = vsel %vm3159, %v2965, 0.0
      %v3161 = vsel %vm3159, %v2959, 0.0
      %p3162 = scmp.ge.s32.totalorder %s2407, 3
      %s3163 = scalar_select %p3162, 1, 0
      %v3164 = vstv %s3163
      %vm3165 = vcmp.eq.s32.totalorder %v3164, 1
      %v3166 = vsel %vm3165, %v3149, 0.0
      %v3167 = vsel %vm3165, %v3143, 0.0
      %p3168 = scmp.gt.s32.totalorder %s84, 0
      %s3169 = scalar_select %p3168, %s84, 0
      %3171 = vrot.lane.b32.xlu0 %v3166, 32
      %v3172 = vpop.permute.xlu0 %3171
      %s3174 = smul.u32 %s3169, 2
      %s3175 = scalar_lea.vmem %s13, %s3174
      %3176 = vst.msk [vmem:[%s3175] sm:$0x3] %vm863, %v3172
    $region66: #{_lambda_.1} parent=1 // loop_footer
      %s75 = sadd.s32 1, %s71
    $region67: #{_lambda_.1} parent=1 // loop_footer_branch
      %70 = sbr.rel target = $region63
    $region68: #{_lambda_.1} parent=1 // loop_exit
      _
    %v3177 = vld [vmem:[%s4] sm:$0xff]
    %v3178 = vld [vmem:[%s4 + $0x8] sm:$0x3f]
    %v3179 = vld [vmem:[%s5] sm:$0xff]
    %v3180 = vld [vmem:[%s5 + $0x8] sm:$0x3f]
    %3182 = vrot.lane.b32.xlu0 %v78, 32
    %v3183 = vpop.permute.xlu0 %3182
    %vm3184 = vcmask 113664
    %v3185 = vsel %vm3184, %v3183, 0
    %vm3187 = vcmask 1045504
    %v3189 = vsel %vm3187, %v3180, 0
    %3191 = vmatprep.subr.mxu0 0.0
    %3192 = vmatpush1.msra.mxu0 %v3179
    %3193 = vmatprep.subr.mxu0 0.0
    %3194 = vmatpush1.msra.mxu0 %v3189
    %3195 = vmatprep.subr.mxu0 0.0
    %3196 = vmatpush1.msra.mxu0 0.0
    %3197 = vmatprep.subr.mxu0 0.0
    %3198 = vmatpush1.msra.mxu0 0.0
    %3199 = vmatprep.subr.mxu0 0.0
    %3200 = vmatpush1.msra.mxu0 0.0
    %3201 = vmatprep.subr.mxu0 0.0
    %3202 = vmatpush1.msra.mxu0 0.0
    %3203 = vmatprep.subr.mxu0 0.0
    %3204 = vmatpush1.msra.mxu0 0.0
    %3205 = vmatprep.subr.mxu0 0.0
    %3206 = vmatpush1.msra.mxu0 0.0
    %3207 = vmatprep.subr.mxu0 0.0
    %3208 = vmatpush1.msra.mxu0 0.0
    %3209 = vmatprep.subr.mxu0 0.0
    %3210 = vmatpush1.msra.mxu0 0.0
    %3211 = vmatprep.subr.mxu0 0.0
    %3212 = vmatpush1.msra.mxu0 0.0
    %3213 = vmatprep.subr.mxu0 0.0
    %3214 = vmatpush1.msra.mxu0 0.0
    %3215 = vmatprep.subr.mxu0 0.0
    %3216 = vmatpush1.msra.mxu0 0.0
    %3217 = vmatprep.subr.mxu0 0.0
    %3218 = vmatpush1.msra.mxu0 0.0
    %3219 = vmatprep.subr.mxu0 0.0
    %3220 = vmatpush1.msra.mxu0 0.0
    %3221 = vmatprep.subr.mxu0 0.0
    %3222 = vmatpush1.msra.mxu0 0.0
    %3223 = vmatprep.subr.mxu0 0.0
    %3224 = vmatpush1.msra.mxu0 0.0
    %3225 = vmatprep.subr.mxu0 0.0
    %3226 = vmatpush1.msra.mxu0 0.0
    %3227 = vmatprep.subr.mxu0 0.0
    %3228 = vmatpush1.msra.mxu0 0.0
    %3229 = vmatprep.subr.mxu0 0.0
    %3230 = vmatpush1.msra.mxu0 0.0
    %3231 = vmatprep.subr.mxu0 0.0
    %3232 = vmatpush1.msra.mxu0 0.0
    %3233 = vmatprep.subr.mxu0 0.0
    %3234 = vmatpush1.msra.mxu0 0.0
    %3235 = vmatprep.subr.mxu0 0.0
    %3236 = vmatpush1.msra.mxu0 0.0
    %3237 = vmatprep.subr.mxu0 0.0
    %3238 = vmatpush1.msra.mxu0 0.0
    %3239 = vmatprep.subr.mxu0 0.0
    %3240 = vmatpush1.msra.mxu0 0.0
    %3241 = vmatprep.subr.mxu0 0.0
    %3242 = vmatpush1.msra.mxu0 0.0
    %3243 = vmatprep.subr.mxu0 0.0
    %3244 = vmatpush1.msra.mxu0 0.0
    %3245 = vmatprep.subr.mxu0 0.0
    %3246 = vmatpush1.msra.mxu0 0.0
    %3247 = vmatprep.subr.mxu0 0.0
    %3248 = vmatpush1.msra.mxu0 0.0
    %3249 = vmatprep.subr.mxu0 0.0
    %3250 = vmatpush1.msra.mxu0 0.0
    %3251 = vmatprep.subr.mxu0 0.0
    %3252 = vmatpush1.msra.mxu0 0.0
    %3253 = vmatprep.subr.mxu0 0.0
    %3254 = vmatpush1.msra.mxu0 0.0
    %3255 = vmatprep.mubr.f32.mxu0 0.0
    %3256 = vmatmul.mubr.f32.gmra.mrb[0].mxu0 %v3185
    %v3257 = vpop.f32.mrb[0].mxu0
    %v3258 = vadd.f32 0.0, %v3257
    %v3259 = vpop.f32.mrb[0].mxu0
    %3260 = vdwg.mxu0
    %3262 = vrot.lane.b32.xlu0 %v76, 32
    %v3263 = vpop.permute.xlu0 %3262
    %v3264 = vsel %vm3184, %v3263, 0
    %v3267 = vsel %vm3187, %v3178, 0
    %3269 = vmatprep.subr.mxu0 0.0
    %3270 = vmatpush1.msra.mxu0 %v3177
    %3271 = vmatprep.subr.mxu0 0.0
    %3272 = vmatpush1.msra.mxu0 %v3267
    %3273 = vmatprep.subr.mxu0 0.0
    %3274 = vmatpush1.msra.mxu0 0.0
    %3275 = vmatprep.subr.mxu0 0.0
    %3276 = vmatpush1.msra.mxu0 0.0
    %3277 = vmatprep.subr.mxu0 0.0
    %3278 = vmatpush1.msra.mxu0 0.0
    %3279 = vmatprep.subr.mxu0 0.0
    %3280 = vmatpush1.msra.mxu0 0.0
    %3281 = vmatprep.subr.mxu0 0.0
    %3282 = vmatpush1.msra.mxu0 0.0
    %3283 = vmatprep.subr.mxu0 0.0
    %3284 = vmatpush1.msra.mxu0 0.0
    %3285 = vmatprep.subr.mxu0 0.0
    %3286 = vmatpush1.msra.mxu0 0.0
    %3287 = vmatprep.subr.mxu0 0.0
    %3288 = vmatpush1.msra.mxu0 0.0
    %3289 = vmatprep.subr.mxu0 0.0
    %3290 = vmatpush1.msra.mxu0 0.0
    %3291 = vmatprep.subr.mxu0 0.0
    %3292 = vmatpush1.msra.mxu0 0.0
    %3293 = vmatprep.subr.mxu0 0.0
    %3294 = vmatpush1.msra.mxu0 0.0
    %3295 = vmatprep.subr.mxu0 0.0
    %3296 = vmatpush1.msra.mxu0 0.0
    %3297 = vmatprep.subr.mxu0 0.0
    %3298 = vmatpush1.msra.mxu0 0.0
    %3299 = vmatprep.subr.mxu0 0.0
    %3300 = vmatpush1.msra.mxu0 0.0
    %3301 = vmatprep.subr.mxu0 0.0
    %3302 = vmatpush1.msra.mxu0 0.0
    %3303 = vmatprep.subr.mxu0 0.0
    %3304 = vmatpush1.msra.mxu0 0.0
    %3305 = vmatprep.subr.mxu0 0.0
    %3306 = vmatpush1.msra.mxu0 0.0
    %3307 = vmatprep.subr.mxu0 0.0
    %3308 = vmatpush1.msra.mxu0 0.0
    %3309 = vmatprep.subr.mxu0 0.0
    %3310 = vmatpush1.msra.mxu0 0.0
    %3311 = vmatprep.subr.mxu0 0.0
    %3312 = vmatpush1.msra.mxu0 0.0
    %3313 = vmatprep.subr.mxu0 0.0
    %3314 = vmatpush1.msra.mxu0 0.0
    %3315 = vmatprep.subr.mxu0 0.0
    %3316 = vmatpush1.msra.mxu0 0.0
    %3317 = vmatprep.subr.mxu0 0.0
    %3318 = vmatpush1.msra.mxu0 0.0
    %3319 = vmatprep.subr.mxu0 0.0
    %3320 = vmatpush1.msra.mxu0 0.0
    %3321 = vmatprep.subr.mxu0 0.0
    %3322 = vmatpush1.msra.mxu0 0.0
    %3323 = vmatprep.subr.mxu0 0.0
    %3324 = vmatpush1.msra.mxu0 0.0
    %3325 = vmatprep.subr.mxu0 0.0
    %3326 = vmatpush1.msra.mxu0 0.0
    %3327 = vmatprep.subr.mxu0 0.0
    %3328 = vmatpush1.msra.mxu0 0.0
    %3329 = vmatprep.subr.mxu0 0.0
    %3330 = vmatpush1.msra.mxu0 0.0
    %3331 = vmatprep.subr.mxu0 0.0
    %3332 = vmatpush1.msra.mxu0 0.0
    %3333 = vmatprep.mubr.f32.mxu0 0.0
    %3334 = vmatmul.mubr.f32.gmra.mrb[0].mxu0 %v3264
    %v3335 = vpop.f32.mrb[0].mxu0
    %v3336 = vadd.f32 %v3258, %v3335
    %v3337 = vpop.f32.mrb[0].mxu0
    %3338 = vdwg.mxu0
    %v3339 = vld [vmem:[%s6] sm:$0x1]
    %v3341 = vlaneseq
    %v3342 = vshrl.u32 %v3341, 7
    %v3343 = vsub.s32 0, %v3342
    %v3344 = vrot.slane %v3339, %v3343
    %v3346 = vadd.f32 %v3336, %v3344
    %v3347 = vtanh.pop %v3346
    %v3348 = vmul.f32 %v3347, 0.5
    %v3349 = vadd.f32 %v3348, 0.5
    %v3350 = vmul.f32 %v3349, %v79
    %3352 = vrot.lane.b32.xlu0 %v3347, 64
    %v3353 = vpop.permute.xlu0 %3352
    %v3355 = vmul.f32 %v3349, %v3353
    %3357 = vrot.lane.b32.xlu0 %v3355, 32
    %v3358 = vpop.permute.xlu0 %3357
    %v3360 = vadd.f32 %v3350, %v3358
    %v3361 = vtanh.pop %v3360
    %3363 = vrot.lane.b32.xlu0 %v3361, 64
    %v3364 = vpop.permute.xlu0 %3363
    %v3366 = vmul.f32 %v3349, %v3364
    %v3367 = vld [vmem:[%s7] sm:$0xff]
    %v3368 = vld [vmem:[%s7 + $0x8] sm:$0x3f]
    %v3369 = vld [vmem:[%s8] sm:$0xff]
    %v3370 = vld [vmem:[%s8 + $0x8] sm:$0xff]
    %v3371 = vld [vmem:[%s8 + $0x10] sm:$0xff]
    %v3372 = vld [vmem:[%s8 + $0x18] sm:$0xf]
    %3374 = vrot.lane.b32.xlu0 %v80, 32
    %v3375 = vpop.permute.xlu0 %3374
    %vm3376 = vcmask 228352
    %v3377 = vsel %vm3376, %v3375, 0
    %vm3379 = vcmask 1043456
    %v3381 = vsel %vm3379, %v3372, 0
    %3383 = vmatprep.subr.mxu0 0.0
    %3384 = vmatpush1.msra.mxu0 %v3369
    %3385 = vmatprep.subr.mxu0 0.0
    %3386 = vmatpush1.msra.mxu0 %v3370
    %3387 = vmatprep.subr.mxu0 0.0
    %3388 = vmatpush1.msra.mxu0 %v3371
    %3389 = vmatprep.subr.mxu0 0.0
    %3390 = vmatpush1.msra.mxu0 %v3381
    %3391 = vmatprep.subr.mxu0 0.0
    %3392 = vmatpush1.msra.mxu0 0.0
    %3393 = vmatprep.subr.mxu0 0.0
    %3394 = vmatpush1.msra.mxu0 0.0
    %3395 = vmatprep.subr.mxu0 0.0
    %3396 = vmatpush1.msra.mxu0 0.0
    %3397 = vmatprep.subr.mxu0 0.0
    %3398 = vmatpush1.msra.mxu0 0.0
    %3399 = vmatprep.subr.mxu0 0.0
    %3400 = vmatpush1.msra.mxu0 0.0
    %3401 = vmatprep.subr.mxu0 0.0
    %3402 = vmatpush1.msra.mxu0 0.0
    %3403 = vmatprep.subr.mxu0 0.0
    %3404 = vmatpush1.msra.mxu0 0.0
    %3405 = vmatprep.subr.mxu0 0.0
    %3406 = vmatpush1.msra.mxu0 0.0
    %3407 = vmatprep.subr.mxu0 0.0
    %3408 = vmatpush1.msra.mxu0 0.0
    %3409 = vmatprep.subr.mxu0 0.0
    %3410 = vmatpush1.msra.mxu0 0.0
    %3411 = vmatprep.subr.mxu0 0.0
    %3412 = vmatpush1.msra.mxu0 0.0
    %3413 = vmatprep.subr.mxu0 0.0
    %3414 = vmatpush1.msra.mxu0 0.0
    %3415 = vmatprep.subr.mxu0 0.0
    %3416 = vmatpush1.msra.mxu0 0.0
    %3417 = vmatprep.subr.mxu0 0.0
    %3418 = vmatpush1.msra.mxu0 0.0
    %3419 = vmatprep.subr.mxu0 0.0
    %3420 = vmatpush1.msra.mxu0 0.0
    %3421 = vmatprep.subr.mxu0 0.0
    %3422 = vmatpush1.msra.mxu0 0.0
    %3423 = vmatprep.subr.mxu0 0.0
    %3424 = vmatpush1.msra.mxu0 0.0
    %3425 = vmatprep.subr.mxu0 0.0
    %3426 = vmatpush1.msra.mxu0 0.0
    %3427 = vmatprep.subr.mxu0 0.0
    %3428 = vmatpush1.msra.mxu0 0.0
    %3429 = vmatprep.subr.mxu0 0.0
    %3430 = vmatpush1.msra.mxu0 0.0
    %3431 = vmatprep.subr.mxu0 0.0
    %3432 = vmatpush1.msra.mxu0 0.0
    %3433 = vmatprep.subr.mxu0 0.0
    %3434 = vmatpush1.msra.mxu0 0.0
    %3435 = vmatprep.subr.mxu0 0.0
    %3436 = vmatpush1.msra.mxu0 0.0
    %3437 = vmatprep.subr.mxu0 0.0
    %3438 = vmatpush1.msra.mxu0 0.0
    %3439 = vmatprep.subr.mxu0 0.0
    %3440 = vmatpush1.msra.mxu0 0.0
    %3441 = vmatprep.subr.mxu0 0.0
    %3442 = vmatpush1.msra.mxu0 0.0
    %3443 = vmatprep.subr.mxu0 0.0
    %3444 = vmatpush1.msra.mxu0 0.0
    %3445 = vmatprep.subr.mxu0 0.0
    %3446 = vmatpush1.msra.mxu0 0.0
    %3447 = vmatprep.mubr.f32.mxu0 0.0
    %3448 = vmatmul.mubr.f32.gmra.mrb[0].mxu0 %v3377
    %v3449 = vpop.f32.mrb[0].mxu0
    %v3450 = vadd.f32 0.0, %v3449
    %v3451 = vpop.f32.mrb[0].mxu0
    %3452 = vdwg.mxu0
    %v3454 = vsel %vm3187, %v3368, 0
    %3456 = vmatprep.subr.mxu0 0.0
    %3457 = vmatpush1.msra.mxu0 %v3367
    %3458 = vmatprep.subr.mxu0 0.0
    %3459 = vmatpush1.msra.mxu0 %v3454
    %3460 = vmatprep.subr.mxu0 0.0
    %3461 = vmatpush1.msra.mxu0 0.0
    %3462 = vmatprep.subr.mxu0 0.0
    %3463 = vmatpush1.msra.mxu0 0.0
    %3464 = vmatprep.subr.mxu0 0.0
    %3465 = vmatpush1.msra.mxu0 0.0
    %3466 = vmatprep.subr.mxu0 0.0
    %3467 = vmatpush1.msra.mxu0 0.0
    %3468 = vmatprep.subr.mxu0 0.0
    %3469 = vmatpush1.msra.mxu0 0.0
    %3470 = vmatprep.subr.mxu0 0.0
    %3471 = vmatpush1.msra.mxu0 0.0
    %3472 = vmatprep.subr.mxu0 0.0
    %3473 = vmatpush1.msra.mxu0 0.0
    %3474 = vmatprep.subr.mxu0 0.0
    %3475 = vmatpush1.msra.mxu0 0.0
    %3476 = vmatprep.subr.mxu0 0.0
    %3477 = vmatpush1.msra.mxu0 0.0
    %3478 = vmatprep.subr.mxu0 0.0
    %3479 = vmatpush1.msra.mxu0 0.0
    %3480 = vmatprep.subr.mxu0 0.0
    %3481 = vmatpush1.msra.mxu0 0.0
    %3482 = vmatprep.subr.mxu0 0.0
    %3483 = vmatpush1.msra.mxu0 0.0
    %3484 = vmatprep.subr.mxu0 0.0
    %3485 = vmatpush1.msra.mxu0 0.0
    %3486 = vmatprep.subr.mxu0 0.0
    %3487 = vmatpush1.msra.mxu0 0.0
    %3488 = vmatprep.subr.mxu0 0.0
    %3489 = vmatpush1.msra.mxu0 0.0
    %3490 = vmatprep.subr.mxu0 0.0
    %3491 = vmatpush1.msra.mxu0 0.0
    %3492 = vmatprep.subr.mxu0 0.0
    %3493 = vmatpush1.msra.mxu0 0.0
    %3494 = vmatprep.subr.mxu0 0.0
    %3495 = vmatpush1.msra.mxu0 0.0
    %3496 = vmatprep.subr.mxu0 0.0
    %3497 = vmatpush1.msra.mxu0 0.0
    %3498 = vmatprep.subr.mxu0 0.0
    %3499 = vmatpush1.msra.mxu0 0.0
    %3500 = vmatprep.subr.mxu0 0.0
    %3501 = vmatpush1.msra.mxu0 0.0
    %3502 = vmatprep.subr.mxu0 0.0
    %3503 = vmatpush1.msra.mxu0 0.0
    %3504 = vmatprep.subr.mxu0 0.0
    %3505 = vmatpush1.msra.mxu0 0.0
    %3506 = vmatprep.subr.mxu0 0.0
    %3507 = vmatpush1.msra.mxu0 0.0
    %3508 = vmatprep.subr.mxu0 0.0
    %3509 = vmatpush1.msra.mxu0 0.0
    %3510 = vmatprep.subr.mxu0 0.0
    %3511 = vmatpush1.msra.mxu0 0.0
    %3512 = vmatprep.subr.mxu0 0.0
    %3513 = vmatpush1.msra.mxu0 0.0
    %3514 = vmatprep.subr.mxu0 0.0
    %3515 = vmatpush1.msra.mxu0 0.0
    %3516 = vmatprep.subr.mxu0 0.0
    %3517 = vmatpush1.msra.mxu0 0.0
    %3518 = vmatprep.subr.mxu0 0.0
    %3519 = vmatpush1.msra.mxu0 0.0
    %3520 = vmatprep.mubr.f32.mxu0 0.0
    %3521 = vmatmul.mubr.f32.gmra.mrb[0].mxu0 %v3185
    %v3522 = vpop.f32.mrb[0].mxu0
    %v3523 = vadd.f32 %v3450, %v3522
    %v3524 = vpop.f32.mrb[0].mxu0
    %3525 = vdwg.mxu0
    %v3526 = vld [vmem:[%s9] sm:$0x1]
    %v3528 = vlaneseq
    %v3529 = vshrl.u32 %v3528, 7
    %v3530 = vsub.s32 0, %v3529
    %v3531 = vrot.slane %v3526, %v3530
    %v3533 = vadd.f32 %v3523, %v3531
    %v3534 = vtanh.pop %v3533
    %v3535 = vmul.f32 %v3534, 0.5
    %v3536 = vadd.f32 %v3535, 0.5
    %v3537 = vmul.f32 %v3536, %v81
    %3539 = vrot.lane.b32.xlu0 %v3534, 64
    %v3540 = vpop.permute.xlu0 %3539
    %v3542 = vmul.f32 %v3536, %v3540
    %3544 = vrot.lane.b32.xlu0 %v3542, 32
    %v3545 = vpop.permute.xlu0 %3544
    %v3547 = vadd.f32 %v3537, %v3545
    %v3548 = vtanh.pop %v3547
    %3550 = vrot.lane.b32.xlu0 %v3548, 64
    %v3551 = vpop.permute.xlu0 %3550
    %v3553 = vmul.f32 %v3536, %v3551
    %v3554 = vld [vmem:[%s10] sm:$0xff]
    %v3555 = vld [vmem:[%s10 + $0x8] sm:$0xff]
    %v3556 = vld [vmem:[%s10 + $0x10] sm:$0xff]
    %v3557 = vld [vmem:[%s10 + $0x18] sm:$0xf]
    %v3558 = vld [vmem:[%s11] sm:$0xff]
    %v3559 = vld [vmem:[%s11 + $0x8] sm:$0xff]
    %v3560 = vld [vmem:[%s11 + $0x10] sm:$0xff]
    %v3561 = vld [vmem:[%s11 + $0x18] sm:$0xf]
    %3563 = vrot.lane.b32.xlu0 %v82, 32
    %v3564 = vpop.permute.xlu0 %3563
    %v3565 = vsel %vm3376, %v3564, 0
    %v3568 = vsel %vm3379, %v3561, 0
    %3570 = vmatprep.subr.mxu0 0.0
    %3571 = vmatpush1.msra.mxu0 %v3558
    %3572 = vmatprep.subr.mxu0 0.0
    %3573 = vmatpush1.msra.mxu0 %v3559
    %3574 = vmatprep.subr.mxu0 0.0
    %3575 = vmatpush1.msra.mxu0 %v3560
    %3576 = vmatprep.subr.mxu0 0.0
    %3577 = vmatpush1.msra.mxu0 %v3568
    %3578 = vmatprep.subr.mxu0 0.0
    %3579 = vmatpush1.msra.mxu0 0.0
    %3580 = vmatprep.subr.mxu0 0.0
    %3581 = vmatpush1.msra.mxu0 0.0
    %3582 = vmatprep.subr.mxu0 0.0
    %3583 = vmatpush1.msra.mxu0 0.0
    %3584 = vmatprep.subr.mxu0 0.0
    %3585 = vmatpush1.msra.mxu0 0.0
    %3586 = vmatprep.subr.mxu0 0.0
    %3587 = vmatpush1.msra.mxu0 0.0
    %3588 = vmatprep.subr.mxu0 0.0
    %3589 = vmatpush1.msra.mxu0 0.0
    %3590 = vmatprep.subr.mxu0 0.0
    %3591 = vmatpush1.msra.mxu0 0.0
    %3592 = vmatprep.subr.mxu0 0.0
    %3593 = vmatpush1.msra.mxu0 0.0
    %3594 = vmatprep.subr.mxu0 0.0
    %3595 = vmatpush1.msra.mxu0 0.0
    %3596 = vmatprep.subr.mxu0 0.0
    %3597 = vmatpush1.msra.mxu0 0.0
    %3598 = vmatprep.subr.mxu0 0.0
    %3599 = vmatpush1.msra.mxu0 0.0
    %3600 = vmatprep.subr.mxu0 0.0
    %3601 = vmatpush1.msra.mxu0 0.0
    %3602 = vmatprep.subr.mxu0 0.0
    %3603 = vmatpush1.msra.mxu0 0.0
    %3604 = vmatprep.subr.mxu0 0.0
    %3605 = vmatpush1.msra.mxu0 0.0
    %3606 = vmatprep.subr.mxu0 0.0
    %3607 = vmatpush1.msra.mxu0 0.0
    %3608 = vmatprep.subr.mxu0 0.0
    %3609 = vmatpush1.msra.mxu0 0.0
    %3610 = vmatprep.subr.mxu0 0.0
    %3611 = vmatpush1.msra.mxu0 0.0
    %3612 = vmatprep.subr.mxu0 0.0
    %3613 = vmatpush1.msra.mxu0 0.0
    %3614 = vmatprep.subr.mxu0 0.0
    %3615 = vmatpush1.msra.mxu0 0.0
    %3616 = vmatprep.subr.mxu0 0.0
    %3617 = vmatpush1.msra.mxu0 0.0
    %3618 = vmatprep.subr.mxu0 0.0
    %3619 = vmatpush1.msra.mxu0 0.0
    %3620 = vmatprep.subr.mxu0 0.0
    %3621 = vmatpush1.msra.mxu0 0.0
    %3622 = vmatprep.subr.mxu0 0.0
    %3623 = vmatpush1.msra.mxu0 0.0
    %3624 = vmatprep.subr.mxu0 0.0
    %3625 = vmatpush1.msra.mxu0 0.0
    %3626 = vmatprep.subr.mxu0 0.0
    %3627 = vmatpush1.msra.mxu0 0.0
    %3628 = vmatprep.subr.mxu0 0.0
    %3629 = vmatpush1.msra.mxu0 0.0
    %3630 = vmatprep.subr.mxu0 0.0
    %3631 = vmatpush1.msra.mxu0 0.0
    %3632 = vmatprep.subr.mxu0 0.0
    %3633 = vmatpush1.msra.mxu0 0.0
    %3634 = vmatprep.mubr.f32.mxu0 0.0
    %3635 = vmatmul.mubr.f32.gmra.mrb[0].mxu0 %v3565
    %v3636 = vpop.f32.mrb[0].mxu0
    %v3637 = vadd.f32 0.0, %v3636
    %v3638 = vpop.f32.mrb[0].mxu0
    %3639 = vdwg.mxu0
    %v3641 = vsel %vm3379, %v3557, 0
    %3643 = vmatprep.subr.mxu0 0.0
    %3644 = vmatpush1.msra.mxu0 %v3554
    %3645 = vmatprep.subr.mxu0 0.0
    %3646 = vmatpush1.msra.mxu0 %v3555
    %3647 = vmatprep.subr.mxu0 0.0
    %3648 = vmatpush1.msra.mxu0 %v3556
    %3649 = vmatprep.subr.mxu0 0.0
    %3650 = vmatpush1.msra.mxu0 %v3641
    %3651 = vmatprep.subr.mxu0 0.0
    %3652 = vmatpush1.msra.mxu0 0.0
    %3653 = vmatprep.subr.mxu0 0.0
    %3654 = vmatpush1.msra.mxu0 0.0
    %3655 = vmatprep.subr.mxu0 0.0
    %3656 = vmatpush1.msra.mxu0 0.0
    %3657 = vmatprep.subr.mxu0 0.0
    %3658 = vmatpush1.msra.mxu0 0.0
    %3659 = vmatprep.subr.mxu0 0.0
    %3660 = vmatpush1.msra.mxu0 0.0
    %3661 = vmatprep.subr.mxu0 0.0
    %3662 = vmatpush1.msra.mxu0 0.0
    %3663 = vmatprep.subr.mxu0 0.0
    %3664 = vmatpush1.msra.mxu0 0.0
    %3665 = vmatprep.subr.mxu0 0.0
    %3666 = vmatpush1.msra.mxu0 0.0
    %3667 = vmatprep.subr.mxu0 0.0
    %3668 = vmatpush1.msra.mxu0 0.0
    %3669 = vmatprep.subr.mxu0 0.0
    %3670 = vmatpush1.msra.mxu0 0.0
    %3671 = vmatprep.subr.mxu0 0.0
    %3672 = vmatpush1.msra.mxu0 0.0
    %3673 = vmatprep.subr.mxu0 0.0
    %3674 = vmatpush1.msra.mxu0 0.0
    %3675 = vmatprep.subr.mxu0 0.0
    %3676 = vmatpush1.msra.mxu0 0.0
    %3677 = vmatprep.subr.mxu0 0.0
    %3678 = vmatpush1.msra.mxu0 0.0
    %3679 = vmatprep.subr.mxu0 0.0
    %3680 = vmatpush1.msra.mxu0 0.0
    %3681 = vmatprep.subr.mxu0 0.0
    %3682 = vmatpush1.msra.mxu0 0.0
    %3683 = vmatprep.subr.mxu0 0.0
    %3684 = vmatpush1.msra.mxu0 0.0
    %3685 = vmatprep.subr.mxu0 0.0
    %3686 = vmatpush1.msra.mxu0 0.0
    %3687 = vmatprep.subr.mxu0 0.0
    %3688 = vmatpush1.msra.mxu0 0.0
    %3689 = vmatprep.subr.mxu0 0.0
    %3690 = vmatpush1.msra.mxu0 0.0
    %3691 = vmatprep.subr.mxu0 0.0
    %3692 = vmatpush1.msra.mxu0 0.0
    %3693 = vmatprep.subr.mxu0 0.0
    %3694 = vmatpush1.msra.mxu0 0.0
    %3695 = vmatprep.subr.mxu0 0.0
    %3696 = vmatpush1.msra.mxu0 0.0
    %3697 = vmatprep.subr.mxu0 0.0
    %3698 = vmatpush1.msra.mxu0 0.0
    %3699 = vmatprep.subr.mxu0 0.0
    %3700 = vmatpush1.msra.mxu0 0.0
    %3701 = vmatprep.subr.mxu0 0.0
    %3702 = vmatpush1.msra.mxu0 0.0
    %3703 = vmatprep.subr.mxu0 0.0
    %3704 = vmatpush1.msra.mxu0 0.0
    %3705 = vmatprep.subr.mxu0 0.0
    %3706 = vmatpush1.msra.mxu0 0.0
    %3707 = vmatprep.mubr.f32.mxu0 0.0
    %3708 = vmatmul.mubr.f32.gmra.mrb[0].mxu0 %v3377
    %v3709 = vpop.f32.mrb[0].mxu0
    %v3710 = vadd.f32 %v3637, %v3709
    %v3711 = vpop.f32.mrb[0].mxu0
    %3712 = vdwg.mxu0
    %v3713 = vld [vmem:[%s12] sm:$0x1]
    %v3715 = vlaneseq
    %v3716 = vshrl.u32 %v3715, 7
    %v3717 = vsub.s32 0, %v3716
    %v3718 = vrot.slane %v3713, %v3717
    %v3720 = vadd.f32 %v3710, %v3718
    %v3721 = vtanh.pop %v3720
    %v3722 = vmul.f32 %v3721, 0.5
    %v3723 = vadd.f32 %v3722, 0.5
    %v3724 = vmul.f32 %v3723, %v83
    %3726 = vrot.lane.b32.xlu0 %v3721, 64
    %v3727 = vpop.permute.xlu0 %3726
    %v3729 = vmul.f32 %v3723, %v3727
    %3731 = vrot.lane.b32.xlu0 %v3729, 32
    %v3732 = vpop.permute.xlu0 %3731
    %v3734 = vadd.f32 %v3724, %v3732
    %v3735 = vtanh.pop %v3734
    %3737 = vrot.lane.b32.xlu0 %v3735, 64
    %v3738 = vpop.permute.xlu0 %3737
    %v3740 = vmul.f32 %v3723, %v3738
    %3742 = vrot.lane.b32.xlu0 %v3740, 32
    %v3743 = vpop.permute.xlu0 %3742
    %s3745 = scalar_lea.vmem %s13, 122
    %vm3746 = vcmask 222208
    %3747 = vst.msk [vmem:[%s3745] sm:$0x3] %vm3746, %v3743
    %v3748 = vld [vmem:[%s7] sm:$0xff]
    %v3749 = vld [vmem:[%s7 + $0x8] sm:$0x3f]
    %v3750 = vld [vmem:[%s8] sm:$0xff]
    %v3751 = vld [vmem:[%s8 + $0x8] sm:$0xff]
    %v3752 = vld [vmem:[%s8 + $0x10] sm:$0xff]
    %v3753 = vld [vmem:[%s8 + $0x18] sm:$0xf]
    %3755 = vrot.lane.b32.xlu0 %v3553, 32
    %v3756 = vpop.permute.xlu0 %3755
    %v3757 = vsel %vm3376, %v3756, 0
    %v3760 = vsel %vm3379, %v3753, 0
    %3762 = vmatprep.subr.mxu0 0.0
    %3763 = vmatpush1.msra.mxu0 %v3750
    %3764 = vmatprep.subr.mxu0 0.0
    %3765 = vmatpush1.msra.mxu0 %v3751
    %3766 = vmatprep.subr.mxu0 0.0
    %3767 = vmatpush1.msra.mxu0 %v3752
    %3768 = vmatprep.subr.mxu0 0.0
    %3769 = vmatpush1.msra.mxu0 %v3760
    %3770 = vmatprep.subr.mxu0 0.0
    %3771 = vmatpush1.msra.mxu0 0.0
    %3772 = vmatprep.subr.mxu0 0.0
    %3773 = vmatpush1.msra.mxu0 0.0
    %3774 = vmatprep.subr.mxu0 0.0
    %3775 = vmatpush1.msra.mxu0 0.0
    %3776 = vmatprep.subr.mxu0 0.0
    %3777 = vmatpush1.msra.mxu0 0.0
    %3778 = vmatprep.subr.mxu0 0.0
    %3779 = vmatpush1.msra.mxu0 0.0
    %3780 = vmatprep.subr.mxu0 0.0
    %3781 = vmatpush1.msra.mxu0 0.0
    %3782 = vmatprep.subr.mxu0 0.0
    %3783 = vmatpush1.msra.mxu0 0.0
    %3784 = vmatprep.subr.mxu0 0.0
    %3785 = vmatpush1.msra.mxu0 0.0
    %3786 = vmatprep.subr.mxu0 0.0
    %3787 = vmatpush1.msra.mxu0 0.0
    %3788 = vmatprep.subr.mxu0 0.0
    %3789 = vmatpush1.msra.mxu0 0.0
    %3790 = vmatprep.subr.mxu0 0.0
    %3791 = vmatpush1.msra.mxu0 0.0
    %3792 = vmatprep.subr.mxu0 0.0
    %3793 = vmatpush1.msra.mxu0 0.0
    %3794 = vmatprep.subr.mxu0 0.0
    %3795 = vmatpush1.msra.mxu0 0.0
    %3796 = vmatprep.subr.mxu0 0.0
    %3797 = vmatpush1.msra.mxu0 0.0
    %3798 = vmatprep.subr.mxu0 0.0
    %3799 = vmatpush1.msra.mxu0 0.0
    %3800 = vmatprep.subr.mxu0 0.0
    %3801 = vmatpush1.msra.mxu0 0.0
    %3802 = vmatprep.subr.mxu0 0.0
    %3803 = vmatpush1.msra.mxu0 0.0
    %3804 = vmatprep.subr.mxu0 0.0
    %3805 = vmatpush1.msra.mxu0 0.0
    %3806 = vmatprep.subr.mxu0 0.0
    %3807 = vmatpush1.msra.mxu0 0.0
    %3808 = vmatprep.subr.mxu0 0.0
    %3809 = vmatpush1.msra.mxu0 0.0
    %3810 = vmatprep.subr.mxu0 0.0
    %3811 = vmatpush1.msra.mxu0 0.0
    %3812 = vmatprep.subr.mxu0 0.0
    %3813 = vmatpush1.msra.mxu0 0.0
    %3814 = vmatprep.subr.mxu0 0.0
    %3815 = vmatpush1.msra.mxu0 0.0
    %3816 = vmatprep.subr.mxu0 0.0
    %3817 = vmatpush1.msra.mxu0 0.0
    %3818 = vmatprep.subr.mxu0 0.0
    %3819 = vmatpush1.msra.mxu0 0.0
    %3820 = vmatprep.subr.mxu0 0.0
    %3821 = vmatpush1.msra.mxu0 0.0
    %3822 = vmatprep.subr.mxu0 0.0
    %3823 = vmatpush1.msra.mxu0 0.0
    %3824 = vmatprep.subr.mxu0 0.0
    %3825 = vmatpush1.msra.mxu0 0.0
    %3826 = vmatprep.mubr.f32.mxu0 0.0
    %3827 = vmatmul.mubr.f32.gmra.mrb[0].mxu0 %v3757
    %v3828 = vpop.f32.mrb[0].mxu0
    %v3829 = vadd.f32 0.0, %v3828
    %v3830 = vpop.f32.mrb[0].mxu0
    %3831 = vdwg.mxu0
    %3833 = vrot.lane.b32.xlu0 %v3366, 32
    %v3834 = vpop.permute.xlu0 %3833
    %v3835 = vsel %vm3184, %v3834, 0
    %v3838 = vsel %vm3187, %v3749, 0
    %3840 = vmatprep.subr.mxu0 0.0
    %3841 = vmatpush1.msra.mxu0 %v3748
    %3842 = vmatprep.subr.mxu0 0.0
    %3843 = vmatpush1.msra.mxu0 %v3838
    %3844 = vmatprep.subr.mxu0 0.0
    %3845 = vmatpush1.msra.mxu0 0.0
    %3846 = vmatprep.subr.mxu0 0.0
    %3847 = vmatpush1.msra.mxu0 0.0
    %3848 = vmatprep.subr.mxu0 0.0
    %3849 = vmatpush1.msra.mxu0 0.0
    %3850 = vmatprep.subr.mxu0 0.0
    %3851 = vmatpush1.msra.mxu0 0.0
    %3852 = vmatprep.subr.mxu0 0.0
    %3853 = vmatpush1.msra.mxu0 0.0
    %3854 = vmatprep.subr.mxu0 0.0
    %3855 = vmatpush1.msra.mxu0 0.0
    %3856 = vmatprep.subr.mxu0 0.0
    %3857 = vmatpush1.msra.mxu0 0.0
    %3858 = vmatprep.subr.mxu0 0.0
    %3859 = vmatpush1.msra.mxu0 0.0
    %3860 = vmatprep.subr.mxu0 0.0
    %3861 = vmatpush1.msra.mxu0 0.0
    %3862 = vmatprep.subr.mxu0 0.0
    %3863 = vmatpush1.msra.mxu0 0.0
    %3864 = vmatprep.subr.mxu0 0.0
    %3865 = vmatpush1.msra.mxu0 0.0
    %3866 = vmatprep.subr.mxu0 0.0
    %3867 = vmatpush1.msra.mxu0 0.0
    %3868 = vmatprep.subr.mxu0 0.0
    %3869 = vmatpush1.msra.mxu0 0.0
    %3870 = vmatprep.subr.mxu0 0.0
    %3871 = vmatpush1.msra.mxu0 0.0
    %3872 = vmatprep.subr.mxu0 0.0
    %3873 = vmatpush1.msra.mxu0 0.0
    %3874 = vmatprep.subr.mxu0 0.0
    %3875 = vmatpush1.msra.mxu0 0.0
    %3876 = vmatprep.subr.mxu0 0.0
    %3877 = vmatpush1.msra.mxu0 0.0
    %3878 = vmatprep.subr.mxu0 0.0
    %3879 = vmatpush1.msra.mxu0 0.0
    %3880 = vmatprep.subr.mxu0 0.0
    %3881 = vmatpush1.msra.mxu0 0.0
    %3882 = vmatprep.subr.mxu0 0.0
    %3883 = vmatpush1.msra.mxu0 0.0
    %3884 = vmatprep.subr.mxu0 0.0
    %3885 = vmatpush1.msra.mxu0 0.0
    %3886 = vmatprep.subr.mxu0 0.0
    %3887 = vmatpush1.msra.mxu0 0.0
    %3888 = vmatprep.subr.mxu0 0.0
    %3889 = vmatpush1.msra.mxu0 0.0
    %3890 = vmatprep.subr.mxu0 0.0
    %3891 = vmatpush1.msra.mxu0 0.0
    %3892 = vmatprep.subr.mxu0 0.0
    %3893 = vmatpush1.msra.mxu0 0.0
    %3894 = vmatprep.subr.mxu0 0.0
    %3895 = vmatpush1.msra.mxu0 0.0
    %3896 = vmatprep.subr.mxu0 0.0
    %3897 = vmatpush1.msra.mxu0 0.0
    %3898 = vmatprep.subr.mxu0 0.0
    %3899 = vmatpush1.msra.mxu0 0.0
    %3900 = vmatprep.subr.mxu0 0.0
    %3901 = vmatpush1.msra.mxu0 0.0
    %3902 = vmatprep.subr.mxu0 0.0
    %3903 = vmatpush1.msra.mxu0 0.0
    %3904 = vmatprep.mubr.f32.mxu0 0.0
    %3905 = vmatmul.mubr.f32.gmra.mrb[0].mxu0 %v3835
    %v3906 = vpop.f32.mrb[0].mxu0
    %v3907 = vadd.f32 %v3829, %v3906
    %v3908 = vpop.f32.mrb[0].mxu0
    %3909 = vdwg.mxu0
    %v3910 = vld [vmem:[%s9] sm:$0x1]
    %v3912 = vlaneseq
    %v3913 = vshrl.u32 %v3912, 7
    %v3914 = vsub.s32 0, %v3913
    %v3915 = vrot.slane %v3910, %v3914
    %v3917 = vadd.f32 %v3907, %v3915
    %v3918 = vtanh.pop %v3917
    %v3919 = vmul.f32 %v3918, 0.5
    %v3920 = vadd.f32 %v3919, 0.5
    %v3921 = vmul.f32 %v3920, %v3547
    %3923 = vrot.lane.b32.xlu0 %v3918, 64
    %v3924 = vpop.permute.xlu0 %3923
    %v3926 = vmul.f32 %v3920, %v3924
    %3928 = vrot.lane.b32.xlu0 %v3926, 32
    %v3929 = vpop.permute.xlu0 %3928
    %v3931 = vadd.f32 %v3921, %v3929
    %v3932 = vtanh.pop %v3931
    %3934 = vrot.lane.b32.xlu0 %v3932, 64
    %v3935 = vpop.permute.xlu0 %3934
    %v3937 = vmul.f32 %v3920, %v3935
    %v3938 = vld [vmem:[%s10] sm:$0xff]
    %v3939 = vld [vmem:[%s10 + $0x8] sm:$0xff]
    %v3940 = vld [vmem:[%s10 + $0x10] sm:$0xff]
    %v3941 = vld [vmem:[%s10 + $0x18] sm:$0xf]
    %v3942 = vld [vmem:[%s11] sm:$0xff]
    %v3943 = vld [vmem:[%s11 + $0x8] sm:$0xff]
    %v3944 = vld [vmem:[%s11 + $0x10] sm:$0xff]
    %v3945 = vld [vmem:[%s11 + $0x18] sm:$0xf]
    %v3946 = vsel %vm3376, %v3743, 0
    %v3949 = vsel %vm3379, %v3945, 0
    %3951 = vmatprep.subr.mxu0 0.0
    %3952 = vmatpush1.msra.mxu0 %v3942
    %3953 = vmatprep.subr.mxu0 0.0
    %3954 = vmatpush1.msra.mxu0 %v3943
    %3955 = vmatprep.subr.mxu0 0.0
    %3956 = vmatpush1.msra.mxu0 %v3944
    %3957 = vmatprep.subr.mxu0 0.0
    %3958 = vmatpush1.msra.mxu0 %v3949
    %3959 = vmatprep.subr.mxu0 0.0
    %3960 = vmatpush1.msra.mxu0 0.0
    %3961 = vmatprep.subr.mxu0 0.0
    %3962 = vmatpush1.msra.mxu0 0.0
    %3963 = vmatprep.subr.mxu0 0.0
    %3964 = vmatpush1.msra.mxu0 0.0
    %3965 = vmatprep.subr.mxu0 0.0
    %3966 = vmatpush1.msra.mxu0 0.0
    %3967 = vmatprep.subr.mxu0 0.0
    %3968 = vmatpush1.msra.mxu0 0.0
    %3969 = vmatprep.subr.mxu0 0.0
    %3970 = vmatpush1.msra.mxu0 0.0
    %3971 = vmatprep.subr.mxu0 0.0
    %3972 = vmatpush1.msra.mxu0 0.0
    %3973 = vmatprep.subr.mxu0 0.0
    %3974 = vmatpush1.msra.mxu0 0.0
    %3975 = vmatprep.subr.mxu0 0.0
    %3976 = vmatpush1.msra.mxu0 0.0
    %3977 = vmatprep.subr.mxu0 0.0
    %3978 = vmatpush1.msra.mxu0 0.0
    %3979 = vmatprep.subr.mxu0 0.0
    %3980 = vmatpush1.msra.mxu0 0.0
    %3981 = vmatprep.subr.mxu0 0.0
    %3982 = vmatpush1.msra.mxu0 0.0
    %3983 = vmatprep.subr.mxu0 0.0
    %3984 = vmatpush1.msra.mxu0 0.0
    %3985 = vmatprep.subr.mxu0 0.0
    %3986 = vmatpush1.msra.mxu0 0.0
    %3987 = vmatprep.subr.mxu0 0.0
    %3988 = vmatpush1.msra.mxu0 0.0
    %3989 = vmatprep.subr.mxu0 0.0
    %3990 = vmatpush1.msra.mxu0 0.0
    %3991 = vmatprep.subr.mxu0 0.0
    %3992 = vmatpush1.msra.mxu0 0.0
    %3993 = vmatprep.subr.mxu0 0.0
    %3994 = vmatpush1.msra.mxu0 0.0
    %3995 = vmatprep.subr.mxu0 0.0
    %3996 = vmatpush1.msra.mxu0 0.0
    %3997 = vmatprep.subr.mxu0 0.0
    %3998 = vmatpush1.msra.mxu0 0.0
    %3999 = vmatprep.subr.mxu0 0.0
    %4000 = vmatpush1.msra.mxu0 0.0
    %4001 = vmatprep.subr.mxu0 0.0
    %4002 = vmatpush1.msra.mxu0 0.0
    %4003 = vmatprep.subr.mxu0 0.0
    %4004 = vmatpush1.msra.mxu0 0.0
    %4005 = vmatprep.subr.mxu0 0.0
    %4006 = vmatpush1.msra.mxu0 0.0
    %4007 = vmatprep.subr.mxu0 0.0
    %4008 = vmatpush1.msra.mxu0 0.0
    %4009 = vmatprep.subr.mxu0 0.0
    %4010 = vmatpush1.msra.mxu0 0.0
    %4011 = vmatprep.subr.mxu0 0.0
    %4012 = vmatpush1.msra.mxu0 0.0
    %4013 = vmatprep.subr.mxu0 0.0
    %4014 = vmatpush1.msra.mxu0 0.0
    %4015 = vmatprep.mubr.f32.mxu0 0.0
    %4016 = vmatmul.mubr.f32.gmra.mrb[0].mxu0 %v3946
    %v4017 = vpop.f32.mrb[0].mxu0
    %v4018 = vadd.f32 0.0, %v4017
    %v4019 = vpop.f32.mrb[0].mxu0
    %4020 = vdwg.mxu0
    %v4022 = vsel %vm3379, %v3941, 0
    %4024 = vmatprep.subr.mxu0 0.0
    %4025 = vmatpush1.msra.mxu0 %v3938
    %4026 = vmatprep.subr.mxu0 0.0
    %4027 = vmatpush1.msra.mxu0 %v3939
    %4028 = vmatprep.subr.mxu0 0.0
    %4029 = vmatpush1.msra.mxu0 %v3940
    %4030 = vmatprep.subr.mxu0 0.0
    %4031 = vmatpush1.msra.mxu0 %v4022
    %4032 = vmatprep.subr.mxu0 0.0
    %4033 = vmatpush1.msra.mxu0 0.0
    %4034 = vmatprep.subr.mxu0 0.0
    %4035 = vmatpush1.msra.mxu0 0.0
    %4036 = vmatprep.subr.mxu0 0.0
    %4037 = vmatpush1.msra.mxu0 0.0
    %4038 = vmatprep.subr.mxu0 0.0
    %4039 = vmatpush1.msra.mxu0 0.0
    %4040 = vmatprep.subr.mxu0 0.0
    %4041 = vmatpush1.msra.mxu0 0.0
    %4042 = vmatprep.subr.mxu0 0.0
    %4043 = vmatpush1.msra.mxu0 0.0
    %4044 = vmatprep.subr.mxu0 0.0
    %4045 = vmatpush1.msra.mxu0 0.0
    %4046 = vmatprep.subr.mxu0 0.0
    %4047 = vmatpush1.msra.mxu0 0.0
    %4048 = vmatprep.subr.mxu0 0.0
    %4049 = vmatpush1.msra.mxu0 0.0
    %4050 = vmatprep.subr.mxu0 0.0
    %4051 = vmatpush1.msra.mxu0 0.0
    %4052 = vmatprep.subr.mxu0 0.0
    %4053 = vmatpush1.msra.mxu0 0.0
    %4054 = vmatprep.subr.mxu0 0.0
    %4055 = vmatpush1.msra.mxu0 0.0
    %4056 = vmatprep.subr.mxu0 0.0
    %4057 = vmatpush1.msra.mxu0 0.0
    %4058 = vmatprep.subr.mxu0 0.0
    %4059 = vmatpush1.msra.mxu0 0.0
    %4060 = vmatprep.subr.mxu0 0.0
    %4061 = vmatpush1.msra.mxu0 0.0
    %4062 = vmatprep.subr.mxu0 0.0
    %4063 = vmatpush1.msra.mxu0 0.0
    %4064 = vmatprep.subr.mxu0 0.0
    %4065 = vmatpush1.msra.mxu0 0.0
    %4066 = vmatprep.subr.mxu0 0.0
    %4067 = vmatpush1.msra.mxu0 0.0
    %4068 = vmatprep.subr.mxu0 0.0
    %4069 = vmatpush1.msra.mxu0 0.0
    %4070 = vmatprep.subr.mxu0 0.0
    %4071 = vmatpush1.msra.mxu0 0.0
    %4072 = vmatprep.subr.mxu0 0.0
    %4073 = vmatpush1.msra.mxu0 0.0
    %4074 = vmatprep.subr.mxu0 0.0
    %4075 = vmatpush1.msra.mxu0 0.0
    %4076 = vmatprep.subr.mxu0 0.0
    %4077 = vmatpush1.msra.mxu0 0.0
    %4078 = vmatprep.subr.mxu0 0.0
    %4079 = vmatpush1.msra.mxu0 0.0
    %4080 = vmatprep.subr.mxu0 0.0
    %4081 = vmatpush1.msra.mxu0 0.0
    %4082 = vmatprep.subr.mxu0 0.0
    %4083 = vmatpush1.msra.mxu0 0.0
    %4084 = vmatprep.subr.mxu0 0.0
    %4085 = vmatpush1.msra.mxu0 0.0
    %4086 = vmatprep.subr.mxu0 0.0
    %4087 = vmatpush1.msra.mxu0 0.0
    %4088 = vmatprep.mubr.f32.mxu0 0.0
    %4089 = vmatmul.mubr.f32.gmra.mrb[0].mxu0 %v3757
    %v4090 = vpop.f32.mrb[0].mxu0
    %v4091 = vadd.f32 %v4018, %v4090
    %v4092 = vpop.f32.mrb[0].mxu0
    %4093 = vdwg.mxu0
    %v4094 = vld [vmem:[%s12] sm:$0x1]
    %v4096 = vlaneseq
    %v4097 = vshrl.u32 %v4096, 7
    %v4098 = vsub.s32 0, %v4097
    %v4099 = vrot.slane %v4094, %v4098
    %v4101 = vadd.f32 %v4091, %v4099
    %v4102 = vtanh.pop %v4101
    %v4103 = vmul.f32 %v4102, 0.5
    %v4104 = vadd.f32 %v4103, 0.5
    %v4105 = vmul.f32 %v4104, %v3734
    %4107 = vrot.lane.b32.xlu0 %v4102, 64
    %v4108 = vpop.permute.xlu0 %4107
    %v4110 = vmul.f32 %v4104, %v4108
    %4112 = vrot.lane.b32.xlu0 %v4110, 32
    %v4113 = vpop.permute.xlu0 %4112
    %v4115 = vadd.f32 %v4105, %v4113
    %v4116 = vtanh.pop %v4115
    %4118 = vrot.lane.b32.xlu0 %v4116, 64
    %v4119 = vpop.permute.xlu0 %4118
    %v4121 = vmul.f32 %v4104, %v4119
    %4123 = vrot.lane.b32.xlu0 %v4121, 32
    %v4124 = vpop.permute.xlu0 %4123
    %s4126 = scalar_lea.vmem %s13, 124
    %4127 = vst.msk [vmem:[%s4126] sm:$0x3] %vm3746, %v4124
    %v4128 = vld [vmem:[%s10] sm:$0xff]
    %v4129 = vld [vmem:[%s10 + $0x8] sm:$0xff]
    %v4130 = vld [vmem:[%s10 + $0x10] sm:$0xff]
    %v4131 = vld [vmem:[%s10 + $0x18] sm:$0xf]
    %v4132 = vld [vmem:[%s11] sm:$0xff]
    %v4133 = vld [vmem:[%s11 + $0x8] sm:$0xff]
    %v4134 = vld [vmem:[%s11 + $0x10] sm:$0xff]
    %v4135 = vld [vmem:[%s11 + $0x18] sm:$0xf]
    %v4136 = vsel %vm3376, %v4124, 0
    %v4139 = vsel %vm3379, %v4135, 0
    %4141 = vmatprep.subr.mxu0 0.0
    %4142 = vmatpush1.msra.mxu0 %v4132
    %4143 = vmatprep.subr.mxu0 0.0
    %4144 = vmatpush1.msra.mxu0 %v4133
    %4145 = vmatprep.subr.mxu0 0.0
    %4146 = vmatpush1.msra.mxu0 %v4134
    %4147 = vmatprep.subr.mxu0 0.0
    %4148 = vmatpush1.msra.mxu0 %v4139
    %4149 = vmatprep.subr.mxu0 0.0
    %4150 = vmatpush1.msra.mxu0 0.0
    %4151 = vmatprep.subr.mxu0 0.0
    %4152 = vmatpush1.msra.mxu0 0.0
    %4153 = vmatprep.subr.mxu0 0.0
    %4154 = vmatpush1.msra.mxu0 0.0
    %4155 = vmatprep.subr.mxu0 0.0
    %4156 = vmatpush1.msra.mxu0 0.0
    %4157 = vmatprep.subr.mxu0 0.0
    %4158 = vmatpush1.msra.mxu0 0.0
    %4159 = vmatprep.subr.mxu0 0.0
    %4160 = vmatpush1.msra.mxu0 0.0
    %4161 = vmatprep.subr.mxu0 0.0
    %4162 = vmatpush1.msra.mxu0 0.0
    %4163 = vmatprep.subr.mxu0 0.0
    %4164 = vmatpush1.msra.mxu0 0.0
    %4165 = vmatprep.subr.mxu0 0.0
    %4166 = vmatpush1.msra.mxu0 0.0
    %4167 = vmatprep.subr.mxu0 0.0
    %4168 = vmatpush1.msra.mxu0 0.0
    %4169 = vmatprep.subr.mxu0 0.0
    %4170 = vmatpush1.msra.mxu0 0.0
    %4171 = vmatprep.subr.mxu0 0.0
    %4172 = vmatpush1.msra.mxu0 0.0
    %4173 = vmatprep.subr.mxu0 0.0
    %4174 = vmatpush1.msra.mxu0 0.0
    %4175 = vmatprep.subr.mxu0 0.0
    %4176 = vmatpush1.msra.mxu0 0.0
    %4177 = vmatprep.subr.mxu0 0.0
    %4178 = vmatpush1.msra.mxu0 0.0
    %4179 = vmatprep.subr.mxu0 0.0
    %4180 = vmatpush1.msra.mxu0 0.0
    %4181 = vmatprep.subr.mxu0 0.0
    %4182 = vmatpush1.msra.mxu0 0.0
    %4183 = vmatprep.subr.mxu0 0.0
    %4184 = vmatpush1.msra.mxu0 0.0
    %4185 = vmatprep.subr.mxu0 0.0
    %4186 = vmatpush1.msra.mxu0 0.0
    %4187 = vmatprep.subr.mxu0 0.0
    %4188 = vmatpush1.msra.mxu0 0.0
    %4189 = vmatprep.subr.mxu0 0.0
    %4190 = vmatpush1.msra.mxu0 0.0
    %4191 = vmatprep.subr.mxu0 0.0
    %4192 = vmatpush1.msra.mxu0 0.0
    %4193 = vmatprep.subr.mxu0 0.0
    %4194 = vmatpush1.msra.mxu0 0.0
    %4195 = vmatprep.subr.mxu0 0.0
    %4196 = vmatpush1.msra.mxu0 0.0
    %4197 = vmatprep.subr.mxu0 0.0
    %4198 = vmatpush1.msra.mxu0 0.0
    %4199 = vmatprep.subr.mxu0 0.0
    %4200 = vmatpush1.msra.mxu0 0.0
    %4201 = vmatprep.subr.mxu0 0.0
    %4202 = vmatpush1.msra.mxu0 0.0
    %4203 = vmatprep.subr.mxu0 0.0
    %4204 = vmatpush1.msra.mxu0 0.0
    %4205 = vmatprep.mubr.f32.mxu0 0.0
    %4206 = vmatmul.mubr.f32.gmra.mrb[0].mxu0 %v4136
    %v4207 = vpop.f32.mrb[0].mxu0
    %v4208 = vadd.f32 0.0, %v4207
    %v4209 = vpop.f32.mrb[0].mxu0
    %4210 = vdwg.mxu0
    %4212 = vrot.lane.b32.xlu0 %v3937, 32
    %v4213 = vpop.permute.xlu0 %4212
    %v4214 = vsel %vm3376, %v4213, 0
    %v4217 = vsel %vm3379, %v4131, 0
    %4219 = vmatprep.subr.mxu0 0.0
    %4220 = vmatpush1.msra.mxu0 %v4128
    %4221 = vmatprep.subr.mxu0 0.0
    %4222 = vmatpush1.msra.mxu0 %v4129
    %4223 = vmatprep.subr.mxu0 0.0
    %4224 = vmatpush1.msra.mxu0 %v4130
    %4225 = vmatprep.subr.mxu0 0.0
    %4226 = vmatpush1.msra.mxu0 %v4217
    %4227 = vmatprep.subr.mxu0 0.0
    %4228 = vmatpush1.msra.mxu0 0.0
    %4229 = vmatprep.subr.mxu0 0.0
    %4230 = vmatpush1.msra.mxu0 0.0
    %4231 = vmatprep.subr.mxu0 0.0
    %4232 = vmatpush1.msra.mxu0 0.0
    %4233 = vmatprep.subr.mxu0 0.0
    %4234 = vmatpush1.msra.mxu0 0.0
    %4235 = vmatprep.subr.mxu0 0.0
    %4236 = vmatpush1.msra.mxu0 0.0
    %4237 = vmatprep.subr.mxu0 0.0
    %4238 = vmatpush1.msra.mxu0 0.0
    %4239 = vmatprep.subr.mxu0 0.0
    %4240 = vmatpush1.msra.mxu0 0.0
    %4241 = vmatprep.subr.mxu0 0.0
    %4242 = vmatpush1.msra.mxu0 0.0
    %4243 = vmatprep.subr.mxu0 0.0
    %4244 = vmatpush1.msra.mxu0 0.0
    %4245 = vmatprep.subr.mxu0 0.0
    %4246 = vmatpush1.msra.mxu0 0.0
    %4247 = vmatprep.subr.mxu0 0.0
    %4248 = vmatpush1.msra.mxu0 0.0
    %4249 = vmatprep.subr.mxu0 0.0
    %4250 = vmatpush1.msra.mxu0 0.0
    %4251 = vmatprep.subr.mxu0 0.0
    %4252 = vmatpush1.msra.mxu0 0.0
    %4253 = vmatprep.subr.mxu0 0.0
    %4254 = vmatpush1.msra.mxu0 0.0
    %4255 = vmatprep.subr.mxu0 0.0
    %4256 = vmatpush1.msra.mxu0 0.0
    %4257 = vmatprep.subr.mxu0 0.0
    %4258 = vmatpush1.msra.mxu0 0.0
    %4259 = vmatprep.subr.mxu0 0.0
    %4260 = vmatpush1.msra.mxu0 0.0
    %4261 = vmatprep.subr.mxu0 0.0
    %4262 = vmatpush1.msra.mxu0 0.0
    %4263 = vmatprep.subr.mxu0 0.0
    %4264 = vmatpush1.msra.mxu0 0.0
    %4265 = vmatprep.subr.mxu0 0.0
    %4266 = vmatpush1.msra.mxu0 0.0
    %4267 = vmatprep.subr.mxu0 0.0
    %4268 = vmatpush1.msra.mxu0 0.0
    %4269 = vmatprep.subr.mxu0 0.0
    %4270 = vmatpush1.msra.mxu0 0.0
    %4271 = vmatprep.subr.mxu0 0.0
    %4272 = vmatpush1.msra.mxu0 0.0
    %4273 = vmatprep.subr.mxu0 0.0
    %4274 = vmatpush1.msra.mxu0 0.0
    %4275 = vmatprep.subr.mxu0 0.0
    %4276 = vmatpush1.msra.mxu0 0.0
    %4277 = vmatprep.subr.mxu0 0.0
    %4278 = vmatpush1.msra.mxu0 0.0
    %4279 = vmatprep.subr.mxu0 0.0
    %4280 = vmatpush1.msra.mxu0 0.0
    %4281 = vmatprep.subr.mxu0 0.0
    %4282 = vmatpush1.msra.mxu0 0.0
    %4283 = vmatprep.mubr.f32.mxu0 0.0
    %4284 = vmatmul.mubr.f32.gmra.mrb[0].mxu0 %v4214
    %v4285 = vpop.f32.mrb[0].mxu0
    %v4286 = vadd.f32 %v4208, %v4285
    %v4287 = vpop.f32.mrb[0].mxu0
    %4288 = vdwg.mxu0
    %v4289 = vld [vmem:[%s12] sm:$0x1]
    %v4291 = vlaneseq
    %v4292 = vshrl.u32 %v4291, 7
    %v4293 = vsub.s32 0, %v4292
    %v4294 = vrot.slane %v4289, %v4293
    %v4296 = vadd.f32 %v4286, %v4294
    %v4297 = vtanh.pop %v4296
    %v4298 = vmul.f32 %v4297, 0.5
    %v4299 = vadd.f32 %v4298, 0.5
    %v4300 = vmul.f32 %v4299, %v4115
    %4302 = vrot.lane.b32.xlu0 %v4297, 64
    %v4303 = vpop.permute.xlu0 %4302
    %v4305 = vmul.f32 %v4299, %v4303
    %4307 = vrot.lane.b32.xlu0 %v4305, 32
    %v4308 = vpop.permute.xlu0 %4307
    %v4310 = vadd.f32 %v4300, %v4308
    %v4311 = vtanh.pop %v4310
    %4313 = vrot.lane.b32.xlu0 %v4311, 64
    %v4314 = vpop.permute.xlu0 %4313
    %v4316 = vmul.f32 %v4299, %v4314
    %4318 = vrot.lane.b32.xlu0 %v4316, 32
    %v4319 = vpop.permute.xlu0 %4318
    %s4321 = scalar_lea.vmem %s13, 126
    %4322 = vst.msk [vmem:[%s4321] sm:$0x3] %vm3746, %v4319
    // Predicated region
    $region69: #{_lambda_.1} parent=1 // pred_check
      _
    $region70: #{_lambda_.1} parent=1 // pred_check_branch
      %4324 = sbr.rel (0) target = $region72
    $region71: #{_lambda_.1} parent=1 // pred_region
      _
    $region72: #{_lambda_.1} parent=1 // pred_fallthru
      _
    // Predicated region
    $region73: #{_lambda_.1} parent=1 // pred_check
      _
    $region74: #{_lambda_.1} parent=1 // pred_check_branch
      %4326 = sbr.rel (0) target = $region76
    $region75: #{_lambda_.1} parent=1 // pred_region
      _
    $region76: #{_lambda_.1} parent=1 // pred_fallthru
      _
    %4327 = vsyncpa [#allocation3], 1
    %4328 = vsyncpa [#allocation5], 1

</llo_original>
